<compile_context>
chip_gen: v5e
topology: v5e:2x2
jax: 0.10.0
libtpu: 0.0.40
codegen_flags: <defaults>
</compile_context>

<pallas_src>
import functools
import math

import jax
import jax.numpy as jnp
from jax.experimental import pallas as pl
from jax.experimental.pallas import tpu as pltpu

# usps tree widths
K_LIST = [256, 128, 64, 32, 16, 8, 4, 2, 1]
F = K_LIST[0]            # 256 input features
W_NARROW = K_LIST[1]     # 128: working lane width after level 0
L = len(K_LIST) - 1      # 8 tree levels
LEAK = 0.01
EP, EM, E0 = 50.0, -70.0, -65.0

# bf16 matmul operands (v6e/v7x MXU fast path, halves weight VMEM/DMA); the
# synapse math, LeakyReLU and hinge accumulation stay f32.  Set to jnp.float32
# for a bit-closer match to the f32 PyTorch reference.
MATMUL_DTYPE = jnp.bfloat16


def _round_up(v, m):
    return (v + m - 1) // m * m


def _ktree_kernel(x_ref, ap1_ref, ap2_ref, am1_ref, am2_ref, g0_ref,
                  w0_ref, wr_ref, rootw_ref, rootb_ref,
                  out_ref, loss_ref, *, true_batch):
    x = x_ref[...]                                          # (TB, 256) f32

    # --- Synapse (f32) ---
    gp = jnp.exp(jnp.clip(ap1_ref[...] * x + ap2_ref[...], -60.0, 60.0))
    gm = jnp.exp(jnp.clip(am1_ref[...] * x + am2_ref[...], -60.0, 60.0))
    g0 = g0_ref[...]
    top = gp * EP + gm * EM + g0 * E0
    bot = gp + gm + g0
    # EUP approx-reciprocal path (exact form: y = top / bot).
    y = top * pl.reciprocal(bot, approx=True)               # (TB, 256) f32

    tb = x.shape[0]
    acc = jnp.zeros((tb, W_NARROW), jnp.float32)            # running hinge accumulator
    inv_b = 1.0 / float(true_batch)                         # TRUE batch count, not padded

    def level(y, w, kout):
        # Zero-padded dense embedding of the 2:1 binary-tree SparseLinear.
        # Bias omitted: it is zeroed in the module's __init__.
        y = jnp.dot(y.astype(MATMUL_DTYPE), w, preferred_element_type=jnp.float32)
        y = jnp.where(y >= 0.0, y, LEAK * y)                # nn.LeakyReLU(0.01)
        # hinge_criterion terms; 1/(B*kout) folds to a compile-time constant.
        h = (jnp.maximum(y - 50.5, 0.0) + jnp.maximum(-70.5 - y, 0.0)) * (inv_b / kout)
        return y, h

    # level 0: 256 -> 128 (exact shape, no padding)
    y, h = level(y, w0_ref[...], K_LIST[1])
    acc = acc + h
    # levels 1..7: (128,128) zero-padded; padded lanes remain exactly 0.
    for i in range(1, L):
        y, h = level(y, wr_ref[i - 1], K_LIST[i + 1])
        acc = acc + h

    # root Linear(Repeats=1 -> 1), bias zeroed at init.
    out_ref[...] = y[:, 0:1] * rootw_ref[...] + rootb_ref[...]
    # Single cross-lane reduce per tile: per-row loss partials; the wrapper
    # sums only the valid (unpadded) rows.
    loss_ref[...] = jnp.sum(acc, axis=1, keepdims=True)


def ktree_synapse_forward(x, params, tile_b=256):
    """Returns (output (B,1), hinge loss scalar) like the PyTorch module."""
    B = x.shape[0]
    # Batch tile: multiple of 8 sublanes.  256 keeps v6e/v7x MXU rows full;
    # 128 is a good choice on v5e.  Small batches collapse to one tile.
    tile_b = min(int(tile_b), _round_up(B, 8))
    tile_b = _round_up(max(tile_b, 8), 8)
    num_tiles = pl.cdiv(B, tile_b)
    b_pad = num_tiles * tile_b
    if b_pad != B:
        # Padded rows are row-independent and are sliced out before the loss
        # sum, so they cannot perturb the result.
        x = jnp.pad(x, ((0, b_pad - B), (0, 0)))

    row = lambda b: (b, 0)
    const2 = lambda b: (0, 0)
    const3 = lambda b: (0, 0, 0)
    vparam = pl.BlockSpec((1, F), const2)          # VMEM-resident (fetched once)

    out, loss_rows = pl.pallas_call(
        functools.partial(_ktree_kernel, true_batch=B),
        grid=(num_tiles,),
        in_specs=[
            pl.BlockSpec((tile_b, F), row),                      # x, pipelined over batch
            vparam, vparam, vparam, vparam, vparam,              # ap1, ap2, am1, am2, g0
            pl.BlockSpec((F, W_NARROW), const2),                 # level-0 weights (256,128)
            pl.BlockSpec((L - 1, W_NARROW, W_NARROW), const3),   # levels 1..7 (7,128,128)
            pl.BlockSpec((1, 1), const2),                        # root weight
            pl.BlockSpec((1, 1), const2),                        # root bias
        ],
        out_specs=(
            pl.BlockSpec((tile_b, 1), row),                      # network output rows
            pl.BlockSpec((tile_b, 1), row),                      # per-row hinge partials
        ),
        out_shape=(
            jax.ShapeDtypeStruct((b_pad, 1), jnp.float32),
            jax.ShapeDtypeStruct((b_pad, 1), jnp.float32),
        ),
        compiler_params=pltpu.CompilerParams(
            dimension_semantics=("parallel",)),                  # megacore sharding on v7x
    )(x, params["ap1"], params["ap2"], params["am1"], params["am2"],
      params["g0"], params["W0"], params["Wr"],
      params["root_w"], params["root_b"])

    loss = jnp.sum(loss_rows[:B, 0])      # padded rows excluded; divisors used true B
    return out[:B], loss


def init_params(key):
    """Deterministic synthetic init mirroring the module's parameter shapes."""
    ks = jax.random.split(key, 7)
    std = math.sqrt(2.0 / F)                 # Synapse init: N(0, sqrt(2/in_features))
    ap1 = std * jax.random.normal(ks[0], (1, F), jnp.float32)
    ap2 = std * jax.random.normal(ks[1], (1, F), jnp.float32)
    am1 = std * jax.random.normal(ks[2], (1, F), jnp.float32)
    am2 = std * jax.random.normal(ks[3], (1, F), jnp.float32)
    g0 = std * jax.random.normal(ks[4], (1, F), jnp.float32)

    # Tree SparseLinear weights: level i maps k[i] -> k[i+1]; output j connects
    # to inputs (2j, 2j+1) (kronecker(eye, ones(1,2)) connectivity), embedded
    # as zero-padded dense matrices in the y @ W convention.
    wkeys = jax.random.split(ks[5], L)

    def dense_level(i):
        kin, kout = K_LIST[i], K_LIST[i + 1]
        vals = jax.random.normal(wkeys[i], (kout, 2), jnp.float32) * math.sqrt(1.0 / kin)
        rows = jnp.arange(kout)
        d = jnp.zeros((kin, kout), jnp.float32)
        d = d.at[2 * rows, rows].set(vals[:, 0])
        d = d.at[2 * rows + 1, rows].set(vals[:, 1])
        return d

    W0 = dense_level(0)                                          # (256, 128), exact
    Wr = jnp.zeros((L - 1, W_NARROW, W_NARROW), jnp.float32)     # (7, 128, 128), zero-padded
    for i in range(1, L):
        d = dense_level(i)
        Wr = Wr.at[i - 1, :K_LIST[i], :K_LIST[i + 1]].set(d)

    # SparseLinear biases are zeroed at init and omitted from the kernel.
    root_w = jax.random.normal(ks[6], (1, 1), jnp.float32)
    root_b = jnp.zeros((1, 1), jnp.float32)                      # root bias zeroed at init

    return dict(ap1=ap1, ap2=ap2, am1=am1, am2=am2, g0=g0,
                W0=W0.astype(MATMUL_DTYPE), Wr=Wr.astype(MATMUL_DTYPE),
                root_w=root_w, root_b=root_b)


if __name__ == "__main__":
    key = jax.random.PRNGKey(0)
    kx, kp = jax.random.split(key)
    B = 200                                              # 2 batch tiles incl. a partial tile
    x = jax.random.normal(kx, (B, F), jnp.float32)       # usps-style flattened input
    params = init_params(kp)

    out, loss = ktree_synapse_forward(x, params, tile_b=128)
    jax.block_until_ready((out, loss))
    assert out.shape == (B, 1) and loss.shape == ()
    assert bool(jnp.all(jnp.isfinite(out))) and bool(jnp.isfinite(loss))
    print("KERNEL_OK")
</pallas_src>

<mosaic_0001>
module attributes {stable_mosaic.version = 11 : i64} {
  func.func @_ktree_kernel(%arg0: i32, %arg1: memref<128x256xf32, #tpu.memory_space<vmem>>, %arg2: memref<1x256xf32, #tpu.memory_space<vmem>>, %arg3: memref<1x256xf32, #tpu.memory_space<vmem>>, %arg4: memref<1x256xf32, #tpu.memory_space<vmem>>, %arg5: memref<1x256xf32, #tpu.memory_space<vmem>>, %arg6: memref<1x256xf32, #tpu.memory_space<vmem>>, %arg7: memref<256x128xbf16, #tpu.memory_space<vmem>>, %arg8: memref<7x128x128xbf16, #tpu.memory_space<vmem>>, %arg9: memref<1x1xf32, #tpu.memory_space<vmem>>, %arg10: memref<1x1xf32, #tpu.memory_space<vmem>>, %arg11: memref<128x1xf32, #tpu.memory_space<vmem>>, %arg12: memref<128x1xf32, #tpu.memory_space<vmem>>) attributes {dimension_semantics = [#tpu.dimension_semantics<parallel>], iteration_bounds = array<i64: 2>, scalar_prefetch = 0 : i64, scratch_operands = 0 : i64, tpu.core_type = #tpu.core_type<tc>, window_params = [{transform_indices = @transform_0, window_bounds = array<i64: 128, 256>}, {pipeline_mode = #tpu.pipeline_mode<synchronous>, transform_indices = @transform_1, window_bounds = array<i64: 1, 256>}, {pipeline_mode = #tpu.pipeline_mode<synchronous>, transform_indices = @transform_2, window_bounds = array<i64: 1, 256>}, {pipeline_mode = #tpu.pipeline_mode<synchronous>, transform_indices = @transform_3, window_bounds = array<i64: 1, 256>}, {pipeline_mode = #tpu.pipeline_mode<synchronous>, transform_indices = @transform_4, window_bounds = array<i64: 1, 256>}, {pipeline_mode = #tpu.pipeline_mode<synchronous>, transform_indices = @transform_5, window_bounds = array<i64: 1, 256>}, {pipeline_mode = #tpu.pipeline_mode<synchronous>, transform_indices = @transform_6, window_bounds = array<i64: 256, 128>}, {pipeline_mode = #tpu.pipeline_mode<synchronous>, transform_indices = @transform_7, window_bounds = array<i64: 7, 128, 128>}, {pipeline_mode = #tpu.pipeline_mode<synchronous>, transform_indices = @transform_8, window_bounds = array<i64: 1, 1>}, {pipeline_mode = #tpu.pipeline_mode<synchronous>, transform_indices = @transform_9, window_bounds = array<i64: 1, 1>}, {transform_indices = @transform_10, window_bounds = array<i64: 128, 1>}, {transform_indices = @transform_11, window_bounds = array<i64: 128, 1>}]} {
    %c0 = arith.constant 0 : index
    %c0_0 = arith.constant 0 : index
    %0 = vector.load %arg1[%c0, %c0_0] : memref<128x256xf32, #tpu.memory_space<vmem>>, vector<128x256xf32>
    %c0_1 = arith.constant 0 : index
    %c0_2 = arith.constant 0 : index
    %1 = vector.load %arg2[%c0_1, %c0_2] : memref<1x256xf32, #tpu.memory_space<vmem>>, vector<1x256xf32>
    %2 = vector.broadcast %1 : vector<1x256xf32> to vector<128x256xf32>
    %3 = arith.mulf %2, %0 : vector<128x256xf32>
    %c0_3 = arith.constant 0 : index
    %c0_4 = arith.constant 0 : index
    %4 = vector.load %arg3[%c0_3, %c0_4] : memref<1x256xf32, #tpu.memory_space<vmem>>, vector<1x256xf32>
    %5 = vector.broadcast %4 : vector<1x256xf32> to vector<128x256xf32>
    %6 = arith.addf %3, %5 : vector<128x256xf32>
    %cst = arith.constant -6.000000e+01 : f32
    %cst_5 = arith.constant 6.000000e+01 : f32
    %7 = vector.broadcast %cst : f32 to vector<128x256xf32>
    %8 = arith.maximumf %7, %6 : vector<128x256xf32>
    %9 = vector.broadcast %cst_5 : f32 to vector<128x256xf32>
    %10 = arith.minimumf %9, %8 : vector<128x256xf32>
    %11 = math.exp %10 : vector<128x256xf32>
    %c0_6 = arith.constant 0 : index
    %c0_7 = arith.constant 0 : index
    %12 = vector.load %arg4[%c0_6, %c0_7] : memref<1x256xf32, #tpu.memory_space<vmem>>, vector<1x256xf32>
    %13 = vector.broadcast %12 : vector<1x256xf32> to vector<128x256xf32>
    %14 = arith.mulf %13, %0 : vector<128x256xf32>
    %c0_8 = arith.constant 0 : index
    %c0_9 = arith.constant 0 : index
    %15 = vector.load %arg5[%c0_8, %c0_9] : memref<1x256xf32, #tpu.memory_space<vmem>>, vector<1x256xf32>
    %16 = vector.broadcast %15 : vector<1x256xf32> to vector<128x256xf32>
    %17 = arith.addf %14, %16 : vector<128x256xf32>
    %cst_10 = arith.constant -6.000000e+01 : f32
    %cst_11 = arith.constant 6.000000e+01 : f32
    %18 = vector.broadcast %cst_10 : f32 to vector<128x256xf32>
    %19 = arith.maximumf %18, %17 : vector<128x256xf32>
    %20 = vector.broadcast %cst_11 : f32 to vector<128x256xf32>
    %21 = arith.minimumf %20, %19 : vector<128x256xf32>
    %22 = math.exp %21 : vector<128x256xf32>
    %c0_12 = arith.constant 0 : index
    %c0_13 = arith.constant 0 : index
    %23 = vector.load %arg6[%c0_12, %c0_13] : memref<1x256xf32, #tpu.memory_space<vmem>>, vector<1x256xf32>
    %cst_14 = arith.constant 5.000000e+01 : f32
    %24 = vector.broadcast %cst_14 : f32 to vector<128x256xf32>
    %25 = arith.mulf %11, %24 : vector<128x256xf32>
    %cst_15 = arith.constant -7.000000e+01 : f32
    %26 = vector.broadcast %cst_15 : f32 to vector<128x256xf32>
    %27 = arith.mulf %22, %26 : vector<128x256xf32>
    %28 = arith.addf %25, %27 : vector<128x256xf32>
    %cst_16 = arith.constant -6.500000e+01 : f32
    %29 = vector.broadcast %cst_16 : f32 to vector<1x256xf32>
    %30 = arith.mulf %23, %29 : vector<1x256xf32>
    %31 = vector.broadcast %30 : vector<1x256xf32> to vector<128x256xf32>
    %32 = arith.addf %28, %31 : vector<128x256xf32>
    %33 = arith.addf %11, %22 : vector<128x256xf32>
    %34 = vector.broadcast %23 : vector<1x256xf32> to vector<128x256xf32>
    %35 = arith.addf %33, %34 : vector<128x256xf32>
    %36 = tpu.reciprocal %35 {approx = true} : vector<128x256xf32> -> vector<128x256xf32>
    %37 = arith.mulf %32, %36 : vector<128x256xf32>
    %cst_17 = arith.constant 0.000000e+00 : f32
    %38 = vector.broadcast %cst_17 : f32 to vector<128x128xf32>
    %c0_18 = arith.constant 0 : index
    %c0_19 = arith.constant 0 : index
    %39 = vector.load %arg7[%c0_18, %c0_19] : memref<256x128xbf16, #tpu.memory_space<vmem>>, vector<256x128xbf16>
    %40 = arith.truncf %37 : vector<128x256xf32> to vector<128x256xbf16>
    %cst_20 = arith.constant dense<0.000000e+00> : vector<128x128xf32>
    %41 = tpu.matmul %40, %39, %cst_20 {dimension_numbers = #tpu.dot_dimension_numbers<[1], [0], [0], [1], [0, 0, 1, 1], [], []>} : vector<128x256xbf16>, vector<256x128xbf16>, vector<128x128xf32> -> vector<128x128xf32>
    %cst_21 = arith.constant 0.000000e+00 : f32
    %42 = vector.broadcast %cst_21 : f32 to vector<128x128xf32>
    %43 = arith.cmpf oge, %41, %42 : vector<128x128xf32>
    %cst_22 = arith.constant 0.00999999977 : f32
    %44 = vector.broadcast %cst_22 : f32 to vector<128x128xf32>
    %45 = arith.mulf %44, %41 : vector<128x128xf32>
    %46 = arith.select %43, %41, %45 : vector<128x128xi1>, vector<128x128xf32>
    %cst_23 = arith.constant 5.050000e+01 : f32
    %47 = vector.broadcast %cst_23 : f32 to vector<128x128xf32>
    %48 = arith.subf %46, %47 : vector<128x128xf32>
    %cst_24 = arith.constant 0.000000e+00 : f32
    %49 = vector.broadcast %cst_24 : f32 to vector<128x128xf32>
    %50 = arith.maximumf %48, %49 : vector<128x128xf32>
    %cst_25 = arith.constant -7.050000e+01 : f32
    %51 = vector.broadcast %cst_25 : f32 to vector<128x128xf32>
    %52 = arith.subf %51, %46 : vector<128x128xf32>
    %cst_26 = arith.constant 0.000000e+00 : f32
    %53 = vector.broadcast %cst_26 : f32 to vector<128x128xf32>
    %54 = arith.maximumf %52, %53 : vector<128x128xf32>
    %55 = arith.addf %50, %54 : vector<128x128xf32>
    %cst_27 = arith.constant 3.906250e-05 : f32
    %56 = vector.broadcast %cst_27 : f32 to vector<128x128xf32>
    %57 = arith.mulf %55, %56 : vector<128x128xf32>
    %58 = arith.addf %38, %57 : vector<128x128xf32>
    %c0_28 = arith.constant 0 : index
    %c0_29 = arith.constant 0 : index
    %c0_30 = arith.constant 0 : index
    %59 = vector.load %arg8[%c0_28, %c0_29, %c0_30] : memref<7x128x128xbf16, #tpu.memory_space<vmem>>, vector<1x128x128xbf16>
    %60 = vector.shape_cast %59 : vector<1x128x128xbf16> to vector<128x128xbf16>
    %61 = arith.truncf %46 : vector<128x128xf32> to vector<128x128xbf16>
    %cst_31 = arith.constant dense<0.000000e+00> : vector<128x128xf32>
    %62 = tpu.matmul %61, %60, %cst_31 {dimension_numbers = #tpu.dot_dimension_numbers<[1], [0], [0], [1], [0, 0, 1, 1], [], []>} : vector<128x128xbf16>, vector<128x128xbf16>, vector<128x128xf32> -> vector<128x128xf32>
    %cst_32 = arith.constant 0.000000e+00 : f32
    %63 = vector.broadcast %cst_32 : f32 to vector<128x128xf32>
    %64 = arith.cmpf oge, %62, %63 : vector<128x128xf32>
    %cst_33 = arith.constant 0.00999999977 : f32
    %65 = vector.broadcast %cst_33 : f32 to vector<128x128xf32>
    %66 = arith.mulf %65, %62 : vector<128x128xf32>
    %67 = arith.select %64, %62, %66 : vector<128x128xi1>, vector<128x128xf32>
    %cst_34 = arith.constant 5.050000e+01 : f32
    %68 = vector.broadcast %cst_34 : f32 to vector<128x128xf32>
    %69 = arith.subf %67, %68 : vector<128x128xf32>
    %cst_35 = arith.constant 0.000000e+00 : f32
    %70 = vector.broadcast %cst_35 : f32 to vector<128x128xf32>
    %71 = arith.maximumf %69, %70 : vector<128x128xf32>
    %cst_36 = arith.constant -7.050000e+01 : f32
    %72 = vector.broadcast %cst_36 : f32 to vector<128x128xf32>
    %73 = arith.subf %72, %67 : vector<128x128xf32>
    %cst_37 = arith.constant 0.000000e+00 : f32
    %74 = vector.broadcast %cst_37 : f32 to vector<128x128xf32>
    %75 = arith.maximumf %73, %74 : vector<128x128xf32>
    %76 = arith.addf %71, %75 : vector<128x128xf32>
    %cst_38 = arith.constant 7.812500e-05 : f32
    %77 = vector.broadcast %cst_38 : f32 to vector<128x128xf32>
    %78 = arith.mulf %76, %77 : vector<128x128xf32>
    %79 = arith.addf %58, %78 : vector<128x128xf32>
    %c1 = arith.constant 1 : index
    %c0_39 = arith.constant 0 : index
    %c0_40 = arith.constant 0 : index
    %80 = vector.load %arg8[%c1, %c0_39, %c0_40] : memref<7x128x128xbf16, #tpu.memory_space<vmem>>, vector<1x128x128xbf16>
    %81 = vector.shape_cast %80 : vector<1x128x128xbf16> to vector<128x128xbf16>
    %82 = arith.truncf %67 : vector<128x128xf32> to vector<128x128xbf16>
    %cst_41 = arith.constant dense<0.000000e+00> : vector<128x128xf32>
    %83 = tpu.matmul %82, %81, %cst_41 {dimension_numbers = #tpu.dot_dimension_numbers<[1], [0], [0], [1], [0, 0, 1, 1], [], []>} : vector<128x128xbf16>, vector<128x128xbf16>, vector<128x128xf32> -> vector<128x128xf32>
    %cst_42 = arith.constant 0.000000e+00 : f32
    %84 = vector.broadcast %cst_42 : f32 to vector<128x128xf32>
    %85 = arith.cmpf oge, %83, %84 : vector<128x128xf32>
    %cst_43 = arith.constant 0.00999999977 : f32
    %86 = vector.broadcast %cst_43 : f32 to vector<128x128xf32>
    %87 = arith.mulf %86, %83 : vector<128x128xf32>
    %88 = arith.select %85, %83, %87 : vector<128x128xi1>, vector<128x128xf32>
    %cst_44 = arith.constant 5.050000e+01 : f32
    %89 = vector.broadcast %cst_44 : f32 to vector<128x128xf32>
    %90 = arith.subf %88, %89 : vector<128x128xf32>
    %cst_45 = arith.constant 0.000000e+00 : f32
    %91 = vector.broadcast %cst_45 : f32 to vector<128x128xf32>
    %92 = arith.maximumf %90, %91 : vector<128x128xf32>
    %cst_46 = arith.constant -7.050000e+01 : f32
    %93 = vector.broadcast %cst_46 : f32 to vector<128x128xf32>
    %94 = arith.subf %93, %88 : vector<128x128xf32>
    %cst_47 = arith.constant 0.000000e+00 : f32
    %95 = vector.broadcast %cst_47 : f32 to vector<128x128xf32>
    %96 = arith.maximumf %94, %95 : vector<128x128xf32>
    %97 = arith.addf %92, %96 : vector<128x128xf32>
    %cst_48 = arith.constant 1.562500e-04 : f32
    %98 = vector.broadcast %cst_48 : f32 to vector<128x128xf32>
    %99 = arith.mulf %97, %98 : vector<128x128xf32>
    %100 = arith.addf %79, %99 : vector<128x128xf32>
    %c2 = arith.constant 2 : index
    %c0_49 = arith.constant 0 : index
    %c0_50 = arith.constant 0 : index
    %101 = vector.load %arg8[%c2, %c0_49, %c0_50] : memref<7x128x128xbf16, #tpu.memory_space<vmem>>, vector<1x128x128xbf16>
    %102 = vector.shape_cast %101 : vector<1x128x128xbf16> to vector<128x128xbf16>
    %103 = arith.truncf %88 : vector<128x128xf32> to vector<128x128xbf16>
    %cst_51 = arith.constant dense<0.000000e+00> : vector<128x128xf32>
    %104 = tpu.matmul %103, %102, %cst_51 {dimension_numbers = #tpu.dot_dimension_numbers<[1], [0], [0], [1], [0, 0, 1, 1], [], []>} : vector<128x128xbf16>, vector<128x128xbf16>, vector<128x128xf32> -> vector<128x128xf32>
    %cst_52 = arith.constant 0.000000e+00 : f32
    %105 = vector.broadcast %cst_52 : f32 to vector<128x128xf32>
    %106 = arith.cmpf oge, %104, %105 : vector<128x128xf32>
    %cst_53 = arith.constant 0.00999999977 : f32
    %107 = vector.broadcast %cst_53 : f32 to vector<128x128xf32>
    %108 = arith.mulf %107, %104 : vector<128x128xf32>
    %109 = arith.select %106, %104, %108 : vector<128x128xi1>, vector<128x128xf32>
    %cst_54 = arith.constant 5.050000e+01 : f32
    %110 = vector.broadcast %cst_54 : f32 to vector<128x128xf32>
    %111 = arith.subf %109, %110 : vector<128x128xf32>
    %cst_55 = arith.constant 0.000000e+00 : f32
    %112 = vector.broadcast %cst_55 : f32 to vector<128x128xf32>
    %113 = arith.maximumf %111, %112 : vector<128x128xf32>
    %cst_56 = arith.constant -7.050000e+01 : f32
    %114 = vector.broadcast %cst_56 : f32 to vector<128x128xf32>
    %115 = arith.subf %114, %109 : vector<128x128xf32>
    %cst_57 = arith.constant 0.000000e+00 : f32
    %116 = vector.broadcast %cst_57 : f32 to vector<128x128xf32>
    %117 = arith.maximumf %115, %116 : vector<128x128xf32>
    %118 = arith.addf %113, %117 : vector<128x128xf32>
    %cst_58 = arith.constant 3.125000e-04 : f32
    %119 = vector.broadcast %cst_58 : f32 to vector<128x128xf32>
    %120 = arith.mulf %118, %119 : vector<128x128xf32>
    %121 = arith.addf %100, %120 : vector<128x128xf32>
    %c3 = arith.constant 3 : index
    %c0_59 = arith.constant 0 : index
    %c0_60 = arith.constant 0 : index
    %122 = vector.load %arg8[%c3, %c0_59, %c0_60] : memref<7x128x128xbf16, #tpu.memory_space<vmem>>, vector<1x128x128xbf16>
    %123 = vector.shape_cast %122 : vector<1x128x128xbf16> to vector<128x128xbf16>
    %124 = arith.truncf %109 : vector<128x128xf32> to vector<128x128xbf16>
    %cst_61 = arith.constant dense<0.000000e+00> : vector<128x128xf32>
    %125 = tpu.matmul %124, %123, %cst_61 {dimension_numbers = #tpu.dot_dimension_numbers<[1], [0], [0], [1], [0, 0, 1, 1], [], []>} : vector<128x128xbf16>, vector<128x128xbf16>, vector<128x128xf32> -> vector<128x128xf32>
    %cst_62 = arith.constant 0.000000e+00 : f32
    %126 = vector.broadcast %cst_62 : f32 to vector<128x128xf32>
    %127 = arith.cmpf oge, %125, %126 : vector<128x128xf32>
    %cst_63 = arith.constant 0.00999999977 : f32
    %128 = vector.broadcast %cst_63 : f32 to vector<128x128xf32>
    %129 = arith.mulf %128, %125 : vector<128x128xf32>
    %130 = arith.select %127, %125, %129 : vector<128x128xi1>, vector<128x128xf32>
    %cst_64 = arith.constant 5.050000e+01 : f32
    %131 = vector.broadcast %cst_64 : f32 to vector<128x128xf32>
    %132 = arith.subf %130, %131 : vector<128x128xf32>
    %cst_65 = arith.constant 0.000000e+00 : f32
    %133 = vector.broadcast %cst_65 : f32 to vector<128x128xf32>
    %134 = arith.maximumf %132, %133 : vector<128x128xf32>
    %cst_66 = arith.constant -7.050000e+01 : f32
    %135 = vector.broadcast %cst_66 : f32 to vector<128x128xf32>
    %136 = arith.subf %135, %130 : vector<128x128xf32>
    %cst_67 = arith.constant 0.000000e+00 : f32
    %137 = vector.broadcast %cst_67 : f32 to vector<128x128xf32>
    %138 = arith.maximumf %136, %137 : vector<128x128xf32>
    %139 = arith.addf %134, %138 : vector<128x128xf32>
    %cst_68 = arith.constant 6.250000e-04 : f32
    %140 = vector.broadcast %cst_68 : f32 to vector<128x128xf32>
    %141 = arith.mulf %139, %140 : vector<128x128xf32>
    %142 = arith.addf %121, %141 : vector<128x128xf32>
    %c4 = arith.constant 4 : index
    %c0_69 = arith.constant 0 : index
    %c0_70 = arith.constant 0 : index
    %143 = vector.load %arg8[%c4, %c0_69, %c0_70] : memref<7x128x128xbf16, #tpu.memory_space<vmem>>, vector<1x128x128xbf16>
    %144 = vector.shape_cast %143 : vector<1x128x128xbf16> to vector<128x128xbf16>
    %145 = arith.truncf %130 : vector<128x128xf32> to vector<128x128xbf16>
    %cst_71 = arith.constant dense<0.000000e+00> : vector<128x128xf32>
    %146 = tpu.matmul %145, %144, %cst_71 {dimension_numbers = #tpu.dot_dimension_numbers<[1], [0], [0], [1], [0, 0, 1, 1], [], []>} : vector<128x128xbf16>, vector<128x128xbf16>, vector<128x128xf32> -> vector<128x128xf32>
    %cst_72 = arith.constant 0.000000e+00 : f32
    %147 = vector.broadcast %cst_72 : f32 to vector<128x128xf32>
    %148 = arith.cmpf oge, %146, %147 : vector<128x128xf32>
    %cst_73 = arith.constant 0.00999999977 : f32
    %149 = vector.broadcast %cst_73 : f32 to vector<128x128xf32>
    %150 = arith.mulf %149, %146 : vector<128x128xf32>
    %151 = arith.select %148, %146, %150 : vector<128x128xi1>, vector<128x128xf32>
    %cst_74 = arith.constant 5.050000e+01 : f32
    %152 = vector.broadcast %cst_74 : f32 to vector<128x128xf32>
    %153 = arith.subf %151, %152 : vector<128x128xf32>
    %cst_75 = arith.constant 0.000000e+00 : f32
    %154 = vector.broadcast %cst_75 : f32 to vector<128x128xf32>
    %155 = arith.maximumf %153, %154 : vector<128x128xf32>
    %cst_76 = arith.constant -7.050000e+01 : f32
    %156 = vector.broadcast %cst_76 : f32 to vector<128x128xf32>
    %157 = arith.subf %156, %151 : vector<128x128xf32>
    %cst_77 = arith.constant 0.000000e+00 : f32
    %158 = vector.broadcast %cst_77 : f32 to vector<128x128xf32>
    %159 = arith.maximumf %157, %158 : vector<128x128xf32>
    %160 = arith.addf %155, %159 : vector<128x128xf32>
    %cst_78 = arith.constant 1.250000e-03 : f32
    %161 = vector.broadcast %cst_78 : f32 to vector<128x128xf32>
    %162 = arith.mulf %160, %161 : vector<128x128xf32>
    %163 = arith.addf %142, %162 : vector<128x128xf32>
    %c5 = arith.constant 5 : index
    %c0_79 = arith.constant 0 : index
    %c0_80 = arith.constant 0 : index
    %164 = vector.load %arg8[%c5, %c0_79, %c0_80] : memref<7x128x128xbf16, #tpu.memory_space<vmem>>, vector<1x128x128xbf16>
    %165 = vector.shape_cast %164 : vector<1x128x128xbf16> to vector<128x128xbf16>
    %166 = arith.truncf %151 : vector<128x128xf32> to vector<128x128xbf16>
    %cst_81 = arith.constant dense<0.000000e+00> : vector<128x128xf32>
    %167 = tpu.matmul %166, %165, %cst_81 {dimension_numbers = #tpu.dot_dimension_numbers<[1], [0], [0], [1], [0, 0, 1, 1], [], []>} : vector<128x128xbf16>, vector<128x128xbf16>, vector<128x128xf32> -> vector<128x128xf32>
    %cst_82 = arith.constant 0.000000e+00 : f32
    %168 = vector.broadcast %cst_82 : f32 to vector<128x128xf32>
    %169 = arith.cmpf oge, %167, %168 : vector<128x128xf32>
    %cst_83 = arith.constant 0.00999999977 : f32
    %170 = vector.broadcast %cst_83 : f32 to vector<128x128xf32>
    %171 = arith.mulf %170, %167 : vector<128x128xf32>
    %172 = arith.select %169, %167, %171 : vector<128x128xi1>, vector<128x128xf32>
    %cst_84 = arith.constant 5.050000e+01 : f32
    %173 = vector.broadcast %cst_84 : f32 to vector<128x128xf32>
    %174 = arith.subf %172, %173 : vector<128x128xf32>
    %cst_85 = arith.constant 0.000000e+00 : f32
    %175 = vector.broadcast %cst_85 : f32 to vector<128x128xf32>
    %176 = arith.maximumf %174, %175 : vector<128x128xf32>
    %cst_86 = arith.constant -7.050000e+01 : f32
    %177 = vector.broadcast %cst_86 : f32 to vector<128x128xf32>
    %178 = arith.subf %177, %172 : vector<128x128xf32>
    %cst_87 = arith.constant 0.000000e+00 : f32
    %179 = vector.broadcast %cst_87 : f32 to vector<128x128xf32>
    %180 = arith.maximumf %178, %179 : vector<128x128xf32>
    %181 = arith.addf %176, %180 : vector<128x128xf32>
    %cst_88 = arith.constant 2.500000e-03 : f32
    %182 = vector.broadcast %cst_88 : f32 to vector<128x128xf32>
    %183 = arith.mulf %181, %182 : vector<128x128xf32>
    %184 = arith.addf %163, %183 : vector<128x128xf32>
    %c6 = arith.constant 6 : index
    %c0_89 = arith.constant 0 : index
    %c0_90 = arith.constant 0 : index
    %185 = vector.load %arg8[%c6, %c0_89, %c0_90] : memref<7x128x128xbf16, #tpu.memory_space<vmem>>, vector<1x128x128xbf16>
    %186 = vector.shape_cast %185 : vector<1x128x128xbf16> to vector<128x128xbf16>
    %187 = arith.truncf %172 : vector<128x128xf32> to vector<128x128xbf16>
    %cst_91 = arith.constant dense<0.000000e+00> : vector<128x128xf32>
    %188 = tpu.matmul %187, %186, %cst_91 {dimension_numbers = #tpu.dot_dimension_numbers<[1], [0], [0], [1], [0, 0, 1, 1], [], []>} : vector<128x128xbf16>, vector<128x128xbf16>, vector<128x128xf32> -> vector<128x128xf32>
    %cst_92 = arith.constant 0.000000e+00 : f32
    %189 = vector.broadcast %cst_92 : f32 to vector<128x128xf32>
    %190 = arith.cmpf oge, %188, %189 : vector<128x128xf32>
    %cst_93 = arith.constant 0.00999999977 : f32
    %191 = vector.broadcast %cst_93 : f32 to vector<128x128xf32>
    %192 = arith.mulf %191, %188 : vector<128x128xf32>
    %193 = arith.select %190, %188, %192 : vector<128x128xi1>, vector<128x128xf32>
    %cst_94 = arith.constant 5.050000e+01 : f32
    %194 = vector.broadcast %cst_94 : f32 to vector<128x128xf32>
    %195 = arith.subf %193, %194 : vector<128x128xf32>
    %cst_95 = arith.constant 0.000000e+00 : f32
    %196 = vector.broadcast %cst_95 : f32 to vector<128x128xf32>
    %197 = arith.maximumf %195, %196 : vector<128x128xf32>
    %cst_96 = arith.constant -7.050000e+01 : f32
    %198 = vector.broadcast %cst_96 : f32 to vector<128x128xf32>
    %199 = arith.subf %198, %193 : vector<128x128xf32>
    %cst_97 = arith.constant 0.000000e+00 : f32
    %200 = vector.broadcast %cst_97 : f32 to vector<128x128xf32>
    %201 = arith.maximumf %199, %200 : vector<128x128xf32>
    %202 = arith.addf %197, %201 : vector<128x128xf32>
    %cst_98 = arith.constant 5.000000e-03 : f32
    %203 = vector.broadcast %cst_98 : f32 to vector<128x128xf32>
    %204 = arith.mulf %202, %203 : vector<128x128xf32>
    %205 = arith.addf %184, %204 : vector<128x128xf32>
    %206 = vector.extract_strided_slice %193 {offsets = [0, 0], sizes = [128, 1], strides = [1, 1]} : vector<128x128xf32> to vector<128x1xf32>
    %c0_99 = arith.constant 0 : index
    %c0_100 = arith.constant 0 : index
    %207 = vector.load %arg9[%c0_99, %c0_100] : memref<1x1xf32, #tpu.memory_space<vmem>>, vector<1x1xf32>
    %208 = vector.broadcast %207 : vector<1x1xf32> to vector<128x1xf32>
    %209 = arith.mulf %206, %208 : vector<128x1xf32>
    %c0_101 = arith.constant 0 : index
    %c0_102 = arith.constant 0 : index
    %210 = vector.load %arg10[%c0_101, %c0_102] : memref<1x1xf32, #tpu.memory_space<vmem>>, vector<1x1xf32>
    %211 = vector.broadcast %210 : vector<1x1xf32> to vector<128x1xf32>
    %212 = arith.addf %209, %211 : vector<128x1xf32>
    %c0_103 = arith.constant 0 : index
    %c0_104 = arith.constant 0 : index
    %213 = vector.load %arg11[%c0_103, %c0_104] : memref<128x1xf32, #tpu.memory_space<vmem>>, vector<128x1xf32>
    tpu.vector_store %arg11[%c0_103, %c0_104], %212 {strides = array<i32>} : memref<128x1xf32, #tpu.memory_space<vmem>>, vector<128x1xf32>,
    %cst_105 = arith.constant dense<0.000000e+00> : vector<128xf32>
    %214 = vector.multi_reduction <add>, %205, %cst_105 [1] : vector<128x128xf32> to vector<128xf32>
    %215 = vector.shape_cast %214 : vector<128xf32> to vector<128x1xf32>
    %c0_106 = arith.constant 0 : index
    %c0_107 = arith.constant 0 : index
    %216 = vector.load %arg12[%c0_106, %c0_107] : memref<128x1xf32, #tpu.memory_space<vmem>>, vector<128x1xf32>
    tpu.vector_store %arg12[%c0_106, %c0_107], %215 {strides = array<i32>} : memref<128x1xf32, #tpu.memory_space<vmem>>, vector<128x1xf32>,
    return
  }
  func.func @transform_0(%arg0: i32) -> (i32, i32) {
    %c0_i32 = arith.constant 0 : i32
    %c0_i32_0 = arith.constant 0 : i32
    return %arg0, %c0_i32 : i32, i32
  }
  func.func @transform_1(%arg0: i32) -> (i32, i32) {
    %c0_i32 = arith.constant 0 : i32
    %c0_i32_0 = arith.constant 0 : i32
    %c0_i32_1 = arith.constant 0 : i32
    return %c0_i32, %c0_i32_0 : i32, i32
  }
  func.func @transform_2(%arg0: i32) -> (i32, i32) {
    %c0_i32 = arith.constant 0 : i32
    %c0_i32_0 = arith.constant 0 : i32
    %c0_i32_1 = arith.constant 0 : i32
    return %c0_i32, %c0_i32_0 : i32, i32
  }
  func.func @transform_3(%arg0: i32) -> (i32, i32) {
    %c0_i32 = arith.constant 0 : i32
    %c0_i32_0 = arith.constant 0 : i32
    %c0_i32_1 = arith.constant 0 : i32
    return %c0_i32, %c0_i32_0 : i32, i32
  }
  func.func @transform_4(%arg0: i32) -> (i32, i32) {
    %c0_i32 = arith.constant 0 : i32
    %c0_i32_0 = arith.constant 0 : i32
    %c0_i32_1 = arith.constant 0 : i32
    return %c0_i32, %c0_i32_0 : i32, i32
  }
  func.func @transform_5(%arg0: i32) -> (i32, i32) {
    %c0_i32 = arith.constant 0 : i32
    %c0_i32_0 = arith.constant 0 : i32
    %c0_i32_1 = arith.constant 0 : i32
    return %c0_i32, %c0_i32_0 : i32, i32
  }
  func.func @transform_6(%arg0: i32) -> (i32, i32) {
    %c0_i32 = arith.constant 0 : i32
    %c0_i32_0 = arith.constant 0 : i32
    %c0_i32_1 = arith.constant 0 : i32
    return %c0_i32, %c0_i32_0 : i32, i32
  }
  func.func @transform_7(%arg0: i32) -> (i32, i32, i32) {
    %c0_i32 = arith.constant 0 : i32
    %c0_i32_0 = arith.constant 0 : i32
    %c0_i32_1 = arith.constant 0 : i32
    %c0_i32_2 = arith.constant 0 : i32
    return %c0_i32, %c0_i32_0, %c0_i32_1 : i32, i32, i32
  }
  func.func @transform_8(%arg0: i32) -> (i32, i32) {
    %c0_i32 = arith.constant 0 : i32
    %c0_i32_0 = arith.constant 0 : i32
    %c0_i32_1 = arith.constant 0 : i32
    return %c0_i32, %c0_i32_0 : i32, i32
  }
  func.func @transform_9(%arg0: i32) -> (i32, i32) {
    %c0_i32 = arith.constant 0 : i32
    %c0_i32_0 = arith.constant 0 : i32
    %c0_i32_1 = arith.constant 0 : i32
    return %c0_i32, %c0_i32_0 : i32, i32
  }
  func.func @transform_10(%arg0: i32) -> (i32, i32) {
    %c0_i32 = arith.constant 0 : i32
    %c0_i32_0 = arith.constant 0 : i32
    return %arg0, %c0_i32 : i32, i32
  }
  func.func @transform_11(%arg0: i32) -> (i32, i32) {
    %c0_i32 = arith.constant 0 : i32
    %c0_i32_0 = arith.constant 0 : i32
    return %arg0, %c0_i32 : i32, i32
  }
}

</mosaic_0001>

<llo_original>
// kernel: tpu_custom_call.1
$region0: #{tpu_custom_call.1}
  #allocation0 [shape = 'u32[]', space=smem, size = 0x4, offset = 0x4, fixed_abs, tag = 'smem constant byte address 0x4 - core index']
  #allocation1 [shape = 'u32[72,128]{1,0:T(1,128)}', space=vmem, size = 0x9000, scoped, tag = 'internal scratch']
  #allocation2 [shape = 'f32[1,1]{1,0:T(1,128)S(1)}', space=vmem, size = 0x200, scoped, tag = 'scoped memory for tpu_custom_call.1']
  #allocation3 [shape = 'f32[1,1]{1,0:T(1,128)S(1)}', space=vmem, size = 0x200, scoped, tag = 'scoped memory for tpu_custom_call.1']
  %s0 = inlined_call_operand.hbm [shape: f32[256,256], index: 0, kind: input, shape index: {}]
  %s1 = inlined_call_operand.vmem [shape: f32[1,256], index: 1, kind: input, shape index: {}]
  %s2 = inlined_call_operand.vmem [shape: f32[1,256], index: 2, kind: input, shape index: {}]
  %s3 = inlined_call_operand.vmem [shape: f32[1,256], index: 3, kind: input, shape index: {}]
  %s4 = inlined_call_operand.hbm [shape: f32[1,256], index: 4, kind: input, shape index: {}]
  %s5 = inlined_call_operand.vmem [shape: f32[1,256], index: 5, kind: input, shape index: {}]
  %s6 = inlined_call_operand.hbm [shape: bf16[256,128], index: 6, kind: input, shape index: {}]
  %s7 = inlined_call_operand.hbm [shape: bf16[7,128,128], index: 7, kind: input, shape index: {}]
  %s8 = inlined_call_operand.<no memory space> [shape: f32[1,1], index: 8, kind: input, shape index: {}]
  %s9 = inlined_call_operand.<no memory space> [shape: f32[1,1], index: 9, kind: input, shape index: {}]
  %s10 = inlined_call_operand.vmem [shape: f32[256,1], index: 10, kind: output, shape index: {0}]
  %s11 = inlined_call_operand.vmem [shape: f32[256,1], index: 11, kind: output, shape index: {1}]
  %12 = xla_tuple %s10, %s11
  %s13 = sld [smem:[#allocation0]]
  $region97: #{tpu_custom_call.1} parent=0
    _
  %s15 = ssub.s32 1, %s13
  %s16 = scalar_select 0, %s15, %s13
  %v17 = vstv %s8
  %18 = vst [vmem:[#allocation2] sm:$0x1] %v17
  %v19 = vstv %s9
  %20 = vst [vmem:[#allocation3] sm:$0x1] %v19
  $region1: #{tpu_custom_call.1} parent=0
    #allocation4 [shape = 'u8[262144]{0}', space=vmem, size = 0x40000, scoped, tag = 'input window, operand 0']
    #allocation5 [shape = 's32[2]{0}', space=sflag, size = 0x8, scoped, tag = 'scoped memory for tpu_custom_call.1']
    #allocation6 [shape = 'u8[1024]{0}', space=vmem, size = 0x400, scoped, tag = 'input window, operand 4, single buffered']
    #allocation7 [shape = 's32[1]{0}', space=sflag, size = 0x4, scoped, tag = 'scoped memory for tpu_custom_call.1']
    #allocation8 [shape = 'u8[65536]{0}', space=vmem, size = 0x10000, scoped, tag = 'input window, operand 6, single buffered']
    #allocation9 [shape = 'u8[229376]{0}', space=vmem, size = 0x38000, scoped, tag = 'input window, operand 7, single buffered']
    #allocation10 [shape = 's32[1]{0}', space=sflag, size = 0x4, scoped, tag = 'scoped memory for tpu_custom_call.1']
    %21 = vsyncpa [#allocation5], 0
    %s22 = scalar_lea.sflag [#allocation5], 1
    %23 = vsyncpa %s22, 0
    %24 = vsyncpa [#allocation7], 0
    %25 = vsyncpa [#allocation10], 0
    loop: start=0, step=1, limit=4
    $region2: #{tpu_custom_call.1} parent=1 // loop_pre_header
      _
    $region3: #{tpu_custom_call.1} parent=1 // loop_header
      %s27 = sphi 0, %s31
      %p28 = scmp.ge.s32.totalorder %s27, 4
      %s37 = sphi 0, %s39
      %s40 = sphi 0, %s37
      %s41 = sphi 0, %s40
      %s57 = sphi 0, %s41
      %s61 = sphi 0, %s61
      %s63 = sphi 0, %s61
      %s64 = sphi 0, %s63
      %s78 = sphi 0, %s64
      %s82 = sphi 0, %s82
      %s84 = sphi 0, %s82
      %s85 = sphi 0, %s84
      %s99 = sphi 0, %s85
      %s103 = sphi 0, %s103
      %s105 = sphi 0, %s103
      %s106 = sphi 0, %s105
      %s120 = sphi 0, %s106
      %s124 = sphi 0, %s124
      %s126 = sphi 0, %s124
      %s127 = sphi 0, %s126
      %s141 = sphi 0, %s127
      %s145 = sphi 0, %s145
      %s147 = sphi 0, %s145
      %s148 = sphi 0, %s147
      %s162 = sphi 0, %s148
      %s166 = sphi 0, %s166
      %s168 = sphi 0, %s166
      %s169 = sphi 0, %s168
      %s183 = sphi 0, %s169
      %s187 = sphi 0, %s187
      %s189 = sphi 0, %s187
      %s190 = sphi 0, %s189
      %s204 = sphi 0, %s190
      %s208 = sphi 0, %s208
      %s210 = sphi 0, %s208
      %s211 = sphi 0, %s210
      %s225 = sphi 0, %s211
      %s229 = sphi 0, %s229
      %s231 = sphi 0, %s229
      %s232 = sphi 0, %s231
      %s246 = sphi 0, %s232
      %s252 = sphi 0, %s254
      %s255 = sphi 0, %s252
      %s256 = sphi 0, %s255
      %s272 = sphi 0, %s256
      %s278 = sphi 0, %s280
      %s281 = sphi 0, %s278
      %s282 = sphi 0, %s281
      %s298 = sphi 0, %s282
    $region4: #{tpu_custom_call.1} parent=1 // loop_header_branch
      %30 = sbr.rel (%p28) target = $region8
    $region5: #{tpu_custom_call.1} parent=1 // loop_body
      %s32 = ssub.s32 %s27, 1
      %s33 = ssub.s32 %s27, 2
      %s34 = sadd.s32 %s27, 1
      %s35 = ssub.s32 %s27, %s34
      %p36 = scmp.eq.s32.totalorder %s35, 0
      %s38 = sadd.s32 %s37, 1
      %s39 = scalar_select %p36, %s37, %s38
      %p42 = pneg %p36
      %p43 = scmp.eq.s32.totalorder %s27, 1
      %p44 = por %p42, %p43
      %p45 = scmp.ne.s32.totalorder %s37, %s40
      %p46 = scmp.eq.s32.totalorder %s27, 0
      %p47 = por %p45, %p46
      %p48 = scmp.ne.s32.totalorder %s37, %s40
      %p49 = scmp.eq.s32.totalorder %s32, 1
      %p50 = por %p48, %p49
      %p51 = scmp.ne.s32.totalorder %s40, %s41
      %p52 = scmp.eq.s32.totalorder %s32, 0
      %p53 = por %p51, %p52
      %p54 = scmp.ne.s32.totalorder %s40, %s41
      %p55 = scmp.eq.s32.totalorder %s33, 1
      %p56 = por %p54, %p55
      %p58 = scmp.ne.s32.totalorder %s41, %s57
      %p59 = scmp.eq.s32.totalorder %s33, 0
      %p60 = por %p58, %p59
      %s62 = sadd.s32 %s61, 1
      %p65 = scmp.eq.s32.totalorder %s27, 1
      %p66 = scmp.ne.s32.totalorder %s61, %s63
      %p67 = scmp.eq.s32.totalorder %s27, 0
      %p68 = por %p66, %p67
      %p69 = scmp.ne.s32.totalorder %s61, %s63
      %p70 = scmp.eq.s32.totalorder %s32, 1
      %p71 = por %p69, %p70
      %p72 = scmp.ne.s32.totalorder %s63, %s64
      %p73 = scmp.eq.s32.totalorder %s32, 0
      %p74 = por %p72, %p73
      %p75 = scmp.ne.s32.totalorder %s63, %s64
      %p76 = scmp.eq.s32.totalorder %s33, 1
      %p77 = por %p75, %p76
      %p79 = scmp.ne.s32.totalorder %s64, %s78
      %p80 = scmp.eq.s32.totalorder %s33, 0
      %p81 = por %p79, %p80
      %s83 = sadd.s32 %s82, 1
      %p86 = scmp.eq.s32.totalorder %s27, 1
      %p87 = scmp.ne.s32.totalorder %s82, %s84
      %p88 = scmp.eq.s32.totalorder %s27, 0
      %p89 = por %p87, %p88
      %p90 = scmp.ne.s32.totalorder %s82, %s84
      %p91 = scmp.eq.s32.totalorder %s32, 1
      %p92 = por %p90, %p91
      %p93 = scmp.ne.s32.totalorder %s84, %s85
      %p94 = scmp.eq.s32.totalorder %s32, 0
      %p95 = por %p93, %p94
      %p96 = scmp.ne.s32.totalorder %s84, %s85
      %p97 = scmp.eq.s32.totalorder %s33, 1
      %p98 = por %p96, %p97
      %p100 = scmp.ne.s32.totalorder %s85, %s99
      %p101 = scmp.eq.s32.totalorder %s33, 0
      %p102 = por %p100, %p101
      %s104 = sadd.s32 %s103, 1
      %p107 = scmp.eq.s32.totalorder %s27, 1
      %p108 = scmp.ne.s32.totalorder %s103, %s105
      %p109 = scmp.eq.s32.totalorder %s27, 0
      %p110 = por %p108, %p109
      %p111 = scmp.ne.s32.totalorder %s103, %s105
      %p112 = scmp.eq.s32.totalorder %s32, 1
      %p113 = por %p111, %p112
      %p114 = scmp.ne.s32.totalorder %s105, %s106
      %p115 = scmp.eq.s32.totalorder %s32, 0
      %p116 = por %p114, %p115
      %p117 = scmp.ne.s32.totalorder %s105, %s106
      %p118 = scmp.eq.s32.totalorder %s33, 1
      %p119 = por %p117, %p118
      %p121 = scmp.ne.s32.totalorder %s106, %s120
      %p122 = scmp.eq.s32.totalorder %s33, 0
      %p123 = por %p121, %p122
      %s125 = sadd.s32 %s124, 1
      %p128 = scmp.eq.s32.totalorder %s27, 1
      %p129 = scmp.ne.s32.totalorder %s124, %s126
      %p130 = scmp.eq.s32.totalorder %s27, 0
      %p131 = por %p129, %p130
      %p132 = scmp.ne.s32.totalorder %s124, %s126
      %p133 = scmp.eq.s32.totalorder %s32, 1
      %p134 = por %p132, %p133
      %p135 = scmp.ne.s32.totalorder %s126, %s127
      %p136 = scmp.eq.s32.totalorder %s32, 0
      %p137 = por %p135, %p136
      %p138 = scmp.ne.s32.totalorder %s126, %s127
      %p139 = scmp.eq.s32.totalorder %s33, 1
      %p140 = por %p138, %p139
      %p142 = scmp.ne.s32.totalorder %s127, %s141
      %p143 = scmp.eq.s32.totalorder %s33, 0
      %p144 = por %p142, %p143
      %s146 = sadd.s32 %s145, 1
      %p149 = scmp.eq.s32.totalorder %s27, 1
      %p150 = scmp.ne.s32.totalorder %s145, %s147
      %p151 = scmp.eq.s32.totalorder %s27, 0
      %p152 = por %p150, %p151
      %p153 = scmp.ne.s32.totalorder %s145, %s147
      %p154 = scmp.eq.s32.totalorder %s32, 1
      %p155 = por %p153, %p154
      %p156 = scmp.ne.s32.totalorder %s147, %s148
      %p157 = scmp.eq.s32.totalorder %s32, 0
      %p158 = por %p156, %p157
      %p159 = scmp.ne.s32.totalorder %s147, %s148
      %p160 = scmp.eq.s32.totalorder %s33, 1
      %p161 = por %p159, %p160
      %p163 = scmp.ne.s32.totalorder %s148, %s162
      %p164 = scmp.eq.s32.totalorder %s33, 0
      %p165 = por %p163, %p164
      %s167 = sadd.s32 %s166, 1
      %p170 = scmp.eq.s32.totalorder %s27, 1
      %p171 = scmp.ne.s32.totalorder %s166, %s168
      %p172 = scmp.eq.s32.totalorder %s27, 0
      %p173 = por %p171, %p172
      %p174 = scmp.ne.s32.totalorder %s166, %s168
      %p175 = scmp.eq.s32.totalorder %s32, 1
      %p176 = por %p174, %p175
      %p177 = scmp.ne.s32.totalorder %s168, %s169
      %p178 = scmp.eq.s32.totalorder %s32, 0
      %p179 = por %p177, %p178
      %p180 = scmp.ne.s32.totalorder %s168, %s169
      %p181 = scmp.eq.s32.totalorder %s33, 1
      %p182 = por %p180, %p181
      %p184 = scmp.ne.s32.totalorder %s169, %s183
      %p185 = scmp.eq.s32.totalorder %s33, 0
      %p186 = por %p184, %p185
      %s188 = sadd.s32 %s187, 1
      %p191 = scmp.eq.s32.totalorder %s27, 1
      %p192 = scmp.ne.s32.totalorder %s187, %s189
      %p193 = scmp.eq.s32.totalorder %s27, 0
      %p194 = por %p192, %p193
      %p195 = scmp.ne.s32.totalorder %s187, %s189
      %p196 = scmp.eq.s32.totalorder %s32, 1
      %p197 = por %p195, %p196
      %p198 = scmp.ne.s32.totalorder %s189, %s190
      %p199 = scmp.eq.s32.totalorder %s32, 0
      %p200 = por %p198, %p199
      %p201 = scmp.ne.s32.totalorder %s189, %s190
      %p202 = scmp.eq.s32.totalorder %s33, 1
      %p203 = por %p201, %p202
      %p205 = scmp.ne.s32.totalorder %s190, %s204
      %p206 = scmp.eq.s32.totalorder %s33, 0
      %p207 = por %p205, %p206
      %s209 = sadd.s32 %s208, 1
      %p212 = scmp.eq.s32.totalorder %s27, 1
      %p213 = scmp.ne.s32.totalorder %s208, %s210
      %p214 = scmp.eq.s32.totalorder %s27, 0
      %p215 = por %p213, %p214
      %p216 = scmp.ne.s32.totalorder %s208, %s210
      %p217 = scmp.eq.s32.totalorder %s32, 1
      %p218 = por %p216, %p217
      %p219 = scmp.ne.s32.totalorder %s210, %s211
      %p220 = scmp.eq.s32.totalorder %s32, 0
      %p221 = por %p219, %p220
      %p222 = scmp.ne.s32.totalorder %s210, %s211
      %p223 = scmp.eq.s32.totalorder %s33, 1
      %p224 = por %p222, %p223
      %p226 = scmp.ne.s32.totalorder %s211, %s225
      %p227 = scmp.eq.s32.totalorder %s33, 0
      %p228 = por %p226, %p227
      %s230 = sadd.s32 %s229, 1
      %p233 = scmp.eq.s32.totalorder %s27, 1
      %p234 = scmp.ne.s32.totalorder %s229, %s231
      %p235 = scmp.eq.s32.totalorder %s27, 0
      %p236 = por %p234, %p235
      %p237 = scmp.ne.s32.totalorder %s229, %s231
      %p238 = scmp.eq.s32.totalorder %s32, 1
      %p239 = por %p237, %p238
      %p240 = scmp.ne.s32.totalorder %s231, %s232
      %p241 = scmp.eq.s32.totalorder %s32, 0
      %p242 = por %p240, %p241
      %p243 = scmp.ne.s32.totalorder %s231, %s232
      %p244 = scmp.eq.s32.totalorder %s33, 1
      %p245 = por %p243, %p244
      %p247 = scmp.ne.s32.totalorder %s232, %s246
      %p248 = scmp.eq.s32.totalorder %s33, 0
      %p249 = por %p247, %p248
      %s250 = ssub.s32 %s27, %s34
      %p251 = scmp.eq.s32.totalorder %s250, 0
      %s253 = sadd.s32 %s252, 1
      %s254 = scalar_select %p251, %s252, %s253
      %p257 = pneg %p251
      %p258 = scmp.eq.s32.totalorder %s27, 1
      %p259 = por %p257, %p258
      %p260 = scmp.ne.s32.totalorder %s252, %s255
      %p261 = scmp.eq.s32.totalorder %s27, 0
      %p262 = por %p260, %p261
      %p263 = scmp.ne.s32.totalorder %s252, %s255
      %p264 = scmp.eq.s32.totalorder %s32, 1
      %p265 = por %p263, %p264
      %p266 = scmp.ne.s32.totalorder %s255, %s256
      %p267 = scmp.eq.s32.totalorder %s32, 0
      %p268 = por %p266, %p267
      %p269 = scmp.ne.s32.totalorder %s255, %s256
      %p270 = scmp.eq.s32.totalorder %s33, 1
      %p271 = por %p269, %p270
      %p273 = scmp.ne.s32.totalorder %s256, %s272
      %p274 = scmp.eq.s32.totalorder %s33, 0
      %p275 = por %p273, %p274
      %s276 = ssub.s32 %s27, %s34
      %p277 = scmp.eq.s32.totalorder %s276, 0
      %s279 = sadd.s32 %s278, 1
      %s280 = scalar_select %p277, %s278, %s279
      %p283 = pneg %p277
      %p284 = scmp.eq.s32.totalorder %s27, 1
      %p285 = por %p283, %p284
      %p286 = scmp.ne.s32.totalorder %s278, %s281
      %p287 = scmp.eq.s32.totalorder %s27, 0
      %p288 = por %p286, %p287
      %p289 = scmp.ne.s32.totalorder %s278, %s281
      %p290 = scmp.eq.s32.totalorder %s32, 1
      %p291 = por %p289, %p290
      %p292 = scmp.ne.s32.totalorder %s281, %s282
      %p293 = scmp.eq.s32.totalorder %s32, 0
      %p294 = por %p292, %p293
      %p295 = scmp.ne.s32.totalorder %s281, %s282
      %p296 = scmp.eq.s32.totalorder %s33, 1
      %p297 = por %p295, %p296
      %p299 = scmp.ne.s32.totalorder %s282, %s298
      %p300 = scmp.eq.s32.totalorder %s33, 0
      %p301 = por %p299, %p300
      %p302 = scmp.le.s32.totalorder 1, %s27
      %p303 = scmp.lt.s32.totalorder %s27, 3
      %p304 = pnand %p302, %p303
      %p305 = pneg %p304
      // Predicated region
      $region9: #{tpu_custom_call.1} parent=5 // pred_check
        _
      $region10: #{tpu_custom_call.1} parent=5 // pred_check_branch
        %307 = sbr.rel (%p304) target = $region12
      $region11: #{tpu_custom_call.1} parent=5 // pred_region
        %s308 = ssub.s32 %s27, 1
        // Predicated region
        $region13: #{tpu_custom_call.1} parent=11 // pred_check
          %p309 = pneg %p74
        $region14: #{tpu_custom_call.1} parent=11 // pred_check_branch
          %311 = sbr.rel (%p309) target = $region16
        $region15: #{tpu_custom_call.1} parent=11 // pred_region
          _
        $region16: #{tpu_custom_call.1} parent=11 // pred_fallthru
          _
        // Predicated region
        $region17: #{tpu_custom_call.1} parent=11 // pred_check
          %p312 = pneg %p95
        $region18: #{tpu_custom_call.1} parent=11 // pred_check_branch
          %314 = sbr.rel (%p312) target = $region20
        $region19: #{tpu_custom_call.1} parent=11 // pred_region
          _
        $region20: #{tpu_custom_call.1} parent=11 // pred_fallthru
          _
        // Predicated region
        $region21: #{tpu_custom_call.1} parent=11 // pred_check
          %p315 = pneg %p116
        $region22: #{tpu_custom_call.1} parent=11 // pred_check_branch
          %317 = sbr.rel (%p315) target = $region24
        $region23: #{tpu_custom_call.1} parent=11 // pred_region
          _
        $region24: #{tpu_custom_call.1} parent=11 // pred_fallthru
          _
        // Predicated region
        $region25: #{tpu_custom_call.1} parent=11 // pred_check
          %p318 = pneg %p137
        $region26: #{tpu_custom_call.1} parent=11 // pred_check_branch
          %320 = sbr.rel (%p318) target = $region28
        $region27: #{tpu_custom_call.1} parent=11 // pred_region
          %322 = vsyncadd [#allocation7], 0
          %s324 = sshll.u32 %s4, 4
          %s325 = int_to_ptr.hbm [resolvable:$true] %s324
          %s326 = sshll.u32 [#allocation6], 4
          %s327 = int_to_ptr.vmem [resolvable:$true] %s326
          %329 = dma.hbm_to_vmem [thread:$0]  %s325, 32, %s327, [#allocation7]
        $region28: #{tpu_custom_call.1} parent=11 // pred_fallthru
          _
        // Predicated region
        $region29: #{tpu_custom_call.1} parent=11 // pred_check
          %p330 = pneg %p158
        $region30: #{tpu_custom_call.1} parent=11 // pred_check_branch
          %332 = sbr.rel (%p330) target = $region32
        $region31: #{tpu_custom_call.1} parent=11 // pred_region
          _
        $region32: #{tpu_custom_call.1} parent=11 // pred_fallthru
          _
        // Predicated region
        $region33: #{tpu_custom_call.1} parent=11 // pred_check
          %p333 = pneg %p179
        $region34: #{tpu_custom_call.1} parent=11 // pred_check_branch
          %335 = sbr.rel (%p333) target = $region36
        $region35: #{tpu_custom_call.1} parent=11 // pred_region
          %337 = vsyncadd [#allocation7], 0
          %s338 = sshll.u32 %s6, 4
          %s339 = int_to_ptr.hbm [resolvable:$true] %s338
          %s340 = sshll.u32 [#allocation8], 4
          %s341 = int_to_ptr.vmem [resolvable:$true] %s340
          %346 = dma.hbm_to_vmem [thread:$0]  %s339, 2048, %s341, [#allocation7], 64, 64, 4
        $region36: #{tpu_custom_call.1} parent=11 // pred_fallthru
          _
        // Predicated region
        $region37: #{tpu_custom_call.1} parent=11 // pred_check
          %p347 = pneg %p200
        $region38: #{tpu_custom_call.1} parent=11 // pred_check_branch
          %349 = sbr.rel (%p347) target = $region40
        $region39: #{tpu_custom_call.1} parent=11 // pred_region
          %351 = vsyncadd [#allocation10], 0
          %s352 = sshll.u32 %s7, 4
          %s353 = int_to_ptr.hbm [resolvable:$true] %s352
          %s354 = sshll.u32 [#allocation9], 4
          %s355 = int_to_ptr.vmem [resolvable:$true] %s354
          %360 = dma.hbm_to_vmem [thread:$0]  %s353, 7168, %s355, [#allocation10], 64, 64, 4
        $region40: #{tpu_custom_call.1} parent=11 // pred_fallthru
          _
        // Predicated region
        $region41: #{tpu_custom_call.1} parent=11 // pred_check
          %p361 = pneg %p221
        $region42: #{tpu_custom_call.1} parent=11 // pred_check_branch
          %363 = sbr.rel (%p361) target = $region44
        $region43: #{tpu_custom_call.1} parent=11 // pred_region
          _
        $region44: #{tpu_custom_call.1} parent=11 // pred_fallthru
          _
        // Predicated region
        $region45: #{tpu_custom_call.1} parent=11 // pred_check
          %p364 = pneg %p242
        $region46: #{tpu_custom_call.1} parent=11 // pred_check_branch
          %366 = sbr.rel (%p364) target = $region48
        $region47: #{tpu_custom_call.1} parent=11 // pred_region
          _
        $region48: #{tpu_custom_call.1} parent=11 // pred_fallthru
          _
      $region12: #{tpu_custom_call.1} parent=5 // pred_fallthru
        _
      %p367 = scmp.lt.s32.totalorder %s27, 2
      // Predicated region
      $region49: #{tpu_custom_call.1} parent=5 // pred_check
        %p368 = pneg %p367
      $region50: #{tpu_custom_call.1} parent=5 // pred_check_branch
        %370 = sbr.rel (%p368) target = $region52
      $region51: #{tpu_custom_call.1} parent=5 // pred_region
        // Predicated region
        $region53: #{tpu_custom_call.1} parent=51 // pred_check
          %p371 = pneg %p47
        $region54: #{tpu_custom_call.1} parent=51 // pred_check_branch
          %373 = sbr.rel (%p371) target = $region56
        $region55: #{tpu_custom_call.1} parent=51 // pred_region
          %s374 = sand.u32 %s37, 1
          %s375 = scalar_lea.sflag [#allocation5], %s374
          %s376 = sand.u32 %s37, 1
          %s377 = smul.addr %s376, 256
          %s378 = scalar_lea.vmem [#allocation4], %s377
          %s379 = smul.u32 16, %s27
          %381 = vsyncadd %s375, 0
          %s382 = smul.addr %s379, 2
          %s383 = smul.addr %s382, 8
          %s384 = scalar_lea.hbm %s0, %s383
          %s385 = sshll.u32 %s384, 4
          %s386 = int_to_ptr.hbm [resolvable:$true] %s385
          %s387 = sshll.u32 %s378, 4
          %s388 = int_to_ptr.vmem [resolvable:$true] %s387
          %393 = dma.hbm_to_vmem [thread:$0]  %s386, 4096, %s388, %s375, 256, 256, 16
        $region56: #{tpu_custom_call.1} parent=51 // pred_fallthru
          _
      $region52: #{tpu_custom_call.1} parent=5 // pred_fallthru
        _
      %p394 = scmp.le.s32.totalorder 1, %s27
      %p395 = scmp.lt.s32.totalorder %s27, 3
      %p396 = pnand %p394, %p395
      %p397 = pneg %p396
      // Predicated region
      $region57: #{tpu_custom_call.1} parent=5 // pred_check
        _
      $region58: #{tpu_custom_call.1} parent=5 // pred_check_branch
        %399 = sbr.rel (%p396) target = $region60
      $region59: #{tpu_custom_call.1} parent=5 // pred_region
        %s400 = ssub.s32 %s27, 1
        %s401 = sand.u32 %s40, 1
        %s402 = scalar_lea.sflag [#allocation5], %s401
        %s403 = sand.u32 %s40, 1
        %s404 = smul.addr %s403, 256
        %s405 = scalar_lea.vmem [#allocation4], %s404
        // Predicated region
        $region61: #{tpu_custom_call.1} parent=59 // pred_check
          %p406 = pneg %p53
        $region62: #{tpu_custom_call.1} parent=59 // pred_check_branch
          %408 = sbr.rel (%p406) target = $region64
        $region63: #{tpu_custom_call.1} parent=59 // pred_region
          %410 = dma.done %s402, 4096
        $region64: #{tpu_custom_call.1} parent=59 // pred_fallthru
          _
        // Predicated region
        $region65: #{tpu_custom_call.1} parent=59 // pred_check
          %p411 = pneg %p137
        $region66: #{tpu_custom_call.1} parent=59 // pred_check_branch
          %413 = sbr.rel (%p411) target = $region68
        $region67: #{tpu_custom_call.1} parent=59 // pred_region
          %415 = dma.done [#allocation7], 32
        $region68: #{tpu_custom_call.1} parent=59 // pred_fallthru
          _
        // Predicated region
        $region69: #{tpu_custom_call.1} parent=59 // pred_check
          %p416 = pneg %p179
        $region70: #{tpu_custom_call.1} parent=59 // pred_check_branch
          %418 = sbr.rel (%p416) target = $region72
        $region71: #{tpu_custom_call.1} parent=59 // pred_region
          %420 = dma.done [#allocation7], 2048
        $region72: #{tpu_custom_call.1} parent=59 // pred_fallthru
          _
        // Predicated region
        $region73: #{tpu_custom_call.1} parent=59 // pred_check
          %p421 = pneg %p200
        $region74: #{tpu_custom_call.1} parent=59 // pred_check_branch
          %423 = sbr.rel (%p421) target = $region76
        $region75: #{tpu_custom_call.1} parent=59 // pred_region
          %425 = dma.done [#allocation10], 7168
        $region76: #{tpu_custom_call.1} parent=59 // pred_fallthru
          _
        %s426 = sand.u32 %s40, 1
        %s427 = scalar_lea.sflag [#allocation5], %s426
        %s428 = sand.u32 %s40, 1
        %s429 = smul.addr %s428, 256
        %s430 = scalar_lea.vmem [#allocation4], %s429
        %p431 = pneg %p53
        %p432 = pneg %p50
        %p433 = pneg %p74
        %p434 = pneg %p71
        %p435 = pneg %p95
        %p436 = pneg %p92
        %p437 = pneg %p116
        %p438 = pneg %p113
        %p439 = pneg %p137
        %p440 = pneg %p134
        %p441 = pneg %p158
        %p442 = pneg %p155
        %p443 = pneg %p179
        %p444 = pneg %p176
        %p445 = pneg %p200
        %p446 = pneg %p197
        %p447 = pneg %p221
        %p448 = pneg %p218
        %p449 = pneg %p242
        %p450 = pneg %p239
        %p451 = pneg %p268
        %p452 = pneg %p265
        %s453 = smul.u32 16, %s32
        %p454 = scmp.lt.s32.totalorder %s453, 31
        %s455 = scalar_select %p454, %s453, 31
        %s456 = smul.addr %s455, 8
        %s457 = scalar_lea.vmem %s10, %s456
        %p458 = pneg %p294
        %p459 = pneg %p291
        %s460 = smul.u32 16, %s32
        %p461 = scmp.lt.s32.totalorder %s460, 31
        %s462 = scalar_select %p461, %s460, 31
        %s463 = smul.addr %s462, 8
        %s464 = scalar_lea.vmem %s11, %s463
        %s465 = smul.u32 16, %s32
        %s466 = smul.u32 16, %s32
        %p467 = scmp.lt.s32.totalorder %s466, 31
        %s468 = scalar_select %p467, %s466, 31
        %s469 = smul.addr %s468, 8
        %s470 = scalar_lea.vmem %s10, %s469
        %s471 = smul.u32 16, %s32
        %s472 = smul.u32 16, %s32
        %p473 = scmp.lt.s32.totalorder %s472, 31
        %s474 = scalar_select %p473, %s472, 31
        %s475 = smul.addr %s474, 8
        %s476 = scalar_lea.vmem %s11, %s475
        %s477 = smul.u32 16, %s32
        %v478 = vld [vmem:[%s405] sm:$0xff]
        %v479 = vld [vmem:[%s405 + $0x8] sm:$0xff]
        %v480 = vld [vmem:[%s405 + $0x10] sm:$0xff]
        %v481 = vld [vmem:[%s405 + $0x18] sm:$0xff]
        %v482 = vld [vmem:[%s405 + $0x20] sm:$0xff]
        %v483 = vld [vmem:[%s405 + $0x28] sm:$0xff]
        %v484 = vld [vmem:[%s405 + $0x30] sm:$0xff]
        %v485 = vld [vmem:[%s405 + $0x38] sm:$0xff]
        %v486 = vld [vmem:[%s405 + $0x40] sm:$0xff]
        %v487 = vld [vmem:[%s405 + $0x48] sm:$0xff]
        %v488 = vld [vmem:[%s405 + $0x50] sm:$0xff]
        %v489 = vld [vmem:[%s405 + $0x58] sm:$0xff]
        %v490 = vld [vmem:[%s405 + $0x60] sm:$0xff]
        %v491 = vld [vmem:[%s405 + $0x68] sm:$0xff]
        %v492 = vld [vmem:[%s405 + $0x70] sm:$0xff]
        %v493 = vld [vmem:[%s405 + $0x78] sm:$0xff]
        %v494 = vld [vmem:[%s405 + $0x80] sm:$0xff]
        %v495 = vld [vmem:[%s405 + $0x88] sm:$0xff]
        %v496 = vld [vmem:[%s405 + $0x90] sm:$0xff]
        %v497 = vld [vmem:[%s405 + $0x98] sm:$0xff]
        %v498 = vld [vmem:[%s405 + $0xa0] sm:$0xff]
        %v499 = vld [vmem:[%s405 + $0xa8] sm:$0xff]
        %v500 = vld [vmem:[%s405 + $0xb0] sm:$0xff]
        %v501 = vld [vmem:[%s405 + $0xb8] sm:$0xff]
        %v502 = vld [vmem:[%s405 + $0xc0] sm:$0xff]
        %v503 = vld [vmem:[%s405 + $0xc8] sm:$0xff]
        %v504 = vld [vmem:[%s405 + $0xd0] sm:$0xff]
        %v505 = vld [vmem:[%s405 + $0xd8] sm:$0xff]
        %v506 = vld [vmem:[%s405 + $0xe0] sm:$0xff]
        %v507 = vld [vmem:[%s405 + $0xe8] sm:$0xff]
        %v508 = vld [vmem:[%s405 + $0xf0] sm:$0xff]
        %v509 = vld [vmem:[%s405 + $0xf8] sm:$0xff]
        %v510 = vld [vmem:[%s1] sm:$0x3]
        %v512 = vperm.slane %v510, 0
        %v513 = vperm.slane %v510, 1
        %v516 = vmul.f32 %v512, %v478
        %v517 = vmul.f32 %v513, %v479
        %v518 = vmul.f32 %v512, %v480
        %v519 = vmul.f32 %v513, %v481
        %v520 = vmul.f32 %v512, %v482
        %v521 = vmul.f32 %v513, %v483
        %v522 = vmul.f32 %v512, %v484
        %v523 = vmul.f32 %v513, %v485
        %v524 = vmul.f32 %v512, %v486
        %v525 = vmul.f32 %v513, %v487
        %v526 = vmul.f32 %v512, %v488
        %v527 = vmul.f32 %v513, %v489
        %v528 = vmul.f32 %v512, %v490
        %v529 = vmul.f32 %v513, %v491
        %v530 = vmul.f32 %v512, %v492
        %v531 = vmul.f32 %v513, %v493
        %v532 = vmul.f32 %v512, %v494
        %v533 = vmul.f32 %v513, %v495
        %v534 = vmul.f32 %v512, %v496
        %v535 = vmul.f32 %v513, %v497
        %v536 = vmul.f32 %v512, %v498
        %v537 = vmul.f32 %v513, %v499
        %v538 = vmul.f32 %v512, %v500
        %v539 = vmul.f32 %v513, %v501
        %v540 = vmul.f32 %v512, %v502
        %v541 = vmul.f32 %v513, %v503
        %v542 = vmul.f32 %v512, %v504
        %v543 = vmul.f32 %v513, %v505
        %v544 = vmul.f32 %v512, %v506
        %v545 = vmul.f32 %v513, %v507
        %v546 = vmul.f32 %v512, %v508
        %v547 = vmul.f32 %v513, %v509
        %v548 = vld [vmem:[%s2] sm:$0x3]
        %v550 = vperm.slane %v548, 0
        %v551 = vperm.slane %v548, 1
        %v554 = vadd.f32 %v516, %v550
        %v555 = vadd.f32 %v517, %v551
        %v556 = vadd.f32 %v518, %v550
        %v557 = vadd.f32 %v519, %v551
        %v558 = vadd.f32 %v520, %v550
        %v559 = vadd.f32 %v521, %v551
        %v560 = vadd.f32 %v522, %v550
        %v561 = vadd.f32 %v523, %v551
        %v562 = vadd.f32 %v524, %v550
        %v563 = vadd.f32 %v525, %v551
        %v564 = vadd.f32 %v526, %v550
        %v565 = vadd.f32 %v527, %v551
        %v566 = vadd.f32 %v528, %v550
        %v567 = vadd.f32 %v529, %v551
        %v568 = vadd.f32 %v530, %v550
        %v569 = vadd.f32 %v531, %v551
        %v570 = vadd.f32 %v532, %v550
        %v571 = vadd.f32 %v533, %v551
        %v572 = vadd.f32 %v534, %v550
        %v573 = vadd.f32 %v535, %v551
        %v574 = vadd.f32 %v536, %v550
        %v575 = vadd.f32 %v537, %v551
        %v576 = vadd.f32 %v538, %v550
        %v577 = vadd.f32 %v539, %v551
        %v578 = vadd.f32 %v540, %v550
        %v579 = vadd.f32 %v541, %v551
        %v580 = vadd.f32 %v542, %v550
        %v581 = vadd.f32 %v543, %v551
        %v582 = vadd.f32 %v544, %v550
        %v583 = vadd.f32 %v545, %v551
        %v584 = vadd.f32 %v546, %v550
        %v585 = vadd.f32 %v547, %v551
        %v586 = vmax.f32 %v554, -60.0
        %v587 = vmax.f32 %v555, -60.0
        %v588 = vmax.f32 %v556, -60.0
        %v589 = vmax.f32 %v557, -60.0
        %v590 = vmax.f32 %v558, -60.0
        %v591 = vmax.f32 %v559, -60.0
        %v592 = vmax.f32 %v560, -60.0
        %v593 = vmax.f32 %v561, -60.0
        %v594 = vmax.f32 %v562, -60.0
        %v595 = vmax.f32 %v563, -60.0
        %v596 = vmax.f32 %v564, -60.0
        %v597 = vmax.f32 %v565, -60.0
        %v598 = vmax.f32 %v566, -60.0
        %v599 = vmax.f32 %v567, -60.0
        %v600 = vmax.f32 %v568, -60.0
        %v601 = vmax.f32 %v569, -60.0
        %v602 = vmax.f32 %v570, -60.0
        %v603 = vmax.f32 %v571, -60.0
        %v604 = vmax.f32 %v572, -60.0
        %v605 = vmax.f32 %v573, -60.0
        %v606 = vmax.f32 %v574, -60.0
        %v607 = vmax.f32 %v575, -60.0
        %v608 = vmax.f32 %v576, -60.0
        %v609 = vmax.f32 %v577, -60.0
        %v610 = vmax.f32 %v578, -60.0
        %v611 = vmax.f32 %v579, -60.0
        %v612 = vmax.f32 %v580, -60.0
        %v613 = vmax.f32 %v581, -60.0
        %v614 = vmax.f32 %v582, -60.0
        %v615 = vmax.f32 %v583, -60.0
        %v616 = vmax.f32 %v584, -60.0
        %v617 = vmax.f32 %v585, -60.0
        %v618 = vmin.f32 %v586, 60.0
        %v619 = vmin.f32 %v587, 60.0
        %v620 = vmin.f32 %v588, 60.0
        %v621 = vmin.f32 %v589, 60.0
        %v622 = vmin.f32 %v590, 60.0
        %v623 = vmin.f32 %v591, 60.0
        %v624 = vmin.f32 %v592, 60.0
        %v625 = vmin.f32 %v593, 60.0
        %v626 = vmin.f32 %v594, 60.0
        %v627 = vmin.f32 %v595, 60.0
        %v628 = vmin.f32 %v596, 60.0
        %v629 = vmin.f32 %v597, 60.0
        %v630 = vmin.f32 %v598, 60.0
        %v631 = vmin.f32 %v599, 60.0
        %v632 = vmin.f32 %v600, 60.0
        %v633 = vmin.f32 %v601, 60.0
        %v634 = vmin.f32 %v602, 60.0
        %v635 = vmin.f32 %v603, 60.0
        %v636 = vmin.f32 %v604, 60.0
        %v637 = vmin.f32 %v605, 60.0
        %v638 = vmin.f32 %v606, 60.0
        %v639 = vmin.f32 %v607, 60.0
        %v640 = vmin.f32 %v608, 60.0
        %v641 = vmin.f32 %v609, 60.0
        %v642 = vmin.f32 %v610, 60.0
        %v643 = vmin.f32 %v611, 60.0
        %v644 = vmin.f32 %v612, 60.0
        %v645 = vmin.f32 %v613, 60.0
        %v646 = vmin.f32 %v614, 60.0
        %v647 = vmin.f32 %v615, 60.0
        %v648 = vmin.f32 %v616, 60.0
        %v649 = vmin.f32 %v617, 60.0
        %v650 = vmul.f32 %v618, 1.442695
        %v651 = vpow.pop %v650
        %v652 = vmul.f32 %v619, 1.442695
        %v653 = vpow.pop %v652
        %v654 = vmul.f32 %v620, 1.442695
        %v655 = vpow.pop %v654
        %v656 = vmul.f32 %v621, 1.442695
        %v657 = vpow.pop %v656
        %v658 = vmul.f32 %v622, 1.442695
        %v659 = vpow.pop %v658
        %v660 = vmul.f32 %v623, 1.442695
        %v661 = vpow.pop %v660
        %v662 = vmul.f32 %v624, 1.442695
        %v663 = vpow.pop %v662
        %v664 = vmul.f32 %v625, 1.442695
        %v665 = vpow.pop %v664
        %v666 = vmul.f32 %v626, 1.442695
        %v667 = vpow.pop %v666
        %v668 = vmul.f32 %v627, 1.442695
        %v669 = vpow.pop %v668
        %v670 = vmul.f32 %v628, 1.442695
        %v671 = vpow.pop %v670
        %v672 = vmul.f32 %v629, 1.442695
        %v673 = vpow.pop %v672
        %v674 = vmul.f32 %v630, 1.442695
        %v675 = vpow.pop %v674
        %v676 = vmul.f32 %v631, 1.442695
        %v677 = vpow.pop %v676
        %v678 = vmul.f32 %v632, 1.442695
        %v679 = vpow.pop %v678
        %v680 = vmul.f32 %v633, 1.442695
        %v681 = vpow.pop %v680
        %v682 = vmul.f32 %v634, 1.442695
        %v683 = vpow.pop %v682
        %v684 = vmul.f32 %v635, 1.442695
        %v685 = vpow.pop %v684
        %v686 = vmul.f32 %v636, 1.442695
        %v687 = vpow.pop %v686
        %v688 = vmul.f32 %v637, 1.442695
        %v689 = vpow.pop %v688
        %v690 = vmul.f32 %v638, 1.442695
        %v691 = vpow.pop %v690
        %v692 = vmul.f32 %v639, 1.442695
        %v693 = vpow.pop %v692
        %v694 = vmul.f32 %v640, 1.442695
        %v695 = vpow.pop %v694
        %v696 = vmul.f32 %v641, 1.442695
        %v697 = vpow.pop %v696
        %v698 = vmul.f32 %v642, 1.442695
        %v699 = vpow.pop %v698
        %v700 = vmul.f32 %v643, 1.442695
        %v701 = vpow.pop %v700
        %v702 = vmul.f32 %v644, 1.442695
        %v703 = vpow.pop %v702
        %v704 = vmul.f32 %v645, 1.442695
        %v705 = vpow.pop %v704
        %v706 = vmul.f32 %v646, 1.442695
        %v707 = vpow.pop %v706
        %v708 = vmul.f32 %v647, 1.442695
        %v709 = vpow.pop %v708
        %v710 = vmul.f32 %v648, 1.442695
        %v711 = vpow.pop %v710
        %v712 = vmul.f32 %v649, 1.442695
        %v713 = vpow.pop %v712
        %v714 = vld [vmem:[%s3] sm:$0x3]
        %v716 = vperm.slane %v714, 0
        %v717 = vperm.slane %v714, 1
        %v720 = vmul.f32 %v716, %v478
        %v721 = vmul.f32 %v717, %v479
        %v722 = vmul.f32 %v716, %v480
        %v723 = vmul.f32 %v717, %v481
        %v724 = vmul.f32 %v716, %v482
        %v725 = vmul.f32 %v717, %v483
        %v726 = vmul.f32 %v716, %v484
        %v727 = vmul.f32 %v717, %v485
        %v728 = vmul.f32 %v716, %v486
        %v729 = vmul.f32 %v717, %v487
        %v730 = vmul.f32 %v716, %v488
        %v731 = vmul.f32 %v717, %v489
        %v732 = vmul.f32 %v716, %v490
        %v733 = vmul.f32 %v717, %v491
        %v734 = vmul.f32 %v716, %v492
        %v735 = vmul.f32 %v717, %v493
        %v736 = vmul.f32 %v716, %v494
        %v737 = vmul.f32 %v717, %v495
        %v738 = vmul.f32 %v716, %v496
        %v739 = vmul.f32 %v717, %v497
        %v740 = vmul.f32 %v716, %v498
        %v741 = vmul.f32 %v717, %v499
        %v742 = vmul.f32 %v716, %v500
        %v743 = vmul.f32 %v717, %v501
        %v744 = vmul.f32 %v716, %v502
        %v745 = vmul.f32 %v717, %v503
        %v746 = vmul.f32 %v716, %v504
        %v747 = vmul.f32 %v717, %v505
        %v748 = vmul.f32 %v716, %v506
        %v749 = vmul.f32 %v717, %v507
        %v750 = vmul.f32 %v716, %v508
        %v751 = vmul.f32 %v717, %v509
        %v752 = vld [vmem:[#allocation6] sm:$0x3]
        %v754 = vperm.slane %v752, 0
        %v755 = vperm.slane %v752, 1
        %v758 = vadd.f32 %v720, %v754
        %v759 = vadd.f32 %v721, %v755
        %v760 = vadd.f32 %v722, %v754
        %v761 = vadd.f32 %v723, %v755
        %v762 = vadd.f32 %v724, %v754
        %v763 = vadd.f32 %v725, %v755
        %v764 = vadd.f32 %v726, %v754
        %v765 = vadd.f32 %v727, %v755
        %v766 = vadd.f32 %v728, %v754
        %v767 = vadd.f32 %v729, %v755
        %v768 = vadd.f32 %v730, %v754
        %v769 = vadd.f32 %v731, %v755
        %v770 = vadd.f32 %v732, %v754
        %v771 = vadd.f32 %v733, %v755
        %v772 = vadd.f32 %v734, %v754
        %v773 = vadd.f32 %v735, %v755
        %v774 = vadd.f32 %v736, %v754
        %v775 = vadd.f32 %v737, %v755
        %v776 = vadd.f32 %v738, %v754
        %v777 = vadd.f32 %v739, %v755
        %v778 = vadd.f32 %v740, %v754
        %v779 = vadd.f32 %v741, %v755
        %v780 = vadd.f32 %v742, %v754
        %v781 = vadd.f32 %v743, %v755
        %v782 = vadd.f32 %v744, %v754
        %v783 = vadd.f32 %v745, %v755
        %v784 = vadd.f32 %v746, %v754
        %v785 = vadd.f32 %v747, %v755
        %v786 = vadd.f32 %v748, %v754
        %v787 = vadd.f32 %v749, %v755
        %v788 = vadd.f32 %v750, %v754
        %v789 = vadd.f32 %v751, %v755
        %v790 = vmax.f32 %v758, -60.0
        %v791 = vmax.f32 %v759, -60.0
        %v792 = vmax.f32 %v760, -60.0
        %v793 = vmax.f32 %v761, -60.0
        %v794 = vmax.f32 %v762, -60.0
        %v795 = vmax.f32 %v763, -60.0
        %v796 = vmax.f32 %v764, -60.0
        %v797 = vmax.f32 %v765, -60.0
        %v798 = vmax.f32 %v766, -60.0
        %v799 = vmax.f32 %v767, -60.0
        %v800 = vmax.f32 %v768, -60.0
        %v801 = vmax.f32 %v769, -60.0
        %v802 = vmax.f32 %v770, -60.0
        %v803 = vmax.f32 %v771, -60.0
        %v804 = vmax.f32 %v772, -60.0
        %v805 = vmax.f32 %v773, -60.0
        %v806 = vmax.f32 %v774, -60.0
        %v807 = vmax.f32 %v775, -60.0
        %v808 = vmax.f32 %v776, -60.0
        %v809 = vmax.f32 %v777, -60.0
        %v810 = vmax.f32 %v778, -60.0
        %v811 = vmax.f32 %v779, -60.0
        %v812 = vmax.f32 %v780, -60.0
        %v813 = vmax.f32 %v781, -60.0
        %v814 = vmax.f32 %v782, -60.0
        %v815 = vmax.f32 %v783, -60.0
        %v816 = vmax.f32 %v784, -60.0
        %v817 = vmax.f32 %v785, -60.0
        %v818 = vmax.f32 %v786, -60.0
        %v819 = vmax.f32 %v787, -60.0
        %v820 = vmax.f32 %v788, -60.0
        %v821 = vmax.f32 %v789, -60.0
        %v822 = vmin.f32 %v790, 60.0
        %v823 = vmin.f32 %v791, 60.0
        %v824 = vmin.f32 %v792, 60.0
        %v825 = vmin.f32 %v793, 60.0
        %v826 = vmin.f32 %v794, 60.0
        %v827 = vmin.f32 %v795, 60.0
        %v828 = vmin.f32 %v796, 60.0
        %v829 = vmin.f32 %v797, 60.0
        %v830 = vmin.f32 %v798, 60.0
        %v831 = vmin.f32 %v799, 60.0
        %v832 = vmin.f32 %v800, 60.0
        %v833 = vmin.f32 %v801, 60.0
        %v834 = vmin.f32 %v802, 60.0
        %v835 = vmin.f32 %v803, 60.0
        %v836 = vmin.f32 %v804, 60.0
        %v837 = vmin.f32 %v805, 60.0
        %v838 = vmin.f32 %v806, 60.0
        %v839 = vmin.f32 %v807, 60.0
        %v840 = vmin.f32 %v808, 60.0
        %v841 = vmin.f32 %v809, 60.0
        %v842 = vmin.f32 %v810, 60.0
        %v843 = vmin.f32 %v811, 60.0
        %v844 = vmin.f32 %v812, 60.0
        %v845 = vmin.f32 %v813, 60.0
        %v846 = vmin.f32 %v814, 60.0
        %v847 = vmin.f32 %v815, 60.0
        %v848 = vmin.f32 %v816, 60.0
        %v849 = vmin.f32 %v817, 60.0
        %v850 = vmin.f32 %v818, 60.0
        %v851 = vmin.f32 %v819, 60.0
        %v852 = vmin.f32 %v820, 60.0
        %v853 = vmin.f32 %v821, 60.0
        %v854 = vmul.f32 %v822, 1.442695
        %v855 = vpow.pop %v854
        %v856 = vmul.f32 %v823, 1.442695
        %v857 = vpow.pop %v856
        %v858 = vmul.f32 %v824, 1.442695
        %v859 = vpow.pop %v858
        %v860 = vmul.f32 %v825, 1.442695
        %v861 = vpow.pop %v860
        %v862 = vmul.f32 %v826, 1.442695
        %v863 = vpow.pop %v862
        %v864 = vmul.f32 %v827, 1.442695
        %v865 = vpow.pop %v864
        %v866 = vmul.f32 %v828, 1.442695
        %v867 = vpow.pop %v866
        %v868 = vmul.f32 %v829, 1.442695
        %v869 = vpow.pop %v868
        %v870 = vmul.f32 %v830, 1.442695
        %v871 = vpow.pop %v870
        %v872 = vmul.f32 %v831, 1.442695
        %v873 = vpow.pop %v872
        %v874 = vmul.f32 %v832, 1.442695
        %v875 = vpow.pop %v874
        %v876 = vmul.f32 %v833, 1.442695
        %v877 = vpow.pop %v876
        %v878 = vmul.f32 %v834, 1.442695
        %v879 = vpow.pop %v878
        %v880 = vmul.f32 %v835, 1.442695
        %v881 = vpow.pop %v880
        %v882 = vmul.f32 %v836, 1.442695
        %v883 = vpow.pop %v882
        %v884 = vmul.f32 %v837, 1.442695
        %v885 = vpow.pop %v884
        %v886 = vmul.f32 %v838, 1.442695
        %v887 = vpow.pop %v886
        %v888 = vmul.f32 %v839, 1.442695
        %v889 = vpow.pop %v888
        %v890 = vmul.f32 %v840, 1.442695
        %v891 = vpow.pop %v890
        %v892 = vmul.f32 %v841, 1.442695
        %v893 = vpow.pop %v892
        %v894 = vmul.f32 %v842, 1.442695
        %v895 = vpow.pop %v894
        %v896 = vmul.f32 %v843, 1.442695
        %v897 = vpow.pop %v896
        %v898 = vmul.f32 %v844, 1.442695
        %v899 = vpow.pop %v898
        %v900 = vmul.f32 %v845, 1.442695
        %v901 = vpow.pop %v900
        %v902 = vmul.f32 %v846, 1.442695
        %v903 = vpow.pop %v902
        %v904 = vmul.f32 %v847, 1.442695
        %v905 = vpow.pop %v904
        %v906 = vmul.f32 %v848, 1.442695
        %v907 = vpow.pop %v906
        %v908 = vmul.f32 %v849, 1.442695
        %v909 = vpow.pop %v908
        %v910 = vmul.f32 %v850, 1.442695
        %v911 = vpow.pop %v910
        %v912 = vmul.f32 %v851, 1.442695
        %v913 = vpow.pop %v912
        %v914 = vmul.f32 %v852, 1.442695
        %v915 = vpow.pop %v914
        %v916 = vmul.f32 %v853, 1.442695
        %v917 = vpow.pop %v916
        %v918 = vld [vmem:[%s5] sm:$0x3]
        %v919 = vmul.f32 %v651, 50.0
        %v920 = vmul.f32 %v653, 50.0
        %v921 = vmul.f32 %v655, 50.0
        %v922 = vmul.f32 %v657, 50.0
        %v923 = vmul.f32 %v659, 50.0
        %v924 = vmul.f32 %v661, 50.0
        %v925 = vmul.f32 %v663, 50.0
        %v926 = vmul.f32 %v665, 50.0
        %v927 = vmul.f32 %v667, 50.0
        %v928 = vmul.f32 %v669, 50.0
        %v929 = vmul.f32 %v671, 50.0
        %v930 = vmul.f32 %v673, 50.0
        %v931 = vmul.f32 %v675, 50.0
        %v932 = vmul.f32 %v677, 50.0
        %v933 = vmul.f32 %v679, 50.0
        %v934 = vmul.f32 %v681, 50.0
        %v935 = vmul.f32 %v683, 50.0
        %v936 = vmul.f32 %v685, 50.0
        %v937 = vmul.f32 %v687, 50.0
        %v938 = vmul.f32 %v689, 50.0
        %v939 = vmul.f32 %v691, 50.0
        %v940 = vmul.f32 %v693, 50.0
        %v941 = vmul.f32 %v695, 50.0
        %v942 = vmul.f32 %v697, 50.0
        %v943 = vmul.f32 %v699, 50.0
        %v944 = vmul.f32 %v701, 50.0
        %v945 = vmul.f32 %v703, 50.0
        %v946 = vmul.f32 %v705, 50.0
        %v947 = vmul.f32 %v707, 50.0
        %v948 = vmul.f32 %v709, 50.0
        %v949 = vmul.f32 %v711, 50.0
        %v950 = vmul.f32 %v713, 50.0
        %v951 = vmul.f32 %v855, -70.0
        %v952 = vmul.f32 %v857, -70.0
        %v953 = vmul.f32 %v859, -70.0
        %v954 = vmul.f32 %v861, -70.0
        %v955 = vmul.f32 %v863, -70.0
        %v956 = vmul.f32 %v865, -70.0
        %v957 = vmul.f32 %v867, -70.0
        %v958 = vmul.f32 %v869, -70.0
        %v959 = vmul.f32 %v871, -70.0
        %v960 = vmul.f32 %v873, -70.0
        %v961 = vmul.f32 %v875, -70.0
        %v962 = vmul.f32 %v877, -70.0
        %v963 = vmul.f32 %v879, -70.0
        %v964 = vmul.f32 %v881, -70.0
        %v965 = vmul.f32 %v883, -70.0
        %v966 = vmul.f32 %v885, -70.0
        %v967 = vmul.f32 %v887, -70.0
        %v968 = vmul.f32 %v889, -70.0
        %v969 = vmul.f32 %v891, -70.0
        %v970 = vmul.f32 %v893, -70.0
        %v971 = vmul.f32 %v895, -70.0
        %v972 = vmul.f32 %v897, -70.0
        %v973 = vmul.f32 %v899, -70.0
        %v974 = vmul.f32 %v901, -70.0
        %v975 = vmul.f32 %v903, -70.0
        %v976 = vmul.f32 %v905, -70.0
        %v977 = vmul.f32 %v907, -70.0
        %v978 = vmul.f32 %v909, -70.0
        %v979 = vmul.f32 %v911, -70.0
        %v980 = vmul.f32 %v913, -70.0
        %v981 = vmul.f32 %v915, -70.0
        %v982 = vmul.f32 %v917, -70.0
        %v983 = vadd.f32 %v919, %v951
        %v984 = vadd.f32 %v920, %v952
        %v985 = vadd.f32 %v921, %v953
        %v986 = vadd.f32 %v922, %v954
        %v987 = vadd.f32 %v923, %v955
        %v988 = vadd.f32 %v924, %v956
        %v989 = vadd.f32 %v925, %v957
        %v990 = vadd.f32 %v926, %v958
        %v991 = vadd.f32 %v927, %v959
        %v992 = vadd.f32 %v928, %v960
        %v993 = vadd.f32 %v929, %v961
        %v994 = vadd.f32 %v930, %v962
        %v995 = vadd.f32 %v931, %v963
        %v996 = vadd.f32 %v932, %v964
        %v997 = vadd.f32 %v933, %v965
        %v998 = vadd.f32 %v934, %v966
        %v999 = vadd.f32 %v935, %v967
        %v1000 = vadd.f32 %v936, %v968
        %v1001 = vadd.f32 %v937, %v969
        %v1002 = vadd.f32 %v938, %v970
        %v1003 = vadd.f32 %v939, %v971
        %v1004 = vadd.f32 %v940, %v972
        %v1005 = vadd.f32 %v941, %v973
        %v1006 = vadd.f32 %v942, %v974
        %v1007 = vadd.f32 %v943, %v975
        %v1008 = vadd.f32 %v944, %v976
        %v1009 = vadd.f32 %v945, %v977
        %v1010 = vadd.f32 %v946, %v978
        %v1011 = vadd.f32 %v947, %v979
        %v1012 = vadd.f32 %v948, %v980
        %v1013 = vadd.f32 %v949, %v981
        %v1014 = vadd.f32 %v950, %v982
        %v1015 = vmul.f32 %v918, -65.0
        %v1017 = vperm.slane %v1015, 0
        %v1018 = vperm.slane %v1015, 1
        %v1021 = vadd.f32 %v983, %v1017
        %v1022 = vadd.f32 %v984, %v1018
        %v1023 = vadd.f32 %v985, %v1017
        %v1024 = vadd.f32 %v986, %v1018
        %v1025 = vadd.f32 %v987, %v1017
        %v1026 = vadd.f32 %v988, %v1018
        %v1027 = vadd.f32 %v989, %v1017
        %v1028 = vadd.f32 %v990, %v1018
        %v1029 = vadd.f32 %v991, %v1017
        %v1030 = vadd.f32 %v992, %v1018
        %v1031 = vadd.f32 %v993, %v1017
        %v1032 = vadd.f32 %v994, %v1018
        %v1033 = vadd.f32 %v995, %v1017
        %v1034 = vadd.f32 %v996, %v1018
        %v1035 = vadd.f32 %v997, %v1017
        %v1036 = vadd.f32 %v998, %v1018
        %v1037 = vadd.f32 %v999, %v1017
        %v1038 = vadd.f32 %v1000, %v1018
        %v1039 = vadd.f32 %v1001, %v1017
        %v1040 = vadd.f32 %v1002, %v1018
        %v1041 = vadd.f32 %v1003, %v1017
        %v1042 = vadd.f32 %v1004, %v1018
        %v1043 = vadd.f32 %v1005, %v1017
        %v1044 = vadd.f32 %v1006, %v1018
        %v1045 = vadd.f32 %v1007, %v1017
        %v1046 = vadd.f32 %v1008, %v1018
        %v1047 = vadd.f32 %v1009, %v1017
        %v1048 = vadd.f32 %v1010, %v1018
        %v1049 = vadd.f32 %v1011, %v1017
        %v1050 = vadd.f32 %v1012, %v1018
        %v1051 = vadd.f32 %v1013, %v1017
        %v1052 = vadd.f32 %v1014, %v1018
        %v1053 = vadd.f32 %v651, %v855
        %v1054 = vadd.f32 %v653, %v857
        %v1055 = vadd.f32 %v655, %v859
        %v1056 = vadd.f32 %v657, %v861
        %v1057 = vadd.f32 %v659, %v863
        %v1058 = vadd.f32 %v661, %v865
        %v1059 = vadd.f32 %v663, %v867
        %v1060 = vadd.f32 %v665, %v869
        %v1061 = vadd.f32 %v667, %v871
        %v1062 = vadd.f32 %v669, %v873
        %v1063 = vadd.f32 %v671, %v875
        %v1064 = vadd.f32 %v673, %v877
        %v1065 = vadd.f32 %v675, %v879
        %v1066 = vadd.f32 %v677, %v881
        %v1067 = vadd.f32 %v679, %v883
        %v1068 = vadd.f32 %v681, %v885
        %v1069 = vadd.f32 %v683, %v887
        %v1070 = vadd.f32 %v685, %v889
        %v1071 = vadd.f32 %v687, %v891
        %v1072 = vadd.f32 %v689, %v893
        %v1073 = vadd.f32 %v691, %v895
        %v1074 = vadd.f32 %v693, %v897
        %v1075 = vadd.f32 %v695, %v899
        %v1076 = vadd.f32 %v697, %v901
        %v1077 = vadd.f32 %v699, %v903
        %v1078 = vadd.f32 %v701, %v905
        %v1079 = vadd.f32 %v703, %v907
        %v1080 = vadd.f32 %v705, %v909
        %v1081 = vadd.f32 %v707, %v911
        %v1082 = vadd.f32 %v709, %v913
        %v1083 = vadd.f32 %v711, %v915
        %v1084 = vadd.f32 %v713, %v917
        %v1086 = vperm.slane %v918, 0
        %v1087 = vperm.slane %v918, 1
        %v1090 = vadd.f32 %v1053, %v1086
        %v1091 = vadd.f32 %v1054, %v1087
        %v1092 = vadd.f32 %v1055, %v1086
        %v1093 = vadd.f32 %v1056, %v1087
        %v1094 = vadd.f32 %v1057, %v1086
        %v1095 = vadd.f32 %v1058, %v1087
        %v1096 = vadd.f32 %v1059, %v1086
        %v1097 = vadd.f32 %v1060, %v1087
        %v1098 = vadd.f32 %v1061, %v1086
        %v1099 = vadd.f32 %v1062, %v1087
        %v1100 = vadd.f32 %v1063, %v1086
        %v1101 = vadd.f32 %v1064, %v1087
        %v1102 = vadd.f32 %v1065, %v1086
        %v1103 = vadd.f32 %v1066, %v1087
        %v1104 = vadd.f32 %v1067, %v1086
        %v1105 = vadd.f32 %v1068, %v1087
        %v1106 = vadd.f32 %v1069, %v1086
        %v1107 = vadd.f32 %v1070, %v1087
        %v1108 = vadd.f32 %v1071, %v1086
        %v1109 = vadd.f32 %v1072, %v1087
        %v1110 = vadd.f32 %v1073, %v1086
        %v1111 = vadd.f32 %v1074, %v1087
        %v1112 = vadd.f32 %v1075, %v1086
        %v1113 = vadd.f32 %v1076, %v1087
        %v1114 = vadd.f32 %v1077, %v1086
        %v1115 = vadd.f32 %v1078, %v1087
        %v1116 = vadd.f32 %v1079, %v1086
        %v1117 = vadd.f32 %v1080, %v1087
        %v1118 = vadd.f32 %v1081, %v1086
        %v1119 = vadd.f32 %v1082, %v1087
        %v1120 = vadd.f32 %v1083, %v1086
        %v1121 = vadd.f32 %v1084, %v1087
        %v1122 = vrcp.pop %v1090
        %v1123 = vrcp.pop %v1091
        %v1124 = vrcp.pop %v1092
        %v1125 = vrcp.pop %v1093
        %v1126 = vrcp.pop %v1094
        %v1127 = vrcp.pop %v1095
        %v1128 = vrcp.pop %v1096
        %v1129 = vrcp.pop %v1097
        %v1130 = vrcp.pop %v1098
        %v1131 = vrcp.pop %v1099
        %v1132 = vrcp.pop %v1100
        %v1133 = vrcp.pop %v1101
        %v1134 = vrcp.pop %v1102
        %v1135 = vrcp.pop %v1103
        %v1136 = vrcp.pop %v1104
        %v1137 = vrcp.pop %v1105
        %v1138 = vrcp.pop %v1106
        %v1139 = vrcp.pop %v1107
        %v1140 = vrcp.pop %v1108
        %v1141 = vrcp.pop %v1109
        %v1142 = vrcp.pop %v1110
        %v1143 = vrcp.pop %v1111
        %v1144 = vrcp.pop %v1112
        %v1145 = vrcp.pop %v1113
        %v1146 = vrcp.pop %v1114
        %v1147 = vrcp.pop %v1115
        %v1148 = vrcp.pop %v1116
        %v1149 = vrcp.pop %v1117
        %v1150 = vrcp.pop %v1118
        %v1151 = vrcp.pop %v1119
        %v1152 = vrcp.pop %v1120
        %v1153 = vrcp.pop %v1121
        %v1154 = vmul.f32 %v1021, %v1122
        %v1155 = vmul.f32 %v1022, %v1123
        %v1156 = vmul.f32 %v1023, %v1124
        %v1157 = vmul.f32 %v1024, %v1125
        %v1158 = vmul.f32 %v1025, %v1126
        %v1159 = vmul.f32 %v1026, %v1127
        %v1160 = vmul.f32 %v1027, %v1128
        %v1161 = vmul.f32 %v1028, %v1129
        %v1162 = vmul.f32 %v1029, %v1130
        %v1163 = vmul.f32 %v1030, %v1131
        %v1164 = vmul.f32 %v1031, %v1132
        %v1165 = vmul.f32 %v1032, %v1133
        %v1166 = vmul.f32 %v1033, %v1134
        %v1167 = vmul.f32 %v1034, %v1135
        %v1168 = vmul.f32 %v1035, %v1136
        %v1169 = vmul.f32 %v1036, %v1137
        %v1170 = vmul.f32 %v1037, %v1138
        %v1171 = vmul.f32 %v1038, %v1139
        %v1172 = vmul.f32 %v1039, %v1140
        %v1173 = vmul.f32 %v1040, %v1141
        %v1174 = vmul.f32 %v1041, %v1142
        %v1175 = vmul.f32 %v1042, %v1143
        %v1176 = vmul.f32 %v1043, %v1144
        %v1177 = vmul.f32 %v1044, %v1145
        %v1178 = vmul.f32 %v1045, %v1146
        %v1179 = vmul.f32 %v1046, %v1147
        %v1180 = vmul.f32 %v1047, %v1148
        %v1181 = vmul.f32 %v1048, %v1149
        %v1182 = vmul.f32 %v1049, %v1150
        %v1183 = vmul.f32 %v1050, %v1151
        %v1184 = vmul.f32 %v1051, %v1152
        %v1185 = vmul.f32 %v1052, %v1153
        %v1186 = vld [vmem:[#allocation8] sm:$0xf]
        %v1187 = vld [vmem:[#allocation8 + $0x4] sm:$0xf]
        %v1188 = vld [vmem:[#allocation8 + $0x8] sm:$0xf]
        %v1189 = vld [vmem:[#allocation8 + $0xc] sm:$0xf]
        %v1190 = vld [vmem:[#allocation8 + $0x10] sm:$0xf]
        %v1191 = vld [vmem:[#allocation8 + $0x14] sm:$0xf]
        %v1192 = vld [vmem:[#allocation8 + $0x18] sm:$0xf]
        %v1193 = vld [vmem:[#allocation8 + $0x1c] sm:$0xf]
        %v1194 = vld [vmem:[#allocation8 + $0x20] sm:$0xf]
        %v1195 = vld [vmem:[#allocation8 + $0x24] sm:$0xf]
        %v1196 = vld [vmem:[#allocation8 + $0x28] sm:$0xf]
        %v1197 = vld [vmem:[#allocation8 + $0x2c] sm:$0xf]
        %v1198 = vld [vmem:[#allocation8 + $0x30] sm:$0xf]
        %v1199 = vld [vmem:[#allocation8 + $0x34] sm:$0xf]
        %v1200 = vld [vmem:[#allocation8 + $0x38] sm:$0xf]
        %v1201 = vld [vmem:[#allocation8 + $0x3c] sm:$0xf]
        %v1202 = vld [vmem:[#allocation8 + $0x40] sm:$0xf]
        %v1203 = vld [vmem:[#allocation8 + $0x44] sm:$0xf]
        %v1204 = vld [vmem:[#allocation8 + $0x48] sm:$0xf]
        %v1205 = vld [vmem:[#allocation8 + $0x4c] sm:$0xf]
        %v1206 = vld [vmem:[#allocation8 + $0x50] sm:$0xf]
        %v1207 = vld [vmem:[#allocation8 + $0x54] sm:$0xf]
        %v1208 = vld [vmem:[#allocation8 + $0x58] sm:$0xf]
        %v1209 = vld [vmem:[#allocation8 + $0x5c] sm:$0xf]
        %v1210 = vld [vmem:[#allocation8 + $0x60] sm:$0xf]
        %v1211 = vld [vmem:[#allocation8 + $0x64] sm:$0xf]
        %v1212 = vld [vmem:[#allocation8 + $0x68] sm:$0xf]
        %v1213 = vld [vmem:[#allocation8 + $0x6c] sm:$0xf]
        %v1214 = vld [vmem:[#allocation8 + $0x70] sm:$0xf]
        %v1215 = vld [vmem:[#allocation8 + $0x74] sm:$0xf]
        %v1216 = vld [vmem:[#allocation8 + $0x78] sm:$0xf]
        %v1217 = vld [vmem:[#allocation8 + $0x7c] sm:$0xf]
        %v1218 = vpack.c.bf16 %v1156, %v1154
        %v1219 = vpack.c.bf16 %v1157, %v1155
        %v1220 = vpack.c.bf16 %v1160, %v1158
        %v1221 = vpack.c.bf16 %v1161, %v1159
        %v1222 = vpack.c.bf16 %v1164, %v1162
        %v1223 = vpack.c.bf16 %v1165, %v1163
        %v1224 = vpack.c.bf16 %v1168, %v1166
        %v1225 = vpack.c.bf16 %v1169, %v1167
        %v1226 = vpack.c.bf16 %v1172, %v1170
        %v1227 = vpack.c.bf16 %v1173, %v1171
        %v1228 = vpack.c.bf16 %v1176, %v1174
        %v1229 = vpack.c.bf16 %v1177, %v1175
        %v1230 = vpack.c.bf16 %v1180, %v1178
        %v1231 = vpack.c.bf16 %v1181, %v1179
        %v1232 = vpack.c.bf16 %v1184, %v1182
        %v1233 = vpack.c.bf16 %v1185, %v1183
        %v1266 = vunpack.c.l.b16 %v1186
        %v1267 = vunpack.c.l.b16 %v1187
        %v1268 = vunpack.c.l.b16 %v1188
        %v1269 = vunpack.c.l.b16 %v1189
        %v1270 = vunpack.c.l.b16 %v1190
        %v1271 = vunpack.c.l.b16 %v1191
        %v1272 = vunpack.c.l.b16 %v1192
        %v1273 = vunpack.c.l.b16 %v1193
        %v1274 = vunpack.c.l.b16 %v1194
        %v1275 = vunpack.c.l.b16 %v1195
        %v1276 = vunpack.c.l.b16 %v1196
        %v1277 = vunpack.c.l.b16 %v1197
        %v1278 = vunpack.c.l.b16 %v1198
        %v1279 = vunpack.c.l.b16 %v1199
        %v1280 = vunpack.c.l.b16 %v1200
        %v1281 = vunpack.c.l.b16 %v1201
        %v1282 = vunpack.c.l.b16 %v1202
        %v1283 = vunpack.c.l.b16 %v1203
        %v1284 = vunpack.c.l.b16 %v1204
        %v1285 = vunpack.c.l.b16 %v1205
        %v1286 = vunpack.c.l.b16 %v1206
        %v1287 = vunpack.c.l.b16 %v1207
        %v1288 = vunpack.c.l.b16 %v1208
        %v1289 = vunpack.c.l.b16 %v1209
        %v1290 = vunpack.c.l.b16 %v1210
        %v1291 = vunpack.c.l.b16 %v1211
        %v1292 = vunpack.c.l.b16 %v1212
        %v1293 = vunpack.c.l.b16 %v1213
        %v1294 = vunpack.c.l.b16 %v1214
        %v1295 = vunpack.c.l.b16 %v1215
        %v1296 = vunpack.c.l.b16 %v1216
        %v1297 = vunpack.c.l.b16 %v1217
        %v1298 = vpack.c.b16 %v1267, %v1266
        %v1299 = vpack.c.b16 %v1269, %v1268
        %v1300 = vpack.c.b16 %v1271, %v1270
        %v1301 = vpack.c.b16 %v1273, %v1272
        %v1302 = vpack.c.b16 %v1275, %v1274
        %v1303 = vpack.c.b16 %v1277, %v1276
        %v1304 = vpack.c.b16 %v1279, %v1278
        %v1305 = vpack.c.b16 %v1281, %v1280
        %v1306 = vpack.c.b16 %v1283, %v1282
        %v1307 = vpack.c.b16 %v1285, %v1284
        %v1308 = vpack.c.b16 %v1287, %v1286
        %v1309 = vpack.c.b16 %v1289, %v1288
        %v1310 = vpack.c.b16 %v1291, %v1290
        %v1311 = vpack.c.b16 %v1293, %v1292
        %v1312 = vpack.c.b16 %v1295, %v1294
        %v1313 = vpack.c.b16 %v1297, %v1296
        %1330 = vmatpush.bf16.msra.mxu0 %v1305
        %1331 = vmatpush.bf16.msra.mxu0 %v1304
        %1332 = vmatpush.bf16.msra.mxu0 %v1303
        %1333 = vmatpush.bf16.msra.mxu0 %v1302
        %1334 = vmatpush.bf16.msra.mxu0 %v1301
        %1335 = vmatpush.bf16.msra.mxu0 %v1300
        %1336 = vmatpush.bf16.msra.mxu0 %v1299
        %1337 = vmatpush.bf16.msra.mxu0 %v1298
        %1338 = vmatmul.bf16.gmra.mxu0 %v1218
        %v1339 = vpop.f32.mrf.mxu0
        %v1340 = vadd.f32 0.0, %v1339
        %v1341 = vpop.f32.mrf.mxu0
        %v1342 = vadd.f32 0.0, %v1341
        %1343 = vmatmul.bf16.gmra.mxu0 %v1220
        %v1344 = vpop.f32.mrf.mxu0
        %v1345 = vadd.f32 0.0, %v1344
        %v1346 = vpop.f32.mrf.mxu0
        %v1347 = vadd.f32 0.0, %v1346
        %1348 = vmatmul.bf16.gmra.mxu0 %v1222
        %v1349 = vpop.f32.mrf.mxu0
        %v1350 = vadd.f32 0.0, %v1349
        %v1351 = vpop.f32.mrf.mxu0
        %v1352 = vadd.f32 0.0, %v1351
        %1353 = vmatmul.bf16.gmra.mxu0 %v1224
        %v1354 = vpop.f32.mrf.mxu0
        %v1355 = vadd.f32 0.0, %v1354
        %v1356 = vpop.f32.mrf.mxu0
        %v1357 = vadd.f32 0.0, %v1356
        %1358 = vmatmul.bf16.gmra.mxu0 %v1226
        %v1359 = vpop.f32.mrf.mxu0
        %v1360 = vadd.f32 0.0, %v1359
        %v1361 = vpop.f32.mrf.mxu0
        %v1362 = vadd.f32 0.0, %v1361
        %1363 = vmatmul.bf16.gmra.mxu0 %v1228
        %v1364 = vpop.f32.mrf.mxu0
        %v1365 = vadd.f32 0.0, %v1364
        %v1366 = vpop.f32.mrf.mxu0
        %v1367 = vadd.f32 0.0, %v1366
        %1368 = vmatmul.bf16.gmra.mxu0 %v1230
        %v1369 = vpop.f32.mrf.mxu0
        %v1370 = vadd.f32 0.0, %v1369
        %v1371 = vpop.f32.mrf.mxu0
        %v1372 = vadd.f32 0.0, %v1371
        %1373 = vmatmul.bf16.gmra.mxu0 %v1232
        %v1374 = vpop.f32.mrf.mxu0
        %v1375 = vadd.f32 0.0, %v1374
        %v1376 = vpop.f32.mrf.mxu0
        %v1377 = vadd.f32 0.0, %v1376
        %1378 = vdwg.mxu0
        %1379 = vmatpush.bf16.msra.mxu0 %v1313
        %1380 = vmatpush.bf16.msra.mxu0 %v1312
        %1381 = vmatpush.bf16.msra.mxu0 %v1311
        %1382 = vmatpush.bf16.msra.mxu0 %v1310
        %1383 = vmatpush.bf16.msra.mxu0 %v1309
        %1384 = vmatpush.bf16.msra.mxu0 %v1308
        %1385 = vmatpush.bf16.msra.mxu0 %v1307
        %1386 = vmatpush.bf16.msra.mxu0 %v1306
        %1387 = vmatmul.bf16.gmra.mxu0 %v1219
        %v1388 = vpop.f32.mrf.mxu0
        %v1389 = vadd.f32 %v1340, %v1388
        %v1390 = vpop.f32.mrf.mxu0
        %v1391 = vadd.f32 %v1342, %v1390
        %1392 = vmatmul.bf16.gmra.mxu0 %v1221
        %v1393 = vpop.f32.mrf.mxu0
        %v1394 = vadd.f32 %v1345, %v1393
        %v1395 = vpop.f32.mrf.mxu0
        %v1396 = vadd.f32 %v1347, %v1395
        %1397 = vmatmul.bf16.gmra.mxu0 %v1223
        %v1398 = vpop.f32.mrf.mxu0
        %v1399 = vadd.f32 %v1350, %v1398
        %v1400 = vpop.f32.mrf.mxu0
        %v1401 = vadd.f32 %v1352, %v1400
        %1402 = vmatmul.bf16.gmra.mxu0 %v1225
        %v1403 = vpop.f32.mrf.mxu0
        %v1404 = vadd.f32 %v1355, %v1403
        %v1405 = vpop.f32.mrf.mxu0
        %v1406 = vadd.f32 %v1357, %v1405
        %1407 = vmatmul.bf16.gmra.mxu0 %v1227
        %v1408 = vpop.f32.mrf.mxu0
        %v1409 = vadd.f32 %v1360, %v1408
        %v1410 = vpop.f32.mrf.mxu0
        %v1411 = vadd.f32 %v1362, %v1410
        %1412 = vmatmul.bf16.gmra.mxu0 %v1229
        %v1413 = vpop.f32.mrf.mxu0
        %v1414 = vadd.f32 %v1365, %v1413
        %v1415 = vpop.f32.mrf.mxu0
        %v1416 = vadd.f32 %v1367, %v1415
        %1417 = vmatmul.bf16.gmra.mxu0 %v1231
        %v1418 = vpop.f32.mrf.mxu0
        %v1419 = vadd.f32 %v1370, %v1418
        %v1420 = vpop.f32.mrf.mxu0
        %v1421 = vadd.f32 %v1372, %v1420
        %1422 = vmatmul.bf16.gmra.mxu0 %v1233
        %v1423 = vpop.f32.mrf.mxu0
        %v1424 = vadd.f32 %v1375, %v1423
        %v1425 = vpop.f32.mrf.mxu0
        %v1426 = vadd.f32 %v1377, %v1425
        %1427 = vdwg.mxu0
        %vm1428 = vcmp.ge.f32.partialorder %v1389, 0.0
        %vm1429 = vcmp.ge.f32.partialorder %v1391, 0.0
        %vm1430 = vcmp.ge.f32.partialorder %v1394, 0.0
        %vm1431 = vcmp.ge.f32.partialorder %v1396, 0.0
        %vm1432 = vcmp.ge.f32.partialorder %v1399, 0.0
        %vm1433 = vcmp.ge.f32.partialorder %v1401, 0.0
        %vm1434 = vcmp.ge.f32.partialorder %v1404, 0.0
        %vm1435 = vcmp.ge.f32.partialorder %v1406, 0.0
        %vm1436 = vcmp.ge.f32.partialorder %v1409, 0.0
        %vm1437 = vcmp.ge.f32.partialorder %v1411, 0.0
        %vm1438 = vcmp.ge.f32.partialorder %v1414, 0.0
        %vm1439 = vcmp.ge.f32.partialorder %v1416, 0.0
        %vm1440 = vcmp.ge.f32.partialorder %v1419, 0.0
        %vm1441 = vcmp.ge.f32.partialorder %v1421, 0.0
        %vm1442 = vcmp.ge.f32.partialorder %v1424, 0.0
        %vm1443 = vcmp.ge.f32.partialorder %v1426, 0.0
        %v1444 = vmul.f32 %v1389, 0.01
        %v1445 = vmul.f32 %v1391, 0.01
        %v1446 = vmul.f32 %v1394, 0.01
        %v1447 = vmul.f32 %v1396, 0.01
        %v1448 = vmul.f32 %v1399, 0.01
        %v1449 = vmul.f32 %v1401, 0.01
        %v1450 = vmul.f32 %v1404, 0.01
        %v1451 = vmul.f32 %v1406, 0.01
        %v1452 = vmul.f32 %v1409, 0.01
        %v1453 = vmul.f32 %v1411, 0.01
        %v1454 = vmul.f32 %v1414, 0.01
        %v1455 = vmul.f32 %v1416, 0.01
        %v1456 = vmul.f32 %v1419, 0.01
        %v1457 = vmul.f32 %v1421, 0.01
        %v1458 = vmul.f32 %v1424, 0.01
        %v1459 = vmul.f32 %v1426, 0.01
        %v1460 = vsel %vm1428, %v1389, %v1444
        %v1461 = vsel %vm1429, %v1391, %v1445
        %v1462 = vsel %vm1430, %v1394, %v1446
        %v1463 = vsel %vm1431, %v1396, %v1447
        %v1464 = vsel %vm1432, %v1399, %v1448
        %v1465 = vsel %vm1433, %v1401, %v1449
        %v1466 = vsel %vm1434, %v1404, %v1450
        %v1467 = vsel %vm1435, %v1406, %v1451
        %v1468 = vsel %vm1436, %v1409, %v1452
        %v1469 = vsel %vm1437, %v1411, %v1453
        %v1470 = vsel %vm1438, %v1414, %v1454
        %v1471 = vsel %vm1439, %v1416, %v1455
        %v1472 = vsel %vm1440, %v1419, %v1456
        %v1473 = vsel %vm1441, %v1421, %v1457
        %v1474 = vsel %vm1442, %v1424, %v1458
        %v1475 = vsel %vm1443, %v1426, %v1459
        %v1476 = vsub.f32 %v1460, 50.5
        %v1477 = vsub.f32 %v1461, 50.5
        %v1478 = vsub.f32 %v1462, 50.5
        %v1479 = vsub.f32 %v1463, 50.5
        %v1480 = vsub.f32 %v1464, 50.5
        %v1481 = vsub.f32 %v1465, 50.5
        %v1482 = vsub.f32 %v1466, 50.5
        %v1483 = vsub.f32 %v1467, 50.5
        %v1484 = vsub.f32 %v1468, 50.5
        %v1485 = vsub.f32 %v1469, 50.5
        %v1486 = vsub.f32 %v1470, 50.5
        %v1487 = vsub.f32 %v1471, 50.5
        %v1488 = vsub.f32 %v1472, 50.5
        %v1489 = vsub.f32 %v1473, 50.5
        %v1490 = vsub.f32 %v1474, 50.5
        %v1491 = vsub.f32 %v1475, 50.5
        %v1492 = vmax.f32 %v1476, 0.0
        %v1493 = vmax.f32 %v1477, 0.0
        %v1494 = vmax.f32 %v1478, 0.0
        %v1495 = vmax.f32 %v1479, 0.0
        %v1496 = vmax.f32 %v1480, 0.0
        %v1497 = vmax.f32 %v1481, 0.0
        %v1498 = vmax.f32 %v1482, 0.0
        %v1499 = vmax.f32 %v1483, 0.0
        %v1500 = vmax.f32 %v1484, 0.0
        %v1501 = vmax.f32 %v1485, 0.0
        %v1502 = vmax.f32 %v1486, 0.0
        %v1503 = vmax.f32 %v1487, 0.0
        %v1504 = vmax.f32 %v1488, 0.0
        %v1505 = vmax.f32 %v1489, 0.0
        %v1506 = vmax.f32 %v1490, 0.0
        %v1507 = vmax.f32 %v1491, 0.0
        %v1508 = vsub.f32 -70.5, %v1460
        %v1509 = vsub.f32 -70.5, %v1461
        %v1510 = vsub.f32 -70.5, %v1462
        %v1511 = vsub.f32 -70.5, %v1463
        %v1512 = vsub.f32 -70.5, %v1464
        %v1513 = vsub.f32 -70.5, %v1465
        %v1514 = vsub.f32 -70.5, %v1466
        %v1515 = vsub.f32 -70.5, %v1467
        %v1516 = vsub.f32 -70.5, %v1468
        %v1517 = vsub.f32 -70.5, %v1469
        %v1518 = vsub.f32 -70.5, %v1470
        %v1519 = vsub.f32 -70.5, %v1471
        %v1520 = vsub.f32 -70.5, %v1472
        %v1521 = vsub.f32 -70.5, %v1473
        %v1522 = vsub.f32 -70.5, %v1474
        %v1523 = vsub.f32 -70.5, %v1475
        %v1524 = vmax.f32 %v1508, 0.0
        %v1525 = vmax.f32 %v1509, 0.0
        %v1526 = vmax.f32 %v1510, 0.0
        %v1527 = vmax.f32 %v1511, 0.0
        %v1528 = vmax.f32 %v1512, 0.0
        %v1529 = vmax.f32 %v1513, 0.0
        %v1530 = vmax.f32 %v1514, 0.0
        %v1531 = vmax.f32 %v1515, 0.0
        %v1532 = vmax.f32 %v1516, 0.0
        %v1533 = vmax.f32 %v1517, 0.0
        %v1534 = vmax.f32 %v1518, 0.0
        %v1535 = vmax.f32 %v1519, 0.0
        %v1536 = vmax.f32 %v1520, 0.0
        %v1537 = vmax.f32 %v1521, 0.0
        %v1538 = vmax.f32 %v1522, 0.0
        %v1539 = vmax.f32 %v1523, 0.0
        %v1540 = vadd.f32 %v1492, %v1524
        %v1541 = vadd.f32 %v1493, %v1525
        %v1542 = vadd.f32 %v1494, %v1526
        %v1543 = vadd.f32 %v1495, %v1527
        %v1544 = vadd.f32 %v1496, %v1528
        %v1545 = vadd.f32 %v1497, %v1529
        %v1546 = vadd.f32 %v1498, %v1530
        %v1547 = vadd.f32 %v1499, %v1531
        %v1548 = vadd.f32 %v1500, %v1532
        %v1549 = vadd.f32 %v1501, %v1533
        %v1550 = vadd.f32 %v1502, %v1534
        %v1551 = vadd.f32 %v1503, %v1535
        %v1552 = vadd.f32 %v1504, %v1536
        %v1553 = vadd.f32 %v1505, %v1537
        %v1554 = vadd.f32 %v1506, %v1538
        %v1555 = vadd.f32 %v1507, %v1539
        %v1556 = vmul.f32 %v1540, 3.90625e-05
        %v1557 = vmul.f32 %v1541, 3.90625e-05
        %v1558 = vmul.f32 %v1542, 3.90625e-05
        %v1559 = vmul.f32 %v1543, 3.90625e-05
        %v1560 = vmul.f32 %v1544, 3.90625e-05
        %v1561 = vmul.f32 %v1545, 3.90625e-05
        %v1562 = vmul.f32 %v1546, 3.90625e-05
        %v1563 = vmul.f32 %v1547, 3.90625e-05
        %v1564 = vmul.f32 %v1548, 3.90625e-05
        %v1565 = vmul.f32 %v1549, 3.90625e-05
        %v1566 = vmul.f32 %v1550, 3.90625e-05
        %v1567 = vmul.f32 %v1551, 3.90625e-05
        %v1568 = vmul.f32 %v1552, 3.90625e-05
        %v1569 = vmul.f32 %v1553, 3.90625e-05
        %v1570 = vmul.f32 %v1554, 3.90625e-05
        %v1571 = vmul.f32 %v1555, 3.90625e-05
        %v1572 = vadd.f32 %v1556, 0.0
        %v1573 = vadd.f32 %v1557, 0.0
        %v1574 = vadd.f32 %v1558, 0.0
        %v1575 = vadd.f32 %v1559, 0.0
        %v1576 = vadd.f32 %v1560, 0.0
        %v1577 = vadd.f32 %v1561, 0.0
        %v1578 = vadd.f32 %v1562, 0.0
        %v1579 = vadd.f32 %v1563, 0.0
        %v1580 = vadd.f32 %v1564, 0.0
        %v1581 = vadd.f32 %v1565, 0.0
        %v1582 = vadd.f32 %v1566, 0.0
        %v1583 = vadd.f32 %v1567, 0.0
        %v1584 = vadd.f32 %v1568, 0.0
        %v1585 = vadd.f32 %v1569, 0.0
        %v1586 = vadd.f32 %v1570, 0.0
        %v1587 = vadd.f32 %v1571, 0.0
        %v1588 = vld [vmem:[#allocation9] sm:$0xf]
        %v1589 = vld [vmem:[#allocation9 + $0x4] sm:$0xf]
        %v1590 = vld [vmem:[#allocation9 + $0x8] sm:$0xf]
        %v1591 = vld [vmem:[#allocation9 + $0xc] sm:$0xf]
        %v1592 = vld [vmem:[#allocation9 + $0x10] sm:$0xf]
        %v1593 = vld [vmem:[#allocation9 + $0x14] sm:$0xf]
        %v1594 = vld [vmem:[#allocation9 + $0x18] sm:$0xf]
        %v1595 = vld [vmem:[#allocation9 + $0x1c] sm:$0xf]
        %v1596 = vld [vmem:[#allocation9 + $0x20] sm:$0xf]
        %v1597 = vld [vmem:[#allocation9 + $0x24] sm:$0xf]
        %v1598 = vld [vmem:[#allocation9 + $0x28] sm:$0xf]
        %v1599 = vld [vmem:[#allocation9 + $0x2c] sm:$0xf]
        %v1600 = vld [vmem:[#allocation9 + $0x30] sm:$0xf]
        %v1601 = vld [vmem:[#allocation9 + $0x34] sm:$0xf]
        %v1602 = vld [vmem:[#allocation9 + $0x38] sm:$0xf]
        %v1603 = vld [vmem:[#allocation9 + $0x3c] sm:$0xf]
        %v1604 = vpack.c.bf16 %v1461, %v1460
        %v1605 = vpack.c.bf16 %v1463, %v1462
        %v1606 = vpack.c.bf16 %v1465, %v1464
        %v1607 = vpack.c.bf16 %v1467, %v1466
        %v1608 = vpack.c.bf16 %v1469, %v1468
        %v1609 = vpack.c.bf16 %v1471, %v1470
        %v1610 = vpack.c.bf16 %v1473, %v1472
        %v1611 = vpack.c.bf16 %v1475, %v1474
        %v1628 = vunpack.c.l.b16 %v1588
        %v1629 = vunpack.c.l.b16 %v1589
        %v1630 = vunpack.c.l.b16 %v1590
        %v1631 = vunpack.c.l.b16 %v1591
        %v1632 = vunpack.c.l.b16 %v1592
        %v1633 = vunpack.c.l.b16 %v1593
        %v1634 = vunpack.c.l.b16 %v1594
        %v1635 = vunpack.c.l.b16 %v1595
        %v1636 = vunpack.c.l.b16 %v1596
        %v1637 = vunpack.c.l.b16 %v1597
        %v1638 = vunpack.c.l.b16 %v1598
        %v1639 = vunpack.c.l.b16 %v1599
        %v1640 = vunpack.c.l.b16 %v1600
        %v1641 = vunpack.c.l.b16 %v1601
        %v1642 = vunpack.c.l.b16 %v1602
        %v1643 = vunpack.c.l.b16 %v1603
        %v1644 = vpack.c.b16 %v1629, %v1628
        %v1645 = vpack.c.b16 %v1631, %v1630
        %v1646 = vpack.c.b16 %v1633, %v1632
        %v1647 = vpack.c.b16 %v1635, %v1634
        %v1648 = vpack.c.b16 %v1637, %v1636
        %v1649 = vpack.c.b16 %v1639, %v1638
        %v1650 = vpack.c.b16 %v1641, %v1640
        %v1651 = vpack.c.b16 %v1643, %v1642
        %1660 = vmatpush.bf16.msra.mxu0 %v1651
        %1661 = vmatpush.bf16.msra.mxu0 %v1650
        %1662 = vmatpush.bf16.msra.mxu0 %v1649
        %1663 = vmatpush.bf16.msra.mxu0 %v1648
        %1664 = vmatpush.bf16.msra.mxu0 %v1647
        %1665 = vmatpush.bf16.msra.mxu0 %v1646
        %1666 = vmatpush.bf16.msra.mxu0 %v1645
        %1667 = vmatpush.bf16.msra.mxu0 %v1644
        %1668 = vmatmul.bf16.gmra.mxu0 %v1604
        %v1669 = vpop.f32.mrf.mxu0
        %v1670 = vadd.f32 0.0, %v1669
        %v1671 = vpop.f32.mrf.mxu0
        %v1672 = vadd.f32 0.0, %v1671
        %1673 = vmatmul.bf16.gmra.mxu0 %v1605
        %v1674 = vpop.f32.mrf.mxu0
        %v1675 = vadd.f32 0.0, %v1674
        %v1676 = vpop.f32.mrf.mxu0
        %v1677 = vadd.f32 0.0, %v1676
        %1678 = vmatmul.bf16.gmra.mxu0 %v1606
        %v1679 = vpop.f32.mrf.mxu0
        %v1680 = vadd.f32 0.0, %v1679
        %v1681 = vpop.f32.mrf.mxu0
        %v1682 = vadd.f32 0.0, %v1681
        %1683 = vmatmul.bf16.gmra.mxu0 %v1607
        %v1684 = vpop.f32.mrf.mxu0
        %v1685 = vadd.f32 0.0, %v1684
        %v1686 = vpop.f32.mrf.mxu0
        %v1687 = vadd.f32 0.0, %v1686
        %1688 = vmatmul.bf16.gmra.mxu0 %v1608
        %v1689 = vpop.f32.mrf.mxu0
        %v1690 = vadd.f32 0.0, %v1689
        %v1691 = vpop.f32.mrf.mxu0
        %v1692 = vadd.f32 0.0, %v1691
        %1693 = vmatmul.bf16.gmra.mxu0 %v1609
        %v1694 = vpop.f32.mrf.mxu0
        %v1695 = vadd.f32 0.0, %v1694
        %v1696 = vpop.f32.mrf.mxu0
        %v1697 = vadd.f32 0.0, %v1696
        %1698 = vmatmul.bf16.gmra.mxu0 %v1610
        %v1699 = vpop.f32.mrf.mxu0
        %v1700 = vadd.f32 0.0, %v1699
        %v1701 = vpop.f32.mrf.mxu0
        %v1702 = vadd.f32 0.0, %v1701
        %1703 = vmatmul.bf16.gmra.mxu0 %v1611
        %v1704 = vpop.f32.mrf.mxu0
        %v1705 = vadd.f32 0.0, %v1704
        %v1706 = vpop.f32.mrf.mxu0
        %v1707 = vadd.f32 0.0, %v1706
        %1708 = vdwg.mxu0
        %vm1709 = vcmp.ge.f32.partialorder %v1670, 0.0
        %vm1710 = vcmp.ge.f32.partialorder %v1672, 0.0
        %vm1711 = vcmp.ge.f32.partialorder %v1675, 0.0
        %vm1712 = vcmp.ge.f32.partialorder %v1677, 0.0
        %vm1713 = vcmp.ge.f32.partialorder %v1680, 0.0
        %vm1714 = vcmp.ge.f32.partialorder %v1682, 0.0
        %vm1715 = vcmp.ge.f32.partialorder %v1685, 0.0
        %vm1716 = vcmp.ge.f32.partialorder %v1687, 0.0
        %vm1717 = vcmp.ge.f32.partialorder %v1690, 0.0
        %vm1718 = vcmp.ge.f32.partialorder %v1692, 0.0
        %vm1719 = vcmp.ge.f32.partialorder %v1695, 0.0
        %vm1720 = vcmp.ge.f32.partialorder %v1697, 0.0
        %vm1721 = vcmp.ge.f32.partialorder %v1700, 0.0
        %vm1722 = vcmp.ge.f32.partialorder %v1702, 0.0
        %vm1723 = vcmp.ge.f32.partialorder %v1705, 0.0
        %vm1724 = vcmp.ge.f32.partialorder %v1707, 0.0
        %v1725 = vmul.f32 %v1670, 0.01
        %v1726 = vmul.f32 %v1672, 0.01
        %v1727 = vmul.f32 %v1675, 0.01
        %v1728 = vmul.f32 %v1677, 0.01
        %v1729 = vmul.f32 %v1680, 0.01
        %v1730 = vmul.f32 %v1682, 0.01
        %v1731 = vmul.f32 %v1685, 0.01
        %v1732 = vmul.f32 %v1687, 0.01
        %v1733 = vmul.f32 %v1690, 0.01
        %v1734 = vmul.f32 %v1692, 0.01
        %v1735 = vmul.f32 %v1695, 0.01
        %v1736 = vmul.f32 %v1697, 0.01
        %v1737 = vmul.f32 %v1700, 0.01
        %v1738 = vmul.f32 %v1702, 0.01
        %v1739 = vmul.f32 %v1705, 0.01
        %v1740 = vmul.f32 %v1707, 0.01
        %v1741 = vsel %vm1709, %v1670, %v1725
        %v1742 = vsel %vm1710, %v1672, %v1726
        %v1743 = vsel %vm1711, %v1675, %v1727
        %v1744 = vsel %vm1712, %v1677, %v1728
        %v1745 = vsel %vm1713, %v1680, %v1729
        %v1746 = vsel %vm1714, %v1682, %v1730
        %v1747 = vsel %vm1715, %v1685, %v1731
        %v1748 = vsel %vm1716, %v1687, %v1732
        %v1749 = vsel %vm1717, %v1690, %v1733
        %v1750 = vsel %vm1718, %v1692, %v1734
        %v1751 = vsel %vm1719, %v1695, %v1735
        %v1752 = vsel %vm1720, %v1697, %v1736
        %v1753 = vsel %vm1721, %v1700, %v1737
        %v1754 = vsel %vm1722, %v1702, %v1738
        %v1755 = vsel %vm1723, %v1705, %v1739
        %v1756 = vsel %vm1724, %v1707, %v1740
        %v1757 = vsub.f32 %v1741, 50.5
        %v1758 = vsub.f32 %v1742, 50.5
        %v1759 = vsub.f32 %v1743, 50.5
        %v1760 = vsub.f32 %v1744, 50.5
        %v1761 = vsub.f32 %v1745, 50.5
        %v1762 = vsub.f32 %v1746, 50.5
        %v1763 = vsub.f32 %v1747, 50.5
        %v1764 = vsub.f32 %v1748, 50.5
        %v1765 = vsub.f32 %v1749, 50.5
        %v1766 = vsub.f32 %v1750, 50.5
        %v1767 = vsub.f32 %v1751, 50.5
        %v1768 = vsub.f32 %v1752, 50.5
        %v1769 = vsub.f32 %v1753, 50.5
        %v1770 = vsub.f32 %v1754, 50.5
        %v1771 = vsub.f32 %v1755, 50.5
        %v1772 = vsub.f32 %v1756, 50.5
        %v1773 = vmax.f32 %v1757, 0.0
        %v1774 = vmax.f32 %v1758, 0.0
        %v1775 = vmax.f32 %v1759, 0.0
        %v1776 = vmax.f32 %v1760, 0.0
        %v1777 = vmax.f32 %v1761, 0.0
        %v1778 = vmax.f32 %v1762, 0.0
        %v1779 = vmax.f32 %v1763, 0.0
        %v1780 = vmax.f32 %v1764, 0.0
        %v1781 = vmax.f32 %v1765, 0.0
        %v1782 = vmax.f32 %v1766, 0.0
        %v1783 = vmax.f32 %v1767, 0.0
        %v1784 = vmax.f32 %v1768, 0.0
        %v1785 = vmax.f32 %v1769, 0.0
        %v1786 = vmax.f32 %v1770, 0.0
        %v1787 = vmax.f32 %v1771, 0.0
        %v1788 = vmax.f32 %v1772, 0.0
        %v1789 = vsub.f32 -70.5, %v1741
        %v1790 = vsub.f32 -70.5, %v1742
        %v1791 = vsub.f32 -70.5, %v1743
        %v1792 = vsub.f32 -70.5, %v1744
        %v1793 = vsub.f32 -70.5, %v1745
        %v1794 = vsub.f32 -70.5, %v1746
        %v1795 = vsub.f32 -70.5, %v1747
        %v1796 = vsub.f32 -70.5, %v1748
        %v1797 = vsub.f32 -70.5, %v1749
        %v1798 = vsub.f32 -70.5, %v1750
        %v1799 = vsub.f32 -70.5, %v1751
        %v1800 = vsub.f32 -70.5, %v1752
        %v1801 = vsub.f32 -70.5, %v1753
        %v1802 = vsub.f32 -70.5, %v1754
        %v1803 = vsub.f32 -70.5, %v1755
        %v1804 = vsub.f32 -70.5, %v1756
        %v1805 = vmax.f32 %v1789, 0.0
        %v1806 = vmax.f32 %v1790, 0.0
        %v1807 = vmax.f32 %v1791, 0.0
        %v1808 = vmax.f32 %v1792, 0.0
        %v1809 = vmax.f32 %v1793, 0.0
        %v1810 = vmax.f32 %v1794, 0.0
        %v1811 = vmax.f32 %v1795, 0.0
        %v1812 = vmax.f32 %v1796, 0.0
        %v1813 = vmax.f32 %v1797, 0.0
        %v1814 = vmax.f32 %v1798, 0.0
        %v1815 = vmax.f32 %v1799, 0.0
        %v1816 = vmax.f32 %v1800, 0.0
        %v1817 = vmax.f32 %v1801, 0.0
        %v1818 = vmax.f32 %v1802, 0.0
        %v1819 = vmax.f32 %v1803, 0.0
        %v1820 = vmax.f32 %v1804, 0.0
        %v1821 = vadd.f32 %v1773, %v1805
        %v1822 = vadd.f32 %v1774, %v1806
        %v1823 = vadd.f32 %v1775, %v1807
        %v1824 = vadd.f32 %v1776, %v1808
        %v1825 = vadd.f32 %v1777, %v1809
        %v1826 = vadd.f32 %v1778, %v1810
        %v1827 = vadd.f32 %v1779, %v1811
        %v1828 = vadd.f32 %v1780, %v1812
        %v1829 = vadd.f32 %v1781, %v1813
        %v1830 = vadd.f32 %v1782, %v1814
        %v1831 = vadd.f32 %v1783, %v1815
        %v1832 = vadd.f32 %v1784, %v1816
        %v1833 = vadd.f32 %v1785, %v1817
        %v1834 = vadd.f32 %v1786, %v1818
        %v1835 = vadd.f32 %v1787, %v1819
        %v1836 = vadd.f32 %v1788, %v1820
        %v1837 = vmul.f32 %v1821, 7.8125e-05
        %v1838 = vmul.f32 %v1822, 7.8125e-05
        %v1839 = vmul.f32 %v1823, 7.8125e-05
        %v1840 = vmul.f32 %v1824, 7.8125e-05
        %v1841 = vmul.f32 %v1825, 7.8125e-05
        %v1842 = vmul.f32 %v1826, 7.8125e-05
        %v1843 = vmul.f32 %v1827, 7.8125e-05
        %v1844 = vmul.f32 %v1828, 7.8125e-05
        %v1845 = vmul.f32 %v1829, 7.8125e-05
        %v1846 = vmul.f32 %v1830, 7.8125e-05
        %v1847 = vmul.f32 %v1831, 7.8125e-05
        %v1848 = vmul.f32 %v1832, 7.8125e-05
        %v1849 = vmul.f32 %v1833, 7.8125e-05
        %v1850 = vmul.f32 %v1834, 7.8125e-05
        %v1851 = vmul.f32 %v1835, 7.8125e-05
        %v1852 = vmul.f32 %v1836, 7.8125e-05
        %v1853 = vadd.f32 %v1572, %v1837
        %v1854 = vadd.f32 %v1573, %v1838
        %v1855 = vadd.f32 %v1574, %v1839
        %v1856 = vadd.f32 %v1575, %v1840
        %v1857 = vadd.f32 %v1576, %v1841
        %v1858 = vadd.f32 %v1577, %v1842
        %v1859 = vadd.f32 %v1578, %v1843
        %v1860 = vadd.f32 %v1579, %v1844
        %v1861 = vadd.f32 %v1580, %v1845
        %v1862 = vadd.f32 %v1581, %v1846
        %v1863 = vadd.f32 %v1582, %v1847
        %v1864 = vadd.f32 %v1583, %v1848
        %v1865 = vadd.f32 %v1584, %v1849
        %v1866 = vadd.f32 %v1585, %v1850
        %v1867 = vadd.f32 %v1586, %v1851
        %v1868 = vadd.f32 %v1587, %v1852
        %s1869 = scalar_lea.vmem [#allocation9], 64
        %v1870 = vld [vmem:[%s1869] sm:$0xf]
        %v1871 = vld [vmem:[%s1869 + $0x4] sm:$0xf]
        %v1872 = vld [vmem:[%s1869 + $0x8] sm:$0xf]
        %v1873 = vld [vmem:[%s1869 + $0xc] sm:$0xf]
        %v1874 = vld [vmem:[%s1869 + $0x10] sm:$0xf]
        %v1875 = vld [vmem:[%s1869 + $0x14] sm:$0xf]
        %v1876 = vld [vmem:[%s1869 + $0x18] sm:$0xf]
        %v1877 = vld [vmem:[%s1869 + $0x1c] sm:$0xf]
        %v1878 = vld [vmem:[%s1869 + $0x20] sm:$0xf]
        %v1879 = vld [vmem:[%s1869 + $0x24] sm:$0xf]
        %v1880 = vld [vmem:[%s1869 + $0x28] sm:$0xf]
        %v1881 = vld [vmem:[%s1869 + $0x2c] sm:$0xf]
        %v1882 = vld [vmem:[%s1869 + $0x30] sm:$0xf]
        %v1883 = vld [vmem:[%s1869 + $0x34] sm:$0xf]
        %v1884 = vld [vmem:[%s1869 + $0x38] sm:$0xf]
        %v1885 = vld [vmem:[%s1869 + $0x3c] sm:$0xf]
        %v1886 = vpack.c.bf16 %v1742, %v1741
        %v1887 = vpack.c.bf16 %v1744, %v1743
        %v1888 = vpack.c.bf16 %v1746, %v1745
        %v1889 = vpack.c.bf16 %v1748, %v1747
        %v1890 = vpack.c.bf16 %v1750, %v1749
        %v1891 = vpack.c.bf16 %v1752, %v1751
        %v1892 = vpack.c.bf16 %v1754, %v1753
        %v1893 = vpack.c.bf16 %v1756, %v1755
        %v1910 = vunpack.c.l.b16 %v1870
        %v1911 = vunpack.c.l.b16 %v1871
        %v1912 = vunpack.c.l.b16 %v1872
        %v1913 = vunpack.c.l.b16 %v1873
        %v1914 = vunpack.c.l.b16 %v1874
        %v1915 = vunpack.c.l.b16 %v1875
        %v1916 = vunpack.c.l.b16 %v1876
        %v1917 = vunpack.c.l.b16 %v1877
        %v1918 = vunpack.c.l.b16 %v1878
        %v1919 = vunpack.c.l.b16 %v1879
        %v1920 = vunpack.c.l.b16 %v1880
        %v1921 = vunpack.c.l.b16 %v1881
        %v1922 = vunpack.c.l.b16 %v1882
        %v1923 = vunpack.c.l.b16 %v1883
        %v1924 = vunpack.c.l.b16 %v1884
        %v1925 = vunpack.c.l.b16 %v1885
        %v1926 = vpack.c.b16 %v1911, %v1910
        %v1927 = vpack.c.b16 %v1913, %v1912
        %v1928 = vpack.c.b16 %v1915, %v1914
        %v1929 = vpack.c.b16 %v1917, %v1916
        %v1930 = vpack.c.b16 %v1919, %v1918
        %v1931 = vpack.c.b16 %v1921, %v1920
        %v1932 = vpack.c.b16 %v1923, %v1922
        %v1933 = vpack.c.b16 %v1925, %v1924
        %1942 = vmatpush.bf16.msra.mxu0 %v1933
        %1943 = vmatpush.bf16.msra.mxu0 %v1932
        %1944 = vmatpush.bf16.msra.mxu0 %v1931
        %1945 = vmatpush.bf16.msra.mxu0 %v1930
        %1946 = vmatpush.bf16.msra.mxu0 %v1929
        %1947 = vmatpush.bf16.msra.mxu0 %v1928
        %1948 = vmatpush.bf16.msra.mxu0 %v1927
        %1949 = vmatpush.bf16.msra.mxu0 %v1926
        %1950 = vmatmul.bf16.gmra.mxu0 %v1886
        %v1951 = vpop.f32.mrf.mxu0
        %v1952 = vadd.f32 0.0, %v1951
        %v1953 = vpop.f32.mrf.mxu0
        %v1954 = vadd.f32 0.0, %v1953
        %1955 = vmatmul.bf16.gmra.mxu0 %v1887
        %v1956 = vpop.f32.mrf.mxu0
        %v1957 = vadd.f32 0.0, %v1956
        %v1958 = vpop.f32.mrf.mxu0
        %v1959 = vadd.f32 0.0, %v1958
        %1960 = vmatmul.bf16.gmra.mxu0 %v1888
        %v1961 = vpop.f32.mrf.mxu0
        %v1962 = vadd.f32 0.0, %v1961
        %v1963 = vpop.f32.mrf.mxu0
        %v1964 = vadd.f32 0.0, %v1963
        %1965 = vmatmul.bf16.gmra.mxu0 %v1889
        %v1966 = vpop.f32.mrf.mxu0
        %v1967 = vadd.f32 0.0, %v1966
        %v1968 = vpop.f32.mrf.mxu0
        %v1969 = vadd.f32 0.0, %v1968
        %1970 = vmatmul.bf16.gmra.mxu0 %v1890
        %v1971 = vpop.f32.mrf.mxu0
        %v1972 = vadd.f32 0.0, %v1971
        %v1973 = vpop.f32.mrf.mxu0
        %v1974 = vadd.f32 0.0, %v1973
        %1975 = vmatmul.bf16.gmra.mxu0 %v1891
        %v1976 = vpop.f32.mrf.mxu0
        %v1977 = vadd.f32 0.0, %v1976
        %v1978 = vpop.f32.mrf.mxu0
        %v1979 = vadd.f32 0.0, %v1978
        %1980 = vmatmul.bf16.gmra.mxu0 %v1892
        %v1981 = vpop.f32.mrf.mxu0
        %v1982 = vadd.f32 0.0, %v1981
        %v1983 = vpop.f32.mrf.mxu0
        %v1984 = vadd.f32 0.0, %v1983
        %1985 = vmatmul.bf16.gmra.mxu0 %v1893
        %v1986 = vpop.f32.mrf.mxu0
        %v1987 = vadd.f32 0.0, %v1986
        %v1988 = vpop.f32.mrf.mxu0
        %v1989 = vadd.f32 0.0, %v1988
        %1990 = vdwg.mxu0
        %vm1991 = vcmp.ge.f32.partialorder %v1952, 0.0
        %vm1992 = vcmp.ge.f32.partialorder %v1954, 0.0
        %vm1993 = vcmp.ge.f32.partialorder %v1957, 0.0
        %vm1994 = vcmp.ge.f32.partialorder %v1959, 0.0
        %vm1995 = vcmp.ge.f32.partialorder %v1962, 0.0
        %vm1996 = vcmp.ge.f32.partialorder %v1964, 0.0
        %vm1997 = vcmp.ge.f32.partialorder %v1967, 0.0
        %vm1998 = vcmp.ge.f32.partialorder %v1969, 0.0
        %vm1999 = vcmp.ge.f32.partialorder %v1972, 0.0
        %vm2000 = vcmp.ge.f32.partialorder %v1974, 0.0
        %vm2001 = vcmp.ge.f32.partialorder %v1977, 0.0
        %vm2002 = vcmp.ge.f32.partialorder %v1979, 0.0
        %vm2003 = vcmp.ge.f32.partialorder %v1982, 0.0
        %vm2004 = vcmp.ge.f32.partialorder %v1984, 0.0
        %vm2005 = vcmp.ge.f32.partialorder %v1987, 0.0
        %vm2006 = vcmp.ge.f32.partialorder %v1989, 0.0
        %v2007 = vmul.f32 %v1952, 0.01
        %v2008 = vmul.f32 %v1954, 0.01
        %v2009 = vmul.f32 %v1957, 0.01
        %v2010 = vmul.f32 %v1959, 0.01
        %v2011 = vmul.f32 %v1962, 0.01
        %v2012 = vmul.f32 %v1964, 0.01
        %v2013 = vmul.f32 %v1967, 0.01
        %v2014 = vmul.f32 %v1969, 0.01
        %v2015 = vmul.f32 %v1972, 0.01
        %v2016 = vmul.f32 %v1974, 0.01
        %v2017 = vmul.f32 %v1977, 0.01
        %v2018 = vmul.f32 %v1979, 0.01
        %v2019 = vmul.f32 %v1982, 0.01
        %v2020 = vmul.f32 %v1984, 0.01
        %v2021 = vmul.f32 %v1987, 0.01
        %v2022 = vmul.f32 %v1989, 0.01
        %v2023 = vsel %vm1991, %v1952, %v2007
        %v2024 = vsel %vm1992, %v1954, %v2008
        %v2025 = vsel %vm1993, %v1957, %v2009
        %v2026 = vsel %vm1994, %v1959, %v2010
        %v2027 = vsel %vm1995, %v1962, %v2011
        %v2028 = vsel %vm1996, %v1964, %v2012
        %v2029 = vsel %vm1997, %v1967, %v2013
        %v2030 = vsel %vm1998, %v1969, %v2014
        %v2031 = vsel %vm1999, %v1972, %v2015
        %v2032 = vsel %vm2000, %v1974, %v2016
        %v2033 = vsel %vm2001, %v1977, %v2017
        %v2034 = vsel %vm2002, %v1979, %v2018
        %v2035 = vsel %vm2003, %v1982, %v2019
        %v2036 = vsel %vm2004, %v1984, %v2020
        %v2037 = vsel %vm2005, %v1987, %v2021
        %v2038 = vsel %vm2006, %v1989, %v2022
        %v2039 = vsub.f32 %v2023, 50.5
        %v2040 = vsub.f32 %v2024, 50.5
        %v2041 = vsub.f32 %v2025, 50.5
        %v2042 = vsub.f32 %v2026, 50.5
        %v2043 = vsub.f32 %v2027, 50.5
        %v2044 = vsub.f32 %v2028, 50.5
        %v2045 = vsub.f32 %v2029, 50.5
        %v2046 = vsub.f32 %v2030, 50.5
        %v2047 = vsub.f32 %v2031, 50.5
        %v2048 = vsub.f32 %v2032, 50.5
        %v2049 = vsub.f32 %v2033, 50.5
        %v2050 = vsub.f32 %v2034, 50.5
        %v2051 = vsub.f32 %v2035, 50.5
        %v2052 = vsub.f32 %v2036, 50.5
        %v2053 = vsub.f32 %v2037, 50.5
        %v2054 = vsub.f32 %v2038, 50.5
        %v2055 = vmax.f32 %v2039, 0.0
        %v2056 = vmax.f32 %v2040, 0.0
        %v2057 = vmax.f32 %v2041, 0.0
        %v2058 = vmax.f32 %v2042, 0.0
        %v2059 = vmax.f32 %v2043, 0.0
        %v2060 = vmax.f32 %v2044, 0.0
        %v2061 = vmax.f32 %v2045, 0.0
        %v2062 = vmax.f32 %v2046, 0.0
        %v2063 = vmax.f32 %v2047, 0.0
        %v2064 = vmax.f32 %v2048, 0.0
        %v2065 = vmax.f32 %v2049, 0.0
        %v2066 = vmax.f32 %v2050, 0.0
        %v2067 = vmax.f32 %v2051, 0.0
        %v2068 = vmax.f32 %v2052, 0.0
        %v2069 = vmax.f32 %v2053, 0.0
        %v2070 = vmax.f32 %v2054, 0.0
        %v2071 = vsub.f32 -70.5, %v2023
        %v2072 = vsub.f32 -70.5, %v2024
        %v2073 = vsub.f32 -70.5, %v2025
        %v2074 = vsub.f32 -70.5, %v2026
        %v2075 = vsub.f32 -70.5, %v2027
        %v2076 = vsub.f32 -70.5, %v2028
        %v2077 = vsub.f32 -70.5, %v2029
        %v2078 = vsub.f32 -70.5, %v2030
        %v2079 = vsub.f32 -70.5, %v2031
        %v2080 = vsub.f32 -70.5, %v2032
        %v2081 = vsub.f32 -70.5, %v2033
        %v2082 = vsub.f32 -70.5, %v2034
        %v2083 = vsub.f32 -70.5, %v2035
        %v2084 = vsub.f32 -70.5, %v2036
        %v2085 = vsub.f32 -70.5, %v2037
        %v2086 = vsub.f32 -70.5, %v2038
        %v2087 = vmax.f32 %v2071, 0.0
        %v2088 = vmax.f32 %v2072, 0.0
        %v2089 = vmax.f32 %v2073, 0.0
        %v2090 = vmax.f32 %v2074, 0.0
        %v2091 = vmax.f32 %v2075, 0.0
        %v2092 = vmax.f32 %v2076, 0.0
        %v2093 = vmax.f32 %v2077, 0.0
        %v2094 = vmax.f32 %v2078, 0.0
        %v2095 = vmax.f32 %v2079, 0.0
        %v2096 = vmax.f32 %v2080, 0.0
        %v2097 = vmax.f32 %v2081, 0.0
        %v2098 = vmax.f32 %v2082, 0.0
        %v2099 = vmax.f32 %v2083, 0.0
        %v2100 = vmax.f32 %v2084, 0.0
        %v2101 = vmax.f32 %v2085, 0.0
        %v2102 = vmax.f32 %v2086, 0.0
        %v2103 = vadd.f32 %v2055, %v2087
        %v2104 = vadd.f32 %v2056, %v2088
        %v2105 = vadd.f32 %v2057, %v2089
        %v2106 = vadd.f32 %v2058, %v2090
        %v2107 = vadd.f32 %v2059, %v2091
        %v2108 = vadd.f32 %v2060, %v2092
        %v2109 = vadd.f32 %v2061, %v2093
        %v2110 = vadd.f32 %v2062, %v2094
        %v2111 = vadd.f32 %v2063, %v2095
        %v2112 = vadd.f32 %v2064, %v2096
        %v2113 = vadd.f32 %v2065, %v2097
        %v2114 = vadd.f32 %v2066, %v2098
        %v2115 = vadd.f32 %v2067, %v2099
        %v2116 = vadd.f32 %v2068, %v2100
        %v2117 = vadd.f32 %v2069, %v2101
        %v2118 = vadd.f32 %v2070, %v2102
        %v2119 = vmul.f32 %v2103, 0.00015625
        %v2120 = vmul.f32 %v2104, 0.00015625
        %v2121 = vmul.f32 %v2105, 0.00015625
        %v2122 = vmul.f32 %v2106, 0.00015625
        %v2123 = vmul.f32 %v2107, 0.00015625
        %v2124 = vmul.f32 %v2108, 0.00015625
        %v2125 = vmul.f32 %v2109, 0.00015625
        %v2126 = vmul.f32 %v2110, 0.00015625
        %v2127 = vmul.f32 %v2111, 0.00015625
        %v2128 = vmul.f32 %v2112, 0.00015625
        %v2129 = vmul.f32 %v2113, 0.00015625
        %v2130 = vmul.f32 %v2114, 0.00015625
        %v2131 = vmul.f32 %v2115, 0.00015625
        %v2132 = vmul.f32 %v2116, 0.00015625
        %v2133 = vmul.f32 %v2117, 0.00015625
        %v2134 = vmul.f32 %v2118, 0.00015625
        %v2135 = vadd.f32 %v1853, %v2119
        %v2136 = vadd.f32 %v1854, %v2120
        %v2137 = vadd.f32 %v1855, %v2121
        %v2138 = vadd.f32 %v1856, %v2122
        %v2139 = vadd.f32 %v1857, %v2123
        %v2140 = vadd.f32 %v1858, %v2124
        %v2141 = vadd.f32 %v1859, %v2125
        %v2142 = vadd.f32 %v1860, %v2126
        %v2143 = vadd.f32 %v1861, %v2127
        %v2144 = vadd.f32 %v1862, %v2128
        %v2145 = vadd.f32 %v1863, %v2129
        %v2146 = vadd.f32 %v1864, %v2130
        %v2147 = vadd.f32 %v1865, %v2131
        %v2148 = vadd.f32 %v1866, %v2132
        %v2149 = vadd.f32 %v1867, %v2133
        %v2150 = vadd.f32 %v1868, %v2134
        %s2151 = scalar_lea.vmem [#allocation9], 128
        %v2152 = vld [vmem:[%s2151] sm:$0xf]
        %v2153 = vld [vmem:[%s2151 + $0x4] sm:$0xf]
        %v2154 = vld [vmem:[%s2151 + $0x8] sm:$0xf]
        %v2155 = vld [vmem:[%s2151 + $0xc] sm:$0xf]
        %v2156 = vld [vmem:[%s2151 + $0x10] sm:$0xf]
        %v2157 = vld [vmem:[%s2151 + $0x14] sm:$0xf]
        %v2158 = vld [vmem:[%s2151 + $0x18] sm:$0xf]
        %v2159 = vld [vmem:[%s2151 + $0x1c] sm:$0xf]
        %v2160 = vld [vmem:[%s2151 + $0x20] sm:$0xf]
        %v2161 = vld [vmem:[%s2151 + $0x24] sm:$0xf]
        %v2162 = vld [vmem:[%s2151 + $0x28] sm:$0xf]
        %v2163 = vld [vmem:[%s2151 + $0x2c] sm:$0xf]
        %v2164 = vld [vmem:[%s2151 + $0x30] sm:$0xf]
        %v2165 = vld [vmem:[%s2151 + $0x34] sm:$0xf]
        %v2166 = vld [vmem:[%s2151 + $0x38] sm:$0xf]
        %v2167 = vld [vmem:[%s2151 + $0x3c] sm:$0xf]
        %v2168 = vpack.c.bf16 %v2024, %v2023
        %v2169 = vpack.c.bf16 %v2026, %v2025
        %v2170 = vpack.c.bf16 %v2028, %v2027
        %v2171 = vpack.c.bf16 %v2030, %v2029
        %v2172 = vpack.c.bf16 %v2032, %v2031
        %v2173 = vpack.c.bf16 %v2034, %v2033
        %v2174 = vpack.c.bf16 %v2036, %v2035
        %v2175 = vpack.c.bf16 %v2038, %v2037
        %v2192 = vunpack.c.l.b16 %v2152
        %v2193 = vunpack.c.l.b16 %v2153
        %v2194 = vunpack.c.l.b16 %v2154
        %v2195 = vunpack.c.l.b16 %v2155
        %v2196 = vunpack.c.l.b16 %v2156
        %v2197 = vunpack.c.l.b16 %v2157
        %v2198 = vunpack.c.l.b16 %v2158
        %v2199 = vunpack.c.l.b16 %v2159
        %v2200 = vunpack.c.l.b16 %v2160
        %v2201 = vunpack.c.l.b16 %v2161
        %v2202 = vunpack.c.l.b16 %v2162
        %v2203 = vunpack.c.l.b16 %v2163
        %v2204 = vunpack.c.l.b16 %v2164
        %v2205 = vunpack.c.l.b16 %v2165
        %v2206 = vunpack.c.l.b16 %v2166
        %v2207 = vunpack.c.l.b16 %v2167
        %v2208 = vpack.c.b16 %v2193, %v2192
        %v2209 = vpack.c.b16 %v2195, %v2194
        %v2210 = vpack.c.b16 %v2197, %v2196
        %v2211 = vpack.c.b16 %v2199, %v2198
        %v2212 = vpack.c.b16 %v2201, %v2200
        %v2213 = vpack.c.b16 %v2203, %v2202
        %v2214 = vpack.c.b16 %v2205, %v2204
        %v2215 = vpack.c.b16 %v2207, %v2206
        %2224 = vmatpush.bf16.msra.mxu0 %v2215
        %2225 = vmatpush.bf16.msra.mxu0 %v2214
        %2226 = vmatpush.bf16.msra.mxu0 %v2213
        %2227 = vmatpush.bf16.msra.mxu0 %v2212
        %2228 = vmatpush.bf16.msra.mxu0 %v2211
        %2229 = vmatpush.bf16.msra.mxu0 %v2210
        %2230 = vmatpush.bf16.msra.mxu0 %v2209
        %2231 = vmatpush.bf16.msra.mxu0 %v2208
        %2232 = vmatmul.bf16.gmra.mxu0 %v2168
        %v2233 = vpop.f32.mrf.mxu0
        %v2234 = vadd.f32 0.0, %v2233
        %v2235 = vpop.f32.mrf.mxu0
        %v2236 = vadd.f32 0.0, %v2235
        %2237 = vmatmul.bf16.gmra.mxu0 %v2169
        %v2238 = vpop.f32.mrf.mxu0
        %v2239 = vadd.f32 0.0, %v2238
        %v2240 = vpop.f32.mrf.mxu0
        %v2241 = vadd.f32 0.0, %v2240
        %2242 = vmatmul.bf16.gmra.mxu0 %v2170
        %v2243 = vpop.f32.mrf.mxu0
        %v2244 = vadd.f32 0.0, %v2243
        %v2245 = vpop.f32.mrf.mxu0
        %v2246 = vadd.f32 0.0, %v2245
        %2247 = vmatmul.bf16.gmra.mxu0 %v2171
        %v2248 = vpop.f32.mrf.mxu0
        %v2249 = vadd.f32 0.0, %v2248
        %v2250 = vpop.f32.mrf.mxu0
        %v2251 = vadd.f32 0.0, %v2250
        %2252 = vmatmul.bf16.gmra.mxu0 %v2172
        %v2253 = vpop.f32.mrf.mxu0
        %v2254 = vadd.f32 0.0, %v2253
        %v2255 = vpop.f32.mrf.mxu0
        %v2256 = vadd.f32 0.0, %v2255
        %2257 = vmatmul.bf16.gmra.mxu0 %v2173
        %v2258 = vpop.f32.mrf.mxu0
        %v2259 = vadd.f32 0.0, %v2258
        %v2260 = vpop.f32.mrf.mxu0
        %v2261 = vadd.f32 0.0, %v2260
        %2262 = vmatmul.bf16.gmra.mxu0 %v2174
        %v2263 = vpop.f32.mrf.mxu0
        %v2264 = vadd.f32 0.0, %v2263
        %v2265 = vpop.f32.mrf.mxu0
        %v2266 = vadd.f32 0.0, %v2265
        %2267 = vmatmul.bf16.gmra.mxu0 %v2175
        %v2268 = vpop.f32.mrf.mxu0
        %v2269 = vadd.f32 0.0, %v2268
        %v2270 = vpop.f32.mrf.mxu0
        %v2271 = vadd.f32 0.0, %v2270
        %2272 = vdwg.mxu0
        %vm2273 = vcmp.ge.f32.partialorder %v2234, 0.0
        %vm2274 = vcmp.ge.f32.partialorder %v2236, 0.0
        %vm2275 = vcmp.ge.f32.partialorder %v2239, 0.0
        %vm2276 = vcmp.ge.f32.partialorder %v2241, 0.0
        %vm2277 = vcmp.ge.f32.partialorder %v2244, 0.0
        %vm2278 = vcmp.ge.f32.partialorder %v2246, 0.0
        %vm2279 = vcmp.ge.f32.partialorder %v2249, 0.0
        %vm2280 = vcmp.ge.f32.partialorder %v2251, 0.0
        %vm2281 = vcmp.ge.f32.partialorder %v2254, 0.0
        %vm2282 = vcmp.ge.f32.partialorder %v2256, 0.0
        %vm2283 = vcmp.ge.f32.partialorder %v2259, 0.0
        %vm2284 = vcmp.ge.f32.partialorder %v2261, 0.0
        %vm2285 = vcmp.ge.f32.partialorder %v2264, 0.0
        %vm2286 = vcmp.ge.f32.partialorder %v2266, 0.0
        %vm2287 = vcmp.ge.f32.partialorder %v2269, 0.0
        %vm2288 = vcmp.ge.f32.partialorder %v2271, 0.0
        %v2289 = vmul.f32 %v2234, 0.01
        %v2290 = vmul.f32 %v2236, 0.01
        %v2291 = vmul.f32 %v2239, 0.01
        %v2292 = vmul.f32 %v2241, 0.01
        %v2293 = vmul.f32 %v2244, 0.01
        %v2294 = vmul.f32 %v2246, 0.01
        %v2295 = vmul.f32 %v2249, 0.01
        %v2296 = vmul.f32 %v2251, 0.01
        %v2297 = vmul.f32 %v2254, 0.01
        %v2298 = vmul.f32 %v2256, 0.01
        %v2299 = vmul.f32 %v2259, 0.01
        %v2300 = vmul.f32 %v2261, 0.01
        %v2301 = vmul.f32 %v2264, 0.01
        %v2302 = vmul.f32 %v2266, 0.01
        %v2303 = vmul.f32 %v2269, 0.01
        %v2304 = vmul.f32 %v2271, 0.01
        %v2305 = vsel %vm2273, %v2234, %v2289
        %v2306 = vsel %vm2274, %v2236, %v2290
        %v2307 = vsel %vm2275, %v2239, %v2291
        %v2308 = vsel %vm2276, %v2241, %v2292
        %v2309 = vsel %vm2277, %v2244, %v2293
        %v2310 = vsel %vm2278, %v2246, %v2294
        %v2311 = vsel %vm2279, %v2249, %v2295
        %v2312 = vsel %vm2280, %v2251, %v2296
        %v2313 = vsel %vm2281, %v2254, %v2297
        %v2314 = vsel %vm2282, %v2256, %v2298
        %v2315 = vsel %vm2283, %v2259, %v2299
        %v2316 = vsel %vm2284, %v2261, %v2300
        %v2317 = vsel %vm2285, %v2264, %v2301
        %v2318 = vsel %vm2286, %v2266, %v2302
        %v2319 = vsel %vm2287, %v2269, %v2303
        %v2320 = vsel %vm2288, %v2271, %v2304
        %v2321 = vsub.f32 %v2305, 50.5
        %v2322 = vsub.f32 %v2306, 50.5
        %v2323 = vsub.f32 %v2307, 50.5
        %v2324 = vsub.f32 %v2308, 50.5
        %v2325 = vsub.f32 %v2309, 50.5
        %v2326 = vsub.f32 %v2310, 50.5
        %v2327 = vsub.f32 %v2311, 50.5
        %v2328 = vsub.f32 %v2312, 50.5
        %v2329 = vsub.f32 %v2313, 50.5
        %v2330 = vsub.f32 %v2314, 50.5
        %v2331 = vsub.f32 %v2315, 50.5
        %v2332 = vsub.f32 %v2316, 50.5
        %v2333 = vsub.f32 %v2317, 50.5
        %v2334 = vsub.f32 %v2318, 50.5
        %v2335 = vsub.f32 %v2319, 50.5
        %v2336 = vsub.f32 %v2320, 50.5
        %v2337 = vmax.f32 %v2321, 0.0
        %v2338 = vmax.f32 %v2322, 0.0
        %v2339 = vmax.f32 %v2323, 0.0
        %v2340 = vmax.f32 %v2324, 0.0
        %v2341 = vmax.f32 %v2325, 0.0
        %v2342 = vmax.f32 %v2326, 0.0
        %v2343 = vmax.f32 %v2327, 0.0
        %v2344 = vmax.f32 %v2328, 0.0
        %v2345 = vmax.f32 %v2329, 0.0
        %v2346 = vmax.f32 %v2330, 0.0
        %v2347 = vmax.f32 %v2331, 0.0
        %v2348 = vmax.f32 %v2332, 0.0
        %v2349 = vmax.f32 %v2333, 0.0
        %v2350 = vmax.f32 %v2334, 0.0
        %v2351 = vmax.f32 %v2335, 0.0
        %v2352 = vmax.f32 %v2336, 0.0
        %v2353 = vsub.f32 -70.5, %v2305
        %v2354 = vsub.f32 -70.5, %v2306
        %v2355 = vsub.f32 -70.5, %v2307
        %v2356 = vsub.f32 -70.5, %v2308
        %v2357 = vsub.f32 -70.5, %v2309
        %v2358 = vsub.f32 -70.5, %v2310
        %v2359 = vsub.f32 -70.5, %v2311
        %v2360 = vsub.f32 -70.5, %v2312
        %v2361 = vsub.f32 -70.5, %v2313
        %v2362 = vsub.f32 -70.5, %v2314
        %v2363 = vsub.f32 -70.5, %v2315
        %v2364 = vsub.f32 -70.5, %v2316
        %v2365 = vsub.f32 -70.5, %v2317
        %v2366 = vsub.f32 -70.5, %v2318
        %v2367 = vsub.f32 -70.5, %v2319
        %v2368 = vsub.f32 -70.5, %v2320
        %v2369 = vmax.f32 %v2353, 0.0
        %v2370 = vmax.f32 %v2354, 0.0
        %v2371 = vmax.f32 %v2355, 0.0
        %v2372 = vmax.f32 %v2356, 0.0
        %v2373 = vmax.f32 %v2357, 0.0
        %v2374 = vmax.f32 %v2358, 0.0
        %v2375 = vmax.f32 %v2359, 0.0
        %v2376 = vmax.f32 %v2360, 0.0
        %v2377 = vmax.f32 %v2361, 0.0
        %v2378 = vmax.f32 %v2362, 0.0
        %v2379 = vmax.f32 %v2363, 0.0
        %v2380 = vmax.f32 %v2364, 0.0
        %v2381 = vmax.f32 %v2365, 0.0
        %v2382 = vmax.f32 %v2366, 0.0
        %v2383 = vmax.f32 %v2367, 0.0
        %v2384 = vmax.f32 %v2368, 0.0
        %v2385 = vadd.f32 %v2337, %v2369
        %v2386 = vadd.f32 %v2338, %v2370
        %v2387 = vadd.f32 %v2339, %v2371
        %v2388 = vadd.f32 %v2340, %v2372
        %v2389 = vadd.f32 %v2341, %v2373
        %v2390 = vadd.f32 %v2342, %v2374
        %v2391 = vadd.f32 %v2343, %v2375
        %v2392 = vadd.f32 %v2344, %v2376
        %v2393 = vadd.f32 %v2345, %v2377
        %v2394 = vadd.f32 %v2346, %v2378
        %v2395 = vadd.f32 %v2347, %v2379
        %v2396 = vadd.f32 %v2348, %v2380
        %v2397 = vadd.f32 %v2349, %v2381
        %v2398 = vadd.f32 %v2350, %v2382
        %v2399 = vadd.f32 %v2351, %v2383
        %v2400 = vadd.f32 %v2352, %v2384
        %v2401 = vmul.f32 %v2385, 0.0003125
        %v2402 = vmul.f32 %v2386, 0.0003125
        %v2403 = vmul.f32 %v2387, 0.0003125
        %v2404 = vmul.f32 %v2388, 0.0003125
        %v2405 = vmul.f32 %v2389, 0.0003125
        %v2406 = vmul.f32 %v2390, 0.0003125
        %v2407 = vmul.f32 %v2391, 0.0003125
        %v2408 = vmul.f32 %v2392, 0.0003125
        %v2409 = vmul.f32 %v2393, 0.0003125
        %v2410 = vmul.f32 %v2394, 0.0003125
        %v2411 = vmul.f32 %v2395, 0.0003125
        %v2412 = vmul.f32 %v2396, 0.0003125
        %v2413 = vmul.f32 %v2397, 0.0003125
        %v2414 = vmul.f32 %v2398, 0.0003125
        %v2415 = vmul.f32 %v2399, 0.0003125
        %v2416 = vmul.f32 %v2400, 0.0003125
        %v2417 = vadd.f32 %v2135, %v2401
        %v2418 = vadd.f32 %v2136, %v2402
        %v2419 = vadd.f32 %v2137, %v2403
        %v2420 = vadd.f32 %v2138, %v2404
        %v2421 = vadd.f32 %v2139, %v2405
        %v2422 = vadd.f32 %v2140, %v2406
        %v2423 = vadd.f32 %v2141, %v2407
        %v2424 = vadd.f32 %v2142, %v2408
        %v2425 = vadd.f32 %v2143, %v2409
        %v2426 = vadd.f32 %v2144, %v2410
        %v2427 = vadd.f32 %v2145, %v2411
        %v2428 = vadd.f32 %v2146, %v2412
        %v2429 = vadd.f32 %v2147, %v2413
        %v2430 = vadd.f32 %v2148, %v2414
        %v2431 = vadd.f32 %v2149, %v2415
        %v2432 = vadd.f32 %v2150, %v2416
        %s2433 = scalar_lea.vmem [#allocation9], 192
        %v2434 = vld [vmem:[%s2433] sm:$0xf]
        %v2435 = vld [vmem:[%s2433 + $0x4] sm:$0xf]
        %v2436 = vld [vmem:[%s2433 + $0x8] sm:$0xf]
        %v2437 = vld [vmem:[%s2433 + $0xc] sm:$0xf]
        %v2438 = vld [vmem:[%s2433 + $0x10] sm:$0xf]
        %v2439 = vld [vmem:[%s2433 + $0x14] sm:$0xf]
        %v2440 = vld [vmem:[%s2433 + $0x18] sm:$0xf]
        %v2441 = vld [vmem:[%s2433 + $0x1c] sm:$0xf]
        %v2442 = vld [vmem:[%s2433 + $0x20] sm:$0xf]
        %v2443 = vld [vmem:[%s2433 + $0x24] sm:$0xf]
        %v2444 = vld [vmem:[%s2433 + $0x28] sm:$0xf]
        %v2445 = vld [vmem:[%s2433 + $0x2c] sm:$0xf]
        %v2446 = vld [vmem:[%s2433 + $0x30] sm:$0xf]
        %v2447 = vld [vmem:[%s2433 + $0x34] sm:$0xf]
        %v2448 = vld [vmem:[%s2433 + $0x38] sm:$0xf]
        %v2449 = vld [vmem:[%s2433 + $0x3c] sm:$0xf]
        %v2450 = vpack.c.bf16 %v2306, %v2305
        %v2451 = vpack.c.bf16 %v2308, %v2307
        %v2452 = vpack.c.bf16 %v2310, %v2309
        %v2453 = vpack.c.bf16 %v2312, %v2311
        %v2454 = vpack.c.bf16 %v2314, %v2313
        %v2455 = vpack.c.bf16 %v2316, %v2315
        %v2456 = vpack.c.bf16 %v2318, %v2317
        %v2457 = vpack.c.bf16 %v2320, %v2319
        %v2474 = vunpack.c.l.b16 %v2434
        %v2475 = vunpack.c.l.b16 %v2435
        %v2476 = vunpack.c.l.b16 %v2436
        %v2477 = vunpack.c.l.b16 %v2437
        %v2478 = vunpack.c.l.b16 %v2438
        %v2479 = vunpack.c.l.b16 %v2439
        %v2480 = vunpack.c.l.b16 %v2440
        %v2481 = vunpack.c.l.b16 %v2441
        %v2482 = vunpack.c.l.b16 %v2442
        %v2483 = vunpack.c.l.b16 %v2443
        %v2484 = vunpack.c.l.b16 %v2444
        %v2485 = vunpack.c.l.b16 %v2445
        %v2486 = vunpack.c.l.b16 %v2446
        %v2487 = vunpack.c.l.b16 %v2447
        %v2488 = vunpack.c.l.b16 %v2448
        %v2489 = vunpack.c.l.b16 %v2449
        %v2490 = vpack.c.b16 %v2475, %v2474
        %v2491 = vpack.c.b16 %v2477, %v2476
        %v2492 = vpack.c.b16 %v2479, %v2478
        %v2493 = vpack.c.b16 %v2481, %v2480
        %v2494 = vpack.c.b16 %v2483, %v2482
        %v2495 = vpack.c.b16 %v2485, %v2484
        %v2496 = vpack.c.b16 %v2487, %v2486
        %v2497 = vpack.c.b16 %v2489, %v2488
        %2506 = vmatpush.bf16.msra.mxu0 %v2497
        %2507 = vmatpush.bf16.msra.mxu0 %v2496
        %2508 = vmatpush.bf16.msra.mxu0 %v2495
        %2509 = vmatpush.bf16.msra.mxu0 %v2494
        %2510 = vmatpush.bf16.msra.mxu0 %v2493
        %2511 = vmatpush.bf16.msra.mxu0 %v2492
        %2512 = vmatpush.bf16.msra.mxu0 %v2491
        %2513 = vmatpush.bf16.msra.mxu0 %v2490
        %2514 = vmatmul.bf16.gmra.mxu0 %v2450
        %v2515 = vpop.f32.mrf.mxu0
        %v2516 = vadd.f32 0.0, %v2515
        %v2517 = vpop.f32.mrf.mxu0
        %v2518 = vadd.f32 0.0, %v2517
        %2519 = vmatmul.bf16.gmra.mxu0 %v2451
        %v2520 = vpop.f32.mrf.mxu0
        %v2521 = vadd.f32 0.0, %v2520
        %v2522 = vpop.f32.mrf.mxu0
        %v2523 = vadd.f32 0.0, %v2522
        %2524 = vmatmul.bf16.gmra.mxu0 %v2452
        %v2525 = vpop.f32.mrf.mxu0
        %v2526 = vadd.f32 0.0, %v2525
        %v2527 = vpop.f32.mrf.mxu0
        %v2528 = vadd.f32 0.0, %v2527
        %2529 = vmatmul.bf16.gmra.mxu0 %v2453
        %v2530 = vpop.f32.mrf.mxu0
        %v2531 = vadd.f32 0.0, %v2530
        %v2532 = vpop.f32.mrf.mxu0
        %v2533 = vadd.f32 0.0, %v2532
        %2534 = vmatmul.bf16.gmra.mxu0 %v2454
        %v2535 = vpop.f32.mrf.mxu0
        %v2536 = vadd.f32 0.0, %v2535
        %v2537 = vpop.f32.mrf.mxu0
        %v2538 = vadd.f32 0.0, %v2537
        %2539 = vmatmul.bf16.gmra.mxu0 %v2455
        %v2540 = vpop.f32.mrf.mxu0
        %v2541 = vadd.f32 0.0, %v2540
        %v2542 = vpop.f32.mrf.mxu0
        %v2543 = vadd.f32 0.0, %v2542
        %2544 = vmatmul.bf16.gmra.mxu0 %v2456
        %v2545 = vpop.f32.mrf.mxu0
        %v2546 = vadd.f32 0.0, %v2545
        %v2547 = vpop.f32.mrf.mxu0
        %v2548 = vadd.f32 0.0, %v2547
        %2549 = vmatmul.bf16.gmra.mxu0 %v2457
        %v2550 = vpop.f32.mrf.mxu0
        %v2551 = vadd.f32 0.0, %v2550
        %v2552 = vpop.f32.mrf.mxu0
        %v2553 = vadd.f32 0.0, %v2552
        %2554 = vdwg.mxu0
        %vm2555 = vcmp.ge.f32.partialorder %v2516, 0.0
        %vm2556 = vcmp.ge.f32.partialorder %v2518, 0.0
        %vm2557 = vcmp.ge.f32.partialorder %v2521, 0.0
        %vm2558 = vcmp.ge.f32.partialorder %v2523, 0.0
        %vm2559 = vcmp.ge.f32.partialorder %v2526, 0.0
        %vm2560 = vcmp.ge.f32.partialorder %v2528, 0.0
        %vm2561 = vcmp.ge.f32.partialorder %v2531, 0.0
        %vm2562 = vcmp.ge.f32.partialorder %v2533, 0.0
        %vm2563 = vcmp.ge.f32.partialorder %v2536, 0.0
        %vm2564 = vcmp.ge.f32.partialorder %v2538, 0.0
        %vm2565 = vcmp.ge.f32.partialorder %v2541, 0.0
        %vm2566 = vcmp.ge.f32.partialorder %v2543, 0.0
        %vm2567 = vcmp.ge.f32.partialorder %v2546, 0.0
        %vm2568 = vcmp.ge.f32.partialorder %v2548, 0.0
        %vm2569 = vcmp.ge.f32.partialorder %v2551, 0.0
        %vm2570 = vcmp.ge.f32.partialorder %v2553, 0.0
        %v2571 = vmul.f32 %v2516, 0.01
        %v2572 = vmul.f32 %v2518, 0.01
        %v2573 = vmul.f32 %v2521, 0.01
        %v2574 = vmul.f32 %v2523, 0.01
        %v2575 = vmul.f32 %v2526, 0.01
        %v2576 = vmul.f32 %v2528, 0.01
        %v2577 = vmul.f32 %v2531, 0.01
        %v2578 = vmul.f32 %v2533, 0.01
        %v2579 = vmul.f32 %v2536, 0.01
        %v2580 = vmul.f32 %v2538, 0.01
        %v2581 = vmul.f32 %v2541, 0.01
        %v2582 = vmul.f32 %v2543, 0.01
        %v2583 = vmul.f32 %v2546, 0.01
        %v2584 = vmul.f32 %v2548, 0.01
        %v2585 = vmul.f32 %v2551, 0.01
        %v2586 = vmul.f32 %v2553, 0.01
        %v2587 = vsel %vm2555, %v2516, %v2571
        %v2588 = vsel %vm2556, %v2518, %v2572
        %v2589 = vsel %vm2557, %v2521, %v2573
        %v2590 = vsel %vm2558, %v2523, %v2574
        %v2591 = vsel %vm2559, %v2526, %v2575
        %v2592 = vsel %vm2560, %v2528, %v2576
        %v2593 = vsel %vm2561, %v2531, %v2577
        %v2594 = vsel %vm2562, %v2533, %v2578
        %v2595 = vsel %vm2563, %v2536, %v2579
        %v2596 = vsel %vm2564, %v2538, %v2580
        %v2597 = vsel %vm2565, %v2541, %v2581
        %v2598 = vsel %vm2566, %v2543, %v2582
        %v2599 = vsel %vm2567, %v2546, %v2583
        %v2600 = vsel %vm2568, %v2548, %v2584
        %v2601 = vsel %vm2569, %v2551, %v2585
        %v2602 = vsel %vm2570, %v2553, %v2586
        %v2603 = vsub.f32 %v2587, 50.5
        %v2604 = vsub.f32 %v2588, 50.5
        %v2605 = vsub.f32 %v2589, 50.5
        %v2606 = vsub.f32 %v2590, 50.5
        %v2607 = vsub.f32 %v2591, 50.5
        %v2608 = vsub.f32 %v2592, 50.5
        %v2609 = vsub.f32 %v2593, 50.5
        %v2610 = vsub.f32 %v2594, 50.5
        %v2611 = vsub.f32 %v2595, 50.5
        %v2612 = vsub.f32 %v2596, 50.5
        %v2613 = vsub.f32 %v2597, 50.5
        %v2614 = vsub.f32 %v2598, 50.5
        %v2615 = vsub.f32 %v2599, 50.5
        %v2616 = vsub.f32 %v2600, 50.5
        %v2617 = vsub.f32 %v2601, 50.5
        %v2618 = vsub.f32 %v2602, 50.5
        %v2619 = vmax.f32 %v2603, 0.0
        %v2620 = vmax.f32 %v2604, 0.0
        %v2621 = vmax.f32 %v2605, 0.0
        %v2622 = vmax.f32 %v2606, 0.0
        %v2623 = vmax.f32 %v2607, 0.0
        %v2624 = vmax.f32 %v2608, 0.0
        %v2625 = vmax.f32 %v2609, 0.0
        %v2626 = vmax.f32 %v2610, 0.0
        %v2627 = vmax.f32 %v2611, 0.0
        %v2628 = vmax.f32 %v2612, 0.0
        %v2629 = vmax.f32 %v2613, 0.0
        %v2630 = vmax.f32 %v2614, 0.0
        %v2631 = vmax.f32 %v2615, 0.0
        %v2632 = vmax.f32 %v2616, 0.0
        %v2633 = vmax.f32 %v2617, 0.0
        %v2634 = vmax.f32 %v2618, 0.0
        %v2635 = vsub.f32 -70.5, %v2587
        %v2636 = vsub.f32 -70.5, %v2588
        %v2637 = vsub.f32 -70.5, %v2589
        %v2638 = vsub.f32 -70.5, %v2590
        %v2639 = vsub.f32 -70.5, %v2591
        %v2640 = vsub.f32 -70.5, %v2592
        %v2641 = vsub.f32 -70.5, %v2593
        %v2642 = vsub.f32 -70.5, %v2594
        %v2643 = vsub.f32 -70.5, %v2595
        %v2644 = vsub.f32 -70.5, %v2596
        %v2645 = vsub.f32 -70.5, %v2597
        %v2646 = vsub.f32 -70.5, %v2598
        %v2647 = vsub.f32 -70.5, %v2599
        %v2648 = vsub.f32 -70.5, %v2600
        %v2649 = vsub.f32 -70.5, %v2601
        %v2650 = vsub.f32 -70.5, %v2602
        %v2651 = vmax.f32 %v2635, 0.0
        %v2652 = vmax.f32 %v2636, 0.0
        %v2653 = vmax.f32 %v2637, 0.0
        %v2654 = vmax.f32 %v2638, 0.0
        %v2655 = vmax.f32 %v2639, 0.0
        %v2656 = vmax.f32 %v2640, 0.0
        %v2657 = vmax.f32 %v2641, 0.0
        %v2658 = vmax.f32 %v2642, 0.0
        %v2659 = vmax.f32 %v2643, 0.0
        %v2660 = vmax.f32 %v2644, 0.0
        %v2661 = vmax.f32 %v2645, 0.0
        %v2662 = vmax.f32 %v2646, 0.0
        %v2663 = vmax.f32 %v2647, 0.0
        %v2664 = vmax.f32 %v2648, 0.0
        %v2665 = vmax.f32 %v2649, 0.0
        %v2666 = vmax.f32 %v2650, 0.0
        %v2667 = vadd.f32 %v2619, %v2651
        %v2668 = vadd.f32 %v2620, %v2652
        %v2669 = vadd.f32 %v2621, %v2653
        %v2670 = vadd.f32 %v2622, %v2654
        %v2671 = vadd.f32 %v2623, %v2655
        %v2672 = vadd.f32 %v2624, %v2656
        %v2673 = vadd.f32 %v2625, %v2657
        %v2674 = vadd.f32 %v2626, %v2658
        %v2675 = vadd.f32 %v2627, %v2659
        %v2676 = vadd.f32 %v2628, %v2660
        %v2677 = vadd.f32 %v2629, %v2661
        %v2678 = vadd.f32 %v2630, %v2662
        %v2679 = vadd.f32 %v2631, %v2663
        %v2680 = vadd.f32 %v2632, %v2664
        %v2681 = vadd.f32 %v2633, %v2665
        %v2682 = vadd.f32 %v2634, %v2666
        %v2683 = vmul.f32 %v2667, 0.000625
        %v2684 = vmul.f32 %v2668, 0.000625
        %v2685 = vmul.f32 %v2669, 0.000625
        %v2686 = vmul.f32 %v2670, 0.000625
        %v2687 = vmul.f32 %v2671, 0.000625
        %v2688 = vmul.f32 %v2672, 0.000625
        %v2689 = vmul.f32 %v2673, 0.000625
        %v2690 = vmul.f32 %v2674, 0.000625
        %v2691 = vmul.f32 %v2675, 0.000625
        %v2692 = vmul.f32 %v2676, 0.000625
        %v2693 = vmul.f32 %v2677, 0.000625
        %v2694 = vmul.f32 %v2678, 0.000625
        %v2695 = vmul.f32 %v2679, 0.000625
        %v2696 = vmul.f32 %v2680, 0.000625
        %v2697 = vmul.f32 %v2681, 0.000625
        %v2698 = vmul.f32 %v2682, 0.000625
        %v2699 = vadd.f32 %v2417, %v2683
        %v2700 = vadd.f32 %v2418, %v2684
        %v2701 = vadd.f32 %v2419, %v2685
        %v2702 = vadd.f32 %v2420, %v2686
        %v2703 = vadd.f32 %v2421, %v2687
        %v2704 = vadd.f32 %v2422, %v2688
        %v2705 = vadd.f32 %v2423, %v2689
        %v2706 = vadd.f32 %v2424, %v2690
        %v2707 = vadd.f32 %v2425, %v2691
        %v2708 = vadd.f32 %v2426, %v2692
        %v2709 = vadd.f32 %v2427, %v2693
        %v2710 = vadd.f32 %v2428, %v2694
        %v2711 = vadd.f32 %v2429, %v2695
        %v2712 = vadd.f32 %v2430, %v2696
        %v2713 = vadd.f32 %v2431, %v2697
        %v2714 = vadd.f32 %v2432, %v2698
        %s2715 = scalar_lea.vmem [#allocation9], 256
        %v2716 = vld [vmem:[%s2715] sm:$0xf]
        %v2717 = vld [vmem:[%s2715 + $0x4] sm:$0xf]
        %v2718 = vld [vmem:[%s2715 + $0x8] sm:$0xf]
        %v2719 = vld [vmem:[%s2715 + $0xc] sm:$0xf]
        %v2720 = vld [vmem:[%s2715 + $0x10] sm:$0xf]
        %v2721 = vld [vmem:[%s2715 + $0x14] sm:$0xf]
        %v2722 = vld [vmem:[%s2715 + $0x18] sm:$0xf]
        %v2723 = vld [vmem:[%s2715 + $0x1c] sm:$0xf]
        %v2724 = vld [vmem:[%s2715 + $0x20] sm:$0xf]
        %v2725 = vld [vmem:[%s2715 + $0x24] sm:$0xf]
        %v2726 = vld [vmem:[%s2715 + $0x28] sm:$0xf]
        %v2727 = vld [vmem:[%s2715 + $0x2c] sm:$0xf]
        %v2728 = vld [vmem:[%s2715 + $0x30] sm:$0xf]
        %v2729 = vld [vmem:[%s2715 + $0x34] sm:$0xf]
        %v2730 = vld [vmem:[%s2715 + $0x38] sm:$0xf]
        %v2731 = vld [vmem:[%s2715 + $0x3c] sm:$0xf]
        %v2732 = vpack.c.bf16 %v2588, %v2587
        %v2733 = vpack.c.bf16 %v2590, %v2589
        %v2734 = vpack.c.bf16 %v2592, %v2591
        %v2735 = vpack.c.bf16 %v2594, %v2593
        %v2736 = vpack.c.bf16 %v2596, %v2595
        %v2737 = vpack.c.bf16 %v2598, %v2597
        %v2738 = vpack.c.bf16 %v2600, %v2599
        %v2739 = vpack.c.bf16 %v2602, %v2601
        %v2756 = vunpack.c.l.b16 %v2716
        %v2757 = vunpack.c.l.b16 %v2717
        %v2758 = vunpack.c.l.b16 %v2718
        %v2759 = vunpack.c.l.b16 %v2719
        %v2760 = vunpack.c.l.b16 %v2720
        %v2761 = vunpack.c.l.b16 %v2721
        %v2762 = vunpack.c.l.b16 %v2722
        %v2763 = vunpack.c.l.b16 %v2723
        %v2764 = vunpack.c.l.b16 %v2724
        %v2765 = vunpack.c.l.b16 %v2725
        %v2766 = vunpack.c.l.b16 %v2726
        %v2767 = vunpack.c.l.b16 %v2727
        %v2768 = vunpack.c.l.b16 %v2728
        %v2769 = vunpack.c.l.b16 %v2729
        %v2770 = vunpack.c.l.b16 %v2730
        %v2771 = vunpack.c.l.b16 %v2731
        %v2772 = vpack.c.b16 %v2757, %v2756
        %v2773 = vpack.c.b16 %v2759, %v2758
        %v2774 = vpack.c.b16 %v2761, %v2760
        %v2775 = vpack.c.b16 %v2763, %v2762
        %v2776 = vpack.c.b16 %v2765, %v2764
        %v2777 = vpack.c.b16 %v2767, %v2766
        %v2778 = vpack.c.b16 %v2769, %v2768
        %v2779 = vpack.c.b16 %v2771, %v2770
        %2788 = vmatpush.bf16.msra.mxu0 %v2779
        %2789 = vmatpush.bf16.msra.mxu0 %v2778
        %2790 = vmatpush.bf16.msra.mxu0 %v2777
        %2791 = vmatpush.bf16.msra.mxu0 %v2776
        %2792 = vmatpush.bf16.msra.mxu0 %v2775
        %2793 = vmatpush.bf16.msra.mxu0 %v2774
        %2794 = vmatpush.bf16.msra.mxu0 %v2773
        %2795 = vmatpush.bf16.msra.mxu0 %v2772
        %2796 = vmatmul.bf16.gmra.mxu0 %v2732
        %v2797 = vpop.f32.mrf.mxu0
        %v2798 = vadd.f32 0.0, %v2797
        %v2799 = vpop.f32.mrf.mxu0
        %v2800 = vadd.f32 0.0, %v2799
        %2801 = vmatmul.bf16.gmra.mxu0 %v2733
        %v2802 = vpop.f32.mrf.mxu0
        %v2803 = vadd.f32 0.0, %v2802
        %v2804 = vpop.f32.mrf.mxu0
        %v2805 = vadd.f32 0.0, %v2804
        %2806 = vmatmul.bf16.gmra.mxu0 %v2734
        %v2807 = vpop.f32.mrf.mxu0
        %v2808 = vadd.f32 0.0, %v2807
        %v2809 = vpop.f32.mrf.mxu0
        %v2810 = vadd.f32 0.0, %v2809
        %2811 = vmatmul.bf16.gmra.mxu0 %v2735
        %v2812 = vpop.f32.mrf.mxu0
        %v2813 = vadd.f32 0.0, %v2812
        %v2814 = vpop.f32.mrf.mxu0
        %v2815 = vadd.f32 0.0, %v2814
        %2816 = vmatmul.bf16.gmra.mxu0 %v2736
        %v2817 = vpop.f32.mrf.mxu0
        %v2818 = vadd.f32 0.0, %v2817
        %v2819 = vpop.f32.mrf.mxu0
        %v2820 = vadd.f32 0.0, %v2819
        %2821 = vmatmul.bf16.gmra.mxu0 %v2737
        %v2822 = vpop.f32.mrf.mxu0
        %v2823 = vadd.f32 0.0, %v2822
        %v2824 = vpop.f32.mrf.mxu0
        %v2825 = vadd.f32 0.0, %v2824
        %2826 = vmatmul.bf16.gmra.mxu0 %v2738
        %v2827 = vpop.f32.mrf.mxu0
        %v2828 = vadd.f32 0.0, %v2827
        %v2829 = vpop.f32.mrf.mxu0
        %v2830 = vadd.f32 0.0, %v2829
        %2831 = vmatmul.bf16.gmra.mxu0 %v2739
        %v2832 = vpop.f32.mrf.mxu0
        %v2833 = vadd.f32 0.0, %v2832
        %v2834 = vpop.f32.mrf.mxu0
        %v2835 = vadd.f32 0.0, %v2834
        %2836 = vdwg.mxu0
        %vm2837 = vcmp.ge.f32.partialorder %v2798, 0.0
        %vm2838 = vcmp.ge.f32.partialorder %v2800, 0.0
        %vm2839 = vcmp.ge.f32.partialorder %v2803, 0.0
        %vm2840 = vcmp.ge.f32.partialorder %v2805, 0.0
        %vm2841 = vcmp.ge.f32.partialorder %v2808, 0.0
        %vm2842 = vcmp.ge.f32.partialorder %v2810, 0.0
        %vm2843 = vcmp.ge.f32.partialorder %v2813, 0.0
        %vm2844 = vcmp.ge.f32.partialorder %v2815, 0.0
        %vm2845 = vcmp.ge.f32.partialorder %v2818, 0.0
        %vm2846 = vcmp.ge.f32.partialorder %v2820, 0.0
        %vm2847 = vcmp.ge.f32.partialorder %v2823, 0.0
        %vm2848 = vcmp.ge.f32.partialorder %v2825, 0.0
        %vm2849 = vcmp.ge.f32.partialorder %v2828, 0.0
        %vm2850 = vcmp.ge.f32.partialorder %v2830, 0.0
        %vm2851 = vcmp.ge.f32.partialorder %v2833, 0.0
        %vm2852 = vcmp.ge.f32.partialorder %v2835, 0.0
        %v2853 = vmul.f32 %v2798, 0.01
        %v2854 = vmul.f32 %v2800, 0.01
        %v2855 = vmul.f32 %v2803, 0.01
        %v2856 = vmul.f32 %v2805, 0.01
        %v2857 = vmul.f32 %v2808, 0.01
        %v2858 = vmul.f32 %v2810, 0.01
        %v2859 = vmul.f32 %v2813, 0.01
        %v2860 = vmul.f32 %v2815, 0.01
        %v2861 = vmul.f32 %v2818, 0.01
        %v2862 = vmul.f32 %v2820, 0.01
        %v2863 = vmul.f32 %v2823, 0.01
        %v2864 = vmul.f32 %v2825, 0.01
        %v2865 = vmul.f32 %v2828, 0.01
        %v2866 = vmul.f32 %v2830, 0.01
        %v2867 = vmul.f32 %v2833, 0.01
        %v2868 = vmul.f32 %v2835, 0.01
        %v2869 = vsel %vm2837, %v2798, %v2853
        %v2870 = vsel %vm2838, %v2800, %v2854
        %v2871 = vsel %vm2839, %v2803, %v2855
        %v2872 = vsel %vm2840, %v2805, %v2856
        %v2873 = vsel %vm2841, %v2808, %v2857
        %v2874 = vsel %vm2842, %v2810, %v2858
        %v2875 = vsel %vm2843, %v2813, %v2859
        %v2876 = vsel %vm2844, %v2815, %v2860
        %v2877 = vsel %vm2845, %v2818, %v2861
        %v2878 = vsel %vm2846, %v2820, %v2862
        %v2879 = vsel %vm2847, %v2823, %v2863
        %v2880 = vsel %vm2848, %v2825, %v2864
        %v2881 = vsel %vm2849, %v2828, %v2865
        %v2882 = vsel %vm2850, %v2830, %v2866
        %v2883 = vsel %vm2851, %v2833, %v2867
        %v2884 = vsel %vm2852, %v2835, %v2868
        %v2885 = vsub.f32 %v2869, 50.5
        %v2886 = vsub.f32 %v2870, 50.5
        %v2887 = vsub.f32 %v2871, 50.5
        %v2888 = vsub.f32 %v2872, 50.5
        %v2889 = vsub.f32 %v2873, 50.5
        %v2890 = vsub.f32 %v2874, 50.5
        %v2891 = vsub.f32 %v2875, 50.5
        %v2892 = vsub.f32 %v2876, 50.5
        %v2893 = vsub.f32 %v2877, 50.5
        %v2894 = vsub.f32 %v2878, 50.5
        %v2895 = vsub.f32 %v2879, 50.5
        %v2896 = vsub.f32 %v2880, 50.5
        %v2897 = vsub.f32 %v2881, 50.5
        %v2898 = vsub.f32 %v2882, 50.5
        %v2899 = vsub.f32 %v2883, 50.5
        %v2900 = vsub.f32 %v2884, 50.5
        %v2901 = vmax.f32 %v2885, 0.0
        %v2902 = vmax.f32 %v2886, 0.0
        %v2903 = vmax.f32 %v2887, 0.0
        %v2904 = vmax.f32 %v2888, 0.0
        %v2905 = vmax.f32 %v2889, 0.0
        %v2906 = vmax.f32 %v2890, 0.0
        %v2907 = vmax.f32 %v2891, 0.0
        %v2908 = vmax.f32 %v2892, 0.0
        %v2909 = vmax.f32 %v2893, 0.0
        %v2910 = vmax.f32 %v2894, 0.0
        %v2911 = vmax.f32 %v2895, 0.0
        %v2912 = vmax.f32 %v2896, 0.0
        %v2913 = vmax.f32 %v2897, 0.0
        %v2914 = vmax.f32 %v2898, 0.0
        %v2915 = vmax.f32 %v2899, 0.0
        %v2916 = vmax.f32 %v2900, 0.0
        %v2917 = vsub.f32 -70.5, %v2869
        %v2918 = vsub.f32 -70.5, %v2870
        %v2919 = vsub.f32 -70.5, %v2871
        %v2920 = vsub.f32 -70.5, %v2872
        %v2921 = vsub.f32 -70.5, %v2873
        %v2922 = vsub.f32 -70.5, %v2874
        %v2923 = vsub.f32 -70.5, %v2875
        %v2924 = vsub.f32 -70.5, %v2876
        %v2925 = vsub.f32 -70.5, %v2877
        %v2926 = vsub.f32 -70.5, %v2878
        %v2927 = vsub.f32 -70.5, %v2879
        %v2928 = vsub.f32 -70.5, %v2880
        %v2929 = vsub.f32 -70.5, %v2881
        %v2930 = vsub.f32 -70.5, %v2882
        %v2931 = vsub.f32 -70.5, %v2883
        %v2932 = vsub.f32 -70.5, %v2884
        %v2933 = vmax.f32 %v2917, 0.0
        %v2934 = vmax.f32 %v2918, 0.0
        %v2935 = vmax.f32 %v2919, 0.0
        %v2936 = vmax.f32 %v2920, 0.0
        %v2937 = vmax.f32 %v2921, 0.0
        %v2938 = vmax.f32 %v2922, 0.0
        %v2939 = vmax.f32 %v2923, 0.0
        %v2940 = vmax.f32 %v2924, 0.0
        %v2941 = vmax.f32 %v2925, 0.0
        %v2942 = vmax.f32 %v2926, 0.0
        %v2943 = vmax.f32 %v2927, 0.0
        %v2944 = vmax.f32 %v2928, 0.0
        %v2945 = vmax.f32 %v2929, 0.0
        %v2946 = vmax.f32 %v2930, 0.0
        %v2947 = vmax.f32 %v2931, 0.0
        %v2948 = vmax.f32 %v2932, 0.0
        %v2949 = vadd.f32 %v2901, %v2933
        %v2950 = vadd.f32 %v2902, %v2934
        %v2951 = vadd.f32 %v2903, %v2935
        %v2952 = vadd.f32 %v2904, %v2936
        %v2953 = vadd.f32 %v2905, %v2937
        %v2954 = vadd.f32 %v2906, %v2938
        %v2955 = vadd.f32 %v2907, %v2939
        %v2956 = vadd.f32 %v2908, %v2940
        %v2957 = vadd.f32 %v2909, %v2941
        %v2958 = vadd.f32 %v2910, %v2942
        %v2959 = vadd.f32 %v2911, %v2943
        %v2960 = vadd.f32 %v2912, %v2944
        %v2961 = vadd.f32 %v2913, %v2945
        %v2962 = vadd.f32 %v2914, %v2946
        %v2963 = vadd.f32 %v2915, %v2947
        %v2964 = vadd.f32 %v2916, %v2948
        %v2965 = vmul.f32 %v2949, 0.00125
        %v2966 = vmul.f32 %v2950, 0.00125
        %v2967 = vmul.f32 %v2951, 0.00125
        %v2968 = vmul.f32 %v2952, 0.00125
        %v2969 = vmul.f32 %v2953, 0.00125
        %v2970 = vmul.f32 %v2954, 0.00125
        %v2971 = vmul.f32 %v2955, 0.00125
        %v2972 = vmul.f32 %v2956, 0.00125
        %v2973 = vmul.f32 %v2957, 0.00125
        %v2974 = vmul.f32 %v2958, 0.00125
        %v2975 = vmul.f32 %v2959, 0.00125
        %v2976 = vmul.f32 %v2960, 0.00125
        %v2977 = vmul.f32 %v2961, 0.00125
        %v2978 = vmul.f32 %v2962, 0.00125
        %v2979 = vmul.f32 %v2963, 0.00125
        %v2980 = vmul.f32 %v2964, 0.00125
        %v2981 = vadd.f32 %v2699, %v2965
        %v2982 = vadd.f32 %v2700, %v2966
        %v2983 = vadd.f32 %v2701, %v2967
        %v2984 = vadd.f32 %v2702, %v2968
        %v2985 = vadd.f32 %v2703, %v2969
        %v2986 = vadd.f32 %v2704, %v2970
        %v2987 = vadd.f32 %v2705, %v2971
        %v2988 = vadd.f32 %v2706, %v2972
        %v2989 = vadd.f32 %v2707, %v2973
        %v2990 = vadd.f32 %v2708, %v2974
        %v2991 = vadd.f32 %v2709, %v2975
        %v2992 = vadd.f32 %v2710, %v2976
        %v2993 = vadd.f32 %v2711, %v2977
        %v2994 = vadd.f32 %v2712, %v2978
        %v2995 = vadd.f32 %v2713, %v2979
        %v2996 = vadd.f32 %v2714, %v2980
        %s2997 = scalar_lea.vmem [#allocation9], 320
        %v2998 = vld [vmem:[%s2997] sm:$0xf]
        %v2999 = vld [vmem:[%s2997 + $0x4] sm:$0xf]
        %v3000 = vld [vmem:[%s2997 + $0x8] sm:$0xf]
        %v3001 = vld [vmem:[%s2997 + $0xc] sm:$0xf]
        %v3002 = vld [vmem:[%s2997 + $0x10] sm:$0xf]
        %v3003 = vld [vmem:[%s2997 + $0x14] sm:$0xf]
        %v3004 = vld [vmem:[%s2997 + $0x18] sm:$0xf]
        %v3005 = vld [vmem:[%s2997 + $0x1c] sm:$0xf]
        %v3006 = vld [vmem:[%s2997 + $0x20] sm:$0xf]
        %v3007 = vld [vmem:[%s2997 + $0x24] sm:$0xf]
        %v3008 = vld [vmem:[%s2997 + $0x28] sm:$0xf]
        %v3009 = vld [vmem:[%s2997 + $0x2c] sm:$0xf]
        %v3010 = vld [vmem:[%s2997 + $0x30] sm:$0xf]
        %v3011 = vld [vmem:[%s2997 + $0x34] sm:$0xf]
        %v3012 = vld [vmem:[%s2997 + $0x38] sm:$0xf]
        %v3013 = vld [vmem:[%s2997 + $0x3c] sm:$0xf]
        %v3014 = vpack.c.bf16 %v2870, %v2869
        %v3015 = vpack.c.bf16 %v2872, %v2871
        %v3016 = vpack.c.bf16 %v2874, %v2873
        %v3017 = vpack.c.bf16 %v2876, %v2875
        %v3018 = vpack.c.bf16 %v2878, %v2877
        %v3019 = vpack.c.bf16 %v2880, %v2879
        %v3020 = vpack.c.bf16 %v2882, %v2881
        %v3021 = vpack.c.bf16 %v2884, %v2883
        %v3038 = vunpack.c.l.b16 %v2998
        %v3039 = vunpack.c.l.b16 %v2999
        %v3040 = vunpack.c.l.b16 %v3000
        %v3041 = vunpack.c.l.b16 %v3001
        %v3042 = vunpack.c.l.b16 %v3002
        %v3043 = vunpack.c.l.b16 %v3003
        %v3044 = vunpack.c.l.b16 %v3004
        %v3045 = vunpack.c.l.b16 %v3005
        %v3046 = vunpack.c.l.b16 %v3006
        %v3047 = vunpack.c.l.b16 %v3007
        %v3048 = vunpack.c.l.b16 %v3008
        %v3049 = vunpack.c.l.b16 %v3009
        %v3050 = vunpack.c.l.b16 %v3010
        %v3051 = vunpack.c.l.b16 %v3011
        %v3052 = vunpack.c.l.b16 %v3012
        %v3053 = vunpack.c.l.b16 %v3013
        %v3054 = vpack.c.b16 %v3039, %v3038
        %v3055 = vpack.c.b16 %v3041, %v3040
        %v3056 = vpack.c.b16 %v3043, %v3042
        %v3057 = vpack.c.b16 %v3045, %v3044
        %v3058 = vpack.c.b16 %v3047, %v3046
        %v3059 = vpack.c.b16 %v3049, %v3048
        %v3060 = vpack.c.b16 %v3051, %v3050
        %v3061 = vpack.c.b16 %v3053, %v3052
        %3070 = vmatpush.bf16.msra.mxu0 %v3061
        %3071 = vmatpush.bf16.msra.mxu0 %v3060
        %3072 = vmatpush.bf16.msra.mxu0 %v3059
        %3073 = vmatpush.bf16.msra.mxu0 %v3058
        %3074 = vmatpush.bf16.msra.mxu0 %v3057
        %3075 = vmatpush.bf16.msra.mxu0 %v3056
        %3076 = vmatpush.bf16.msra.mxu0 %v3055
        %3077 = vmatpush.bf16.msra.mxu0 %v3054
        %3078 = vmatmul.bf16.gmra.mxu0 %v3014
        %v3079 = vpop.f32.mrf.mxu0
        %v3080 = vadd.f32 0.0, %v3079
        %v3081 = vpop.f32.mrf.mxu0
        %v3082 = vadd.f32 0.0, %v3081
        %3083 = vmatmul.bf16.gmra.mxu0 %v3015
        %v3084 = vpop.f32.mrf.mxu0
        %v3085 = vadd.f32 0.0, %v3084
        %v3086 = vpop.f32.mrf.mxu0
        %v3087 = vadd.f32 0.0, %v3086
        %3088 = vmatmul.bf16.gmra.mxu0 %v3016
        %v3089 = vpop.f32.mrf.mxu0
        %v3090 = vadd.f32 0.0, %v3089
        %v3091 = vpop.f32.mrf.mxu0
        %v3092 = vadd.f32 0.0, %v3091
        %3093 = vmatmul.bf16.gmra.mxu0 %v3017
        %v3094 = vpop.f32.mrf.mxu0
        %v3095 = vadd.f32 0.0, %v3094
        %v3096 = vpop.f32.mrf.mxu0
        %v3097 = vadd.f32 0.0, %v3096
        %3098 = vmatmul.bf16.gmra.mxu0 %v3018
        %v3099 = vpop.f32.mrf.mxu0
        %v3100 = vadd.f32 0.0, %v3099
        %v3101 = vpop.f32.mrf.mxu0
        %v3102 = vadd.f32 0.0, %v3101
        %3103 = vmatmul.bf16.gmra.mxu0 %v3019
        %v3104 = vpop.f32.mrf.mxu0
        %v3105 = vadd.f32 0.0, %v3104
        %v3106 = vpop.f32.mrf.mxu0
        %v3107 = vadd.f32 0.0, %v3106
        %3108 = vmatmul.bf16.gmra.mxu0 %v3020
        %v3109 = vpop.f32.mrf.mxu0
        %v3110 = vadd.f32 0.0, %v3109
        %v3111 = vpop.f32.mrf.mxu0
        %v3112 = vadd.f32 0.0, %v3111
        %3113 = vmatmul.bf16.gmra.mxu0 %v3021
        %v3114 = vpop.f32.mrf.mxu0
        %v3115 = vadd.f32 0.0, %v3114
        %v3116 = vpop.f32.mrf.mxu0
        %v3117 = vadd.f32 0.0, %v3116
        %3118 = vdwg.mxu0
        %vm3119 = vcmp.ge.f32.partialorder %v3080, 0.0
        %vm3120 = vcmp.ge.f32.partialorder %v3082, 0.0
        %vm3121 = vcmp.ge.f32.partialorder %v3085, 0.0
        %vm3122 = vcmp.ge.f32.partialorder %v3087, 0.0
        %vm3123 = vcmp.ge.f32.partialorder %v3090, 0.0
        %vm3124 = vcmp.ge.f32.partialorder %v3092, 0.0
        %vm3125 = vcmp.ge.f32.partialorder %v3095, 0.0
        %vm3126 = vcmp.ge.f32.partialorder %v3097, 0.0
        %vm3127 = vcmp.ge.f32.partialorder %v3100, 0.0
        %vm3128 = vcmp.ge.f32.partialorder %v3102, 0.0
        %vm3129 = vcmp.ge.f32.partialorder %v3105, 0.0
        %vm3130 = vcmp.ge.f32.partialorder %v3107, 0.0
        %vm3131 = vcmp.ge.f32.partialorder %v3110, 0.0
        %vm3132 = vcmp.ge.f32.partialorder %v3112, 0.0
        %vm3133 = vcmp.ge.f32.partialorder %v3115, 0.0
        %vm3134 = vcmp.ge.f32.partialorder %v3117, 0.0
        %v3135 = vmul.f32 %v3080, 0.01
        %v3136 = vmul.f32 %v3082, 0.01
        %v3137 = vmul.f32 %v3085, 0.01
        %v3138 = vmul.f32 %v3087, 0.01
        %v3139 = vmul.f32 %v3090, 0.01
        %v3140 = vmul.f32 %v3092, 0.01
        %v3141 = vmul.f32 %v3095, 0.01
        %v3142 = vmul.f32 %v3097, 0.01
        %v3143 = vmul.f32 %v3100, 0.01
        %v3144 = vmul.f32 %v3102, 0.01
        %v3145 = vmul.f32 %v3105, 0.01
        %v3146 = vmul.f32 %v3107, 0.01
        %v3147 = vmul.f32 %v3110, 0.01
        %v3148 = vmul.f32 %v3112, 0.01
        %v3149 = vmul.f32 %v3115, 0.01
        %v3150 = vmul.f32 %v3117, 0.01
        %v3151 = vsel %vm3119, %v3080, %v3135
        %v3152 = vsel %vm3120, %v3082, %v3136
        %v3153 = vsel %vm3121, %v3085, %v3137
        %v3154 = vsel %vm3122, %v3087, %v3138
        %v3155 = vsel %vm3123, %v3090, %v3139
        %v3156 = vsel %vm3124, %v3092, %v3140
        %v3157 = vsel %vm3125, %v3095, %v3141
        %v3158 = vsel %vm3126, %v3097, %v3142
        %v3159 = vsel %vm3127, %v3100, %v3143
        %v3160 = vsel %vm3128, %v3102, %v3144
        %v3161 = vsel %vm3129, %v3105, %v3145
        %v3162 = vsel %vm3130, %v3107, %v3146
        %v3163 = vsel %vm3131, %v3110, %v3147
        %v3164 = vsel %vm3132, %v3112, %v3148
        %v3165 = vsel %vm3133, %v3115, %v3149
        %v3166 = vsel %vm3134, %v3117, %v3150
        %v3167 = vsub.f32 %v3151, 50.5
        %v3168 = vsub.f32 %v3152, 50.5
        %v3169 = vsub.f32 %v3153, 50.5
        %v3170 = vsub.f32 %v3154, 50.5
        %v3171 = vsub.f32 %v3155, 50.5
        %v3172 = vsub.f32 %v3156, 50.5
        %v3173 = vsub.f32 %v3157, 50.5
        %v3174 = vsub.f32 %v3158, 50.5
        %v3175 = vsub.f32 %v3159, 50.5
        %v3176 = vsub.f32 %v3160, 50.5
        %v3177 = vsub.f32 %v3161, 50.5
        %v3178 = vsub.f32 %v3162, 50.5
        %v3179 = vsub.f32 %v3163, 50.5
        %v3180 = vsub.f32 %v3164, 50.5
        %v3181 = vsub.f32 %v3165, 50.5
        %v3182 = vsub.f32 %v3166, 50.5
        %v3183 = vmax.f32 %v3167, 0.0
        %v3184 = vmax.f32 %v3168, 0.0
        %v3185 = vmax.f32 %v3169, 0.0
        %v3186 = vmax.f32 %v3170, 0.0
        %v3187 = vmax.f32 %v3171, 0.0
        %v3188 = vmax.f32 %v3172, 0.0
        %v3189 = vmax.f32 %v3173, 0.0
        %v3190 = vmax.f32 %v3174, 0.0
        %v3191 = vmax.f32 %v3175, 0.0
        %v3192 = vmax.f32 %v3176, 0.0
        %v3193 = vmax.f32 %v3177, 0.0
        %v3194 = vmax.f32 %v3178, 0.0
        %v3195 = vmax.f32 %v3179, 0.0
        %v3196 = vmax.f32 %v3180, 0.0
        %v3197 = vmax.f32 %v3181, 0.0
        %v3198 = vmax.f32 %v3182, 0.0
        %v3199 = vsub.f32 -70.5, %v3151
        %v3200 = vsub.f32 -70.5, %v3152
        %v3201 = vsub.f32 -70.5, %v3153
        %v3202 = vsub.f32 -70.5, %v3154
        %v3203 = vsub.f32 -70.5, %v3155
        %v3204 = vsub.f32 -70.5, %v3156
        %v3205 = vsub.f32 -70.5, %v3157
        %v3206 = vsub.f32 -70.5, %v3158
        %v3207 = vsub.f32 -70.5, %v3159
        %v3208 = vsub.f32 -70.5, %v3160
        %v3209 = vsub.f32 -70.5, %v3161
        %v3210 = vsub.f32 -70.5, %v3162
        %v3211 = vsub.f32 -70.5, %v3163
        %v3212 = vsub.f32 -70.5, %v3164
        %v3213 = vsub.f32 -70.5, %v3165
        %v3214 = vsub.f32 -70.5, %v3166
        %v3215 = vmax.f32 %v3199, 0.0
        %v3216 = vmax.f32 %v3200, 0.0
        %v3217 = vmax.f32 %v3201, 0.0
        %v3218 = vmax.f32 %v3202, 0.0
        %v3219 = vmax.f32 %v3203, 0.0
        %v3220 = vmax.f32 %v3204, 0.0
        %v3221 = vmax.f32 %v3205, 0.0
        %v3222 = vmax.f32 %v3206, 0.0
        %v3223 = vmax.f32 %v3207, 0.0
        %v3224 = vmax.f32 %v3208, 0.0
        %v3225 = vmax.f32 %v3209, 0.0
        %v3226 = vmax.f32 %v3210, 0.0
        %v3227 = vmax.f32 %v3211, 0.0
        %v3228 = vmax.f32 %v3212, 0.0
        %v3229 = vmax.f32 %v3213, 0.0
        %v3230 = vmax.f32 %v3214, 0.0
        %v3231 = vadd.f32 %v3183, %v3215
        %v3232 = vadd.f32 %v3184, %v3216
        %v3233 = vadd.f32 %v3185, %v3217
        %v3234 = vadd.f32 %v3186, %v3218
        %v3235 = vadd.f32 %v3187, %v3219
        %v3236 = vadd.f32 %v3188, %v3220
        %v3237 = vadd.f32 %v3189, %v3221
        %v3238 = vadd.f32 %v3190, %v3222
        %v3239 = vadd.f32 %v3191, %v3223
        %v3240 = vadd.f32 %v3192, %v3224
        %v3241 = vadd.f32 %v3193, %v3225
        %v3242 = vadd.f32 %v3194, %v3226
        %v3243 = vadd.f32 %v3195, %v3227
        %v3244 = vadd.f32 %v3196, %v3228
        %v3245 = vadd.f32 %v3197, %v3229
        %v3246 = vadd.f32 %v3198, %v3230
        %v3247 = vmul.f32 %v3231, 0.0025
        %v3248 = vmul.f32 %v3232, 0.0025
        %v3249 = vmul.f32 %v3233, 0.0025
        %v3250 = vmul.f32 %v3234, 0.0025
        %v3251 = vmul.f32 %v3235, 0.0025
        %v3252 = vmul.f32 %v3236, 0.0025
        %v3253 = vmul.f32 %v3237, 0.0025
        %v3254 = vmul.f32 %v3238, 0.0025
        %v3255 = vmul.f32 %v3239, 0.0025
        %v3256 = vmul.f32 %v3240, 0.0025
        %v3257 = vmul.f32 %v3241, 0.0025
        %v3258 = vmul.f32 %v3242, 0.0025
        %v3259 = vmul.f32 %v3243, 0.0025
        %v3260 = vmul.f32 %v3244, 0.0025
        %v3261 = vmul.f32 %v3245, 0.0025
        %v3262 = vmul.f32 %v3246, 0.0025
        %v3263 = vadd.f32 %v2981, %v3247
        %v3264 = vadd.f32 %v2982, %v3248
        %v3265 = vadd.f32 %v2983, %v3249
        %v3266 = vadd.f32 %v2984, %v3250
        %v3267 = vadd.f32 %v2985, %v3251
        %v3268 = vadd.f32 %v2986, %v3252
        %v3269 = vadd.f32 %v2987, %v3253
        %v3270 = vadd.f32 %v2988, %v3254
        %v3271 = vadd.f32 %v2989, %v3255
        %v3272 = vadd.f32 %v2990, %v3256
        %v3273 = vadd.f32 %v2991, %v3257
        %v3274 = vadd.f32 %v2992, %v3258
        %v3275 = vadd.f32 %v2993, %v3259
        %v3276 = vadd.f32 %v2994, %v3260
        %v3277 = vadd.f32 %v2995, %v3261
        %v3278 = vadd.f32 %v2996, %v3262
        %s3279 = scalar_lea.vmem [#allocation9], 384
        %v3280 = vld [vmem:[%s3279] sm:$0xf]
        %v3281 = vld [vmem:[%s3279 + $0x4] sm:$0xf]
        %v3282 = vld [vmem:[%s3279 + $0x8] sm:$0xf]
        %v3283 = vld [vmem:[%s3279 + $0xc] sm:$0xf]
        %v3284 = vld [vmem:[%s3279 + $0x10] sm:$0xf]
        %v3285 = vld [vmem:[%s3279 + $0x14] sm:$0xf]
        %v3286 = vld [vmem:[%s3279 + $0x18] sm:$0xf]
        %v3287 = vld [vmem:[%s3279 + $0x1c] sm:$0xf]
        %v3288 = vld [vmem:[%s3279 + $0x20] sm:$0xf]
        %v3289 = vld [vmem:[%s3279 + $0x24] sm:$0xf]
        %v3290 = vld [vmem:[%s3279 + $0x28] sm:$0xf]
        %v3291 = vld [vmem:[%s3279 + $0x2c] sm:$0xf]
        %v3292 = vld [vmem:[%s3279 + $0x30] sm:$0xf]
        %v3293 = vld [vmem:[%s3279 + $0x34] sm:$0xf]
        %v3294 = vld [vmem:[%s3279 + $0x38] sm:$0xf]
        %v3295 = vld [vmem:[%s3279 + $0x3c] sm:$0xf]
        %v3296 = vpack.c.bf16 %v3152, %v3151
        %v3297 = vpack.c.bf16 %v3154, %v3153
        %v3298 = vpack.c.bf16 %v3156, %v3155
        %v3299 = vpack.c.bf16 %v3158, %v3157
        %v3300 = vpack.c.bf16 %v3160, %v3159
        %v3301 = vpack.c.bf16 %v3162, %v3161
        %v3302 = vpack.c.bf16 %v3164, %v3163
        %v3303 = vpack.c.bf16 %v3166, %v3165
        %v3320 = vunpack.c.l.b16 %v3280
        %v3321 = vunpack.c.l.b16 %v3281
        %v3322 = vunpack.c.l.b16 %v3282
        %v3323 = vunpack.c.l.b16 %v3283
        %v3324 = vunpack.c.l.b16 %v3284
        %v3325 = vunpack.c.l.b16 %v3285
        %v3326 = vunpack.c.l.b16 %v3286
        %v3327 = vunpack.c.l.b16 %v3287
        %v3328 = vunpack.c.l.b16 %v3288
        %v3329 = vunpack.c.l.b16 %v3289
        %v3330 = vunpack.c.l.b16 %v3290
        %v3331 = vunpack.c.l.b16 %v3291
        %v3332 = vunpack.c.l.b16 %v3292
        %v3333 = vunpack.c.l.b16 %v3293
        %v3334 = vunpack.c.l.b16 %v3294
        %v3335 = vunpack.c.l.b16 %v3295
        %v3336 = vpack.c.b16 %v3321, %v3320
        %v3337 = vpack.c.b16 %v3323, %v3322
        %v3338 = vpack.c.b16 %v3325, %v3324
        %v3339 = vpack.c.b16 %v3327, %v3326
        %v3340 = vpack.c.b16 %v3329, %v3328
        %v3341 = vpack.c.b16 %v3331, %v3330
        %v3342 = vpack.c.b16 %v3333, %v3332
        %v3343 = vpack.c.b16 %v3335, %v3334
        %3352 = vmatpush.bf16.msra.mxu0 %v3343
        %3353 = vmatpush.bf16.msra.mxu0 %v3342
        %3354 = vmatpush.bf16.msra.mxu0 %v3341
        %3355 = vmatpush.bf16.msra.mxu0 %v3340
        %3356 = vmatpush.bf16.msra.mxu0 %v3339
        %3357 = vmatpush.bf16.msra.mxu0 %v3338
        %3358 = vmatpush.bf16.msra.mxu0 %v3337
        %3359 = vmatpush.bf16.msra.mxu0 %v3336
        %3360 = vmatmul.bf16.gmra.mxu0 %v3296
        %v3361 = vpop.f32.mrf.mxu0
        %v3362 = vadd.f32 0.0, %v3361
        %v3363 = vpop.f32.mrf.mxu0
        %v3364 = vadd.f32 0.0, %v3363
        %3365 = vmatmul.bf16.gmra.mxu0 %v3297
        %v3366 = vpop.f32.mrf.mxu0
        %v3367 = vadd.f32 0.0, %v3366
        %v3368 = vpop.f32.mrf.mxu0
        %v3369 = vadd.f32 0.0, %v3368
        %3370 = vmatmul.bf16.gmra.mxu0 %v3298
        %v3371 = vpop.f32.mrf.mxu0
        %v3372 = vadd.f32 0.0, %v3371
        %v3373 = vpop.f32.mrf.mxu0
        %v3374 = vadd.f32 0.0, %v3373
        %3375 = vmatmul.bf16.gmra.mxu0 %v3299
        %v3376 = vpop.f32.mrf.mxu0
        %v3377 = vadd.f32 0.0, %v3376
        %v3378 = vpop.f32.mrf.mxu0
        %v3379 = vadd.f32 0.0, %v3378
        %3380 = vmatmul.bf16.gmra.mxu0 %v3300
        %v3381 = vpop.f32.mrf.mxu0
        %v3382 = vadd.f32 0.0, %v3381
        %v3383 = vpop.f32.mrf.mxu0
        %v3384 = vadd.f32 0.0, %v3383
        %3385 = vmatmul.bf16.gmra.mxu0 %v3301
        %v3386 = vpop.f32.mrf.mxu0
        %v3387 = vadd.f32 0.0, %v3386
        %v3388 = vpop.f32.mrf.mxu0
        %v3389 = vadd.f32 0.0, %v3388
        %3390 = vmatmul.bf16.gmra.mxu0 %v3302
        %v3391 = vpop.f32.mrf.mxu0
        %v3392 = vadd.f32 0.0, %v3391
        %v3393 = vpop.f32.mrf.mxu0
        %v3394 = vadd.f32 0.0, %v3393
        %3395 = vmatmul.bf16.gmra.mxu0 %v3303
        %v3396 = vpop.f32.mrf.mxu0
        %v3397 = vadd.f32 0.0, %v3396
        %v3398 = vpop.f32.mrf.mxu0
        %v3399 = vadd.f32 0.0, %v3398
        %3400 = vdwg.mxu0
        %vm3401 = vcmp.ge.f32.partialorder %v3362, 0.0
        %vm3402 = vcmp.ge.f32.partialorder %v3364, 0.0
        %vm3403 = vcmp.ge.f32.partialorder %v3367, 0.0
        %vm3404 = vcmp.ge.f32.partialorder %v3369, 0.0
        %vm3405 = vcmp.ge.f32.partialorder %v3372, 0.0
        %vm3406 = vcmp.ge.f32.partialorder %v3374, 0.0
        %vm3407 = vcmp.ge.f32.partialorder %v3377, 0.0
        %vm3408 = vcmp.ge.f32.partialorder %v3379, 0.0
        %vm3409 = vcmp.ge.f32.partialorder %v3382, 0.0
        %vm3410 = vcmp.ge.f32.partialorder %v3384, 0.0
        %vm3411 = vcmp.ge.f32.partialorder %v3387, 0.0
        %vm3412 = vcmp.ge.f32.partialorder %v3389, 0.0
        %vm3413 = vcmp.ge.f32.partialorder %v3392, 0.0
        %vm3414 = vcmp.ge.f32.partialorder %v3394, 0.0
        %vm3415 = vcmp.ge.f32.partialorder %v3397, 0.0
        %vm3416 = vcmp.ge.f32.partialorder %v3399, 0.0
        %v3417 = vmul.f32 %v3362, 0.01
        %v3418 = vmul.f32 %v3364, 0.01
        %v3419 = vmul.f32 %v3367, 0.01
        %v3420 = vmul.f32 %v3369, 0.01
        %v3421 = vmul.f32 %v3372, 0.01
        %v3422 = vmul.f32 %v3374, 0.01
        %v3423 = vmul.f32 %v3377, 0.01
        %v3424 = vmul.f32 %v3379, 0.01
        %v3425 = vmul.f32 %v3382, 0.01
        %v3426 = vmul.f32 %v3384, 0.01
        %v3427 = vmul.f32 %v3387, 0.01
        %v3428 = vmul.f32 %v3389, 0.01
        %v3429 = vmul.f32 %v3392, 0.01
        %v3430 = vmul.f32 %v3394, 0.01
        %v3431 = vmul.f32 %v3397, 0.01
        %v3432 = vmul.f32 %v3399, 0.01
        %v3433 = vsel %vm3401, %v3362, %v3417
        %v3434 = vsel %vm3402, %v3364, %v3418
        %v3435 = vsel %vm3403, %v3367, %v3419
        %v3436 = vsel %vm3404, %v3369, %v3420
        %v3437 = vsel %vm3405, %v3372, %v3421
        %v3438 = vsel %vm3406, %v3374, %v3422
        %v3439 = vsel %vm3407, %v3377, %v3423
        %v3440 = vsel %vm3408, %v3379, %v3424
        %v3441 = vsel %vm3409, %v3382, %v3425
        %v3442 = vsel %vm3410, %v3384, %v3426
        %v3443 = vsel %vm3411, %v3387, %v3427
        %v3444 = vsel %vm3412, %v3389, %v3428
        %v3445 = vsel %vm3413, %v3392, %v3429
        %v3446 = vsel %vm3414, %v3394, %v3430
        %v3447 = vsel %vm3415, %v3397, %v3431
        %v3448 = vsel %vm3416, %v3399, %v3432
        %v3449 = vsub.f32 %v3433, 50.5
        %v3450 = vsub.f32 %v3434, 50.5
        %v3451 = vsub.f32 %v3435, 50.5
        %v3452 = vsub.f32 %v3436, 50.5
        %v3453 = vsub.f32 %v3437, 50.5
        %v3454 = vsub.f32 %v3438, 50.5
        %v3455 = vsub.f32 %v3439, 50.5
        %v3456 = vsub.f32 %v3440, 50.5
        %v3457 = vsub.f32 %v3441, 50.5
        %v3458 = vsub.f32 %v3442, 50.5
        %v3459 = vsub.f32 %v3443, 50.5
        %v3460 = vsub.f32 %v3444, 50.5
        %v3461 = vsub.f32 %v3445, 50.5
        %v3462 = vsub.f32 %v3446, 50.5
        %v3463 = vsub.f32 %v3447, 50.5
        %v3464 = vsub.f32 %v3448, 50.5
        %v3465 = vmax.f32 %v3449, 0.0
        %v3466 = vmax.f32 %v3450, 0.0
        %v3467 = vmax.f32 %v3451, 0.0
        %v3468 = vmax.f32 %v3452, 0.0
        %v3469 = vmax.f32 %v3453, 0.0
        %v3470 = vmax.f32 %v3454, 0.0
        %v3471 = vmax.f32 %v3455, 0.0
        %v3472 = vmax.f32 %v3456, 0.0
        %v3473 = vmax.f32 %v3457, 0.0
        %v3474 = vmax.f32 %v3458, 0.0
        %v3475 = vmax.f32 %v3459, 0.0
        %v3476 = vmax.f32 %v3460, 0.0
        %v3477 = vmax.f32 %v3461, 0.0
        %v3478 = vmax.f32 %v3462, 0.0
        %v3479 = vmax.f32 %v3463, 0.0
        %v3480 = vmax.f32 %v3464, 0.0
        %v3481 = vsub.f32 -70.5, %v3433
        %v3482 = vsub.f32 -70.5, %v3434
        %v3483 = vsub.f32 -70.5, %v3435
        %v3484 = vsub.f32 -70.5, %v3436
        %v3485 = vsub.f32 -70.5, %v3437
        %v3486 = vsub.f32 -70.5, %v3438
        %v3487 = vsub.f32 -70.5, %v3439
        %v3488 = vsub.f32 -70.5, %v3440
        %v3489 = vsub.f32 -70.5, %v3441
        %v3490 = vsub.f32 -70.5, %v3442
        %v3491 = vsub.f32 -70.5, %v3443
        %v3492 = vsub.f32 -70.5, %v3444
        %v3493 = vsub.f32 -70.5, %v3445
        %v3494 = vsub.f32 -70.5, %v3446
        %v3495 = vsub.f32 -70.5, %v3447
        %v3496 = vsub.f32 -70.5, %v3448
        %v3497 = vmax.f32 %v3481, 0.0
        %v3498 = vmax.f32 %v3482, 0.0
        %v3499 = vmax.f32 %v3483, 0.0
        %v3500 = vmax.f32 %v3484, 0.0
        %v3501 = vmax.f32 %v3485, 0.0
        %v3502 = vmax.f32 %v3486, 0.0
        %v3503 = vmax.f32 %v3487, 0.0
        %v3504 = vmax.f32 %v3488, 0.0
        %v3505 = vmax.f32 %v3489, 0.0
        %v3506 = vmax.f32 %v3490, 0.0
        %v3507 = vmax.f32 %v3491, 0.0
        %v3508 = vmax.f32 %v3492, 0.0
        %v3509 = vmax.f32 %v3493, 0.0
        %v3510 = vmax.f32 %v3494, 0.0
        %v3511 = vmax.f32 %v3495, 0.0
        %v3512 = vmax.f32 %v3496, 0.0
        %v3513 = vadd.f32 %v3465, %v3497
        %v3514 = vadd.f32 %v3466, %v3498
        %v3515 = vadd.f32 %v3467, %v3499
        %v3516 = vadd.f32 %v3468, %v3500
        %v3517 = vadd.f32 %v3469, %v3501
        %v3518 = vadd.f32 %v3470, %v3502
        %v3519 = vadd.f32 %v3471, %v3503
        %v3520 = vadd.f32 %v3472, %v3504
        %v3521 = vadd.f32 %v3473, %v3505
        %v3522 = vadd.f32 %v3474, %v3506
        %v3523 = vadd.f32 %v3475, %v3507
        %v3524 = vadd.f32 %v3476, %v3508
        %v3525 = vadd.f32 %v3477, %v3509
        %v3526 = vadd.f32 %v3478, %v3510
        %v3527 = vadd.f32 %v3479, %v3511
        %v3528 = vadd.f32 %v3480, %v3512
        %v3529 = vmul.f32 %v3513, 0.005
        %v3530 = vmul.f32 %v3514, 0.005
        %v3531 = vmul.f32 %v3515, 0.005
        %v3532 = vmul.f32 %v3516, 0.005
        %v3533 = vmul.f32 %v3517, 0.005
        %v3534 = vmul.f32 %v3518, 0.005
        %v3535 = vmul.f32 %v3519, 0.005
        %v3536 = vmul.f32 %v3520, 0.005
        %v3537 = vmul.f32 %v3521, 0.005
        %v3538 = vmul.f32 %v3522, 0.005
        %v3539 = vmul.f32 %v3523, 0.005
        %v3540 = vmul.f32 %v3524, 0.005
        %v3541 = vmul.f32 %v3525, 0.005
        %v3542 = vmul.f32 %v3526, 0.005
        %v3543 = vmul.f32 %v3527, 0.005
        %v3544 = vmul.f32 %v3528, 0.005
        %v3545 = vadd.f32 %v3263, %v3529
        %v3546 = vadd.f32 %v3264, %v3530
        %v3547 = vadd.f32 %v3265, %v3531
        %v3548 = vadd.f32 %v3266, %v3532
        %v3549 = vadd.f32 %v3267, %v3533
        %v3550 = vadd.f32 %v3268, %v3534
        %v3551 = vadd.f32 %v3269, %v3535
        %v3552 = vadd.f32 %v3270, %v3536
        %v3553 = vadd.f32 %v3271, %v3537
        %v3554 = vadd.f32 %v3272, %v3538
        %v3555 = vadd.f32 %v3273, %v3539
        %v3556 = vadd.f32 %v3274, %v3540
        %v3557 = vadd.f32 %v3275, %v3541
        %v3558 = vadd.f32 %v3276, %v3542
        %v3559 = vadd.f32 %v3277, %v3543
        %v3560 = vadd.f32 %v3278, %v3544
        %v3561 = vld [vmem:[#allocation2] sm:$0x1]
        %v3563 = vperm.slane %v3561, 0
        %v3565 = vmul.f32 %v3433, %v3563
        %v3566 = vmul.f32 %v3434, %v3563
        %v3567 = vmul.f32 %v3435, %v3563
        %v3568 = vmul.f32 %v3436, %v3563
        %v3569 = vmul.f32 %v3437, %v3563
        %v3570 = vmul.f32 %v3438, %v3563
        %v3571 = vmul.f32 %v3439, %v3563
        %v3572 = vmul.f32 %v3440, %v3563
        %v3573 = vmul.f32 %v3441, %v3563
        %v3574 = vmul.f32 %v3442, %v3563
        %v3575 = vmul.f32 %v3443, %v3563
        %v3576 = vmul.f32 %v3444, %v3563
        %v3577 = vmul.f32 %v3445, %v3563
        %v3578 = vmul.f32 %v3446, %v3563
        %v3579 = vmul.f32 %v3447, %v3563
        %v3580 = vmul.f32 %v3448, %v3563
        %v3581 = vld [vmem:[#allocation3] sm:$0x1]
        %v3583 = vperm.slane %v3581, 0
        %v3585 = vadd.f32 %v3565, %v3583
        %v3586 = vadd.f32 %v3566, %v3583
        %v3587 = vadd.f32 %v3567, %v3583
        %v3588 = vadd.f32 %v3568, %v3583
        %v3589 = vadd.f32 %v3569, %v3583
        %v3590 = vadd.f32 %v3570, %v3583
        %v3591 = vadd.f32 %v3571, %v3583
        %v3592 = vadd.f32 %v3572, %v3583
        %v3593 = vadd.f32 %v3573, %v3583
        %v3594 = vadd.f32 %v3574, %v3583
        %v3595 = vadd.f32 %v3575, %v3583
        %v3596 = vadd.f32 %v3576, %v3583
        %v3597 = vadd.f32 %v3577, %v3583
        %v3598 = vadd.f32 %v3578, %v3583
        %v3599 = vadd.f32 %v3579, %v3583
        %v3600 = vadd.f32 %v3580, %v3583
        %vm3601 = vcmask 7168
        %3602 = vst.msk [vmem:[%s470] sm:$0xff] %vm3601, %v3585
        %3603 = vst.msk [vmem:[%s470 + $0x8] sm:$0xff] %vm3601, %v3586
        %3604 = vst.msk [vmem:[%s470 + $0x10] sm:$0xff] %vm3601, %v3587
        %3605 = vst.msk [vmem:[%s470 + $0x18] sm:$0xff] %vm3601, %v3588
        %3606 = vst.msk [vmem:[%s470 + $0x20] sm:$0xff] %vm3601, %v3589
        %3607 = vst.msk [vmem:[%s470 + $0x28] sm:$0xff] %vm3601, %v3590
        %3608 = vst.msk [vmem:[%s470 + $0x30] sm:$0xff] %vm3601, %v3591
        %3609 = vst.msk [vmem:[%s470 + $0x38] sm:$0xff] %vm3601, %v3592
        %3610 = vst.msk [vmem:[%s470 + $0x40] sm:$0xff] %vm3601, %v3593
        %3611 = vst.msk [vmem:[%s470 + $0x48] sm:$0xff] %vm3601, %v3594
        %3612 = vst.msk [vmem:[%s470 + $0x50] sm:$0xff] %vm3601, %v3595
        %3613 = vst.msk [vmem:[%s470 + $0x58] sm:$0xff] %vm3601, %v3596
        %3614 = vst.msk [vmem:[%s470 + $0x60] sm:$0xff] %vm3601, %v3597
        %3615 = vst.msk [vmem:[%s470 + $0x68] sm:$0xff] %vm3601, %v3598
        %3616 = vst.msk [vmem:[%s470 + $0x70] sm:$0xff] %vm3601, %v3599
        %3617 = vst.msk [vmem:[%s470 + $0x78] sm:$0xff] %vm3601, %v3600
        %3618 = vadd.xlane.f32.xlu0 %v3545
        %v3619 = vpop.xlane.xlu0 %3618
        %3620 = vadd.xlane.f32.xlu0 %v3546
        %v3621 = vpop.xlane.xlu0 %3620
        %3622 = vadd.xlane.f32.xlu0 %v3547
        %v3623 = vpop.xlane.xlu0 %3622
        %3624 = vadd.xlane.f32.xlu0 %v3548
        %v3625 = vpop.xlane.xlu0 %3624
        %3626 = vadd.xlane.f32.xlu0 %v3549
        %v3627 = vpop.xlane.xlu0 %3626
        %3628 = vadd.xlane.f32.xlu0 %v3550
        %v3629 = vpop.xlane.xlu0 %3628
        %3630 = vadd.xlane.f32.xlu0 %v3551
        %v3631 = vpop.xlane.xlu0 %3630
        %3632 = vadd.xlane.f32.xlu0 %v3552
        %v3633 = vpop.xlane.xlu0 %3632
        %3634 = vadd.xlane.f32.xlu0 %v3553
        %v3635 = vpop.xlane.xlu0 %3634
        %3636 = vadd.xlane.f32.xlu0 %v3554
        %v3637 = vpop.xlane.xlu0 %3636
        %3638 = vadd.xlane.f32.xlu0 %v3555
        %v3639 = vpop.xlane.xlu0 %3638
        %3640 = vadd.xlane.f32.xlu0 %v3556
        %v3641 = vpop.xlane.xlu0 %3640
        %3642 = vadd.xlane.f32.xlu0 %v3557
        %v3643 = vpop.xlane.xlu0 %3642
        %3644 = vadd.xlane.f32.xlu0 %v3558
        %v3645 = vpop.xlane.xlu0 %3644
        %3646 = vadd.xlane.f32.xlu0 %v3559
        %v3647 = vpop.xlane.xlu0 %3646
        %3648 = vadd.xlane.f32.xlu0 %v3560
        %v3649 = vpop.xlane.xlu0 %3648
        %3650 = vst.msk [vmem:[%s476] sm:$0xff] %vm3601, %v3619
        %3651 = vst.msk [vmem:[%s476 + $0x8] sm:$0xff] %vm3601, %v3621
        %3652 = vst.msk [vmem:[%s476 + $0x10] sm:$0xff] %vm3601, %v3623
        %3653 = vst.msk [vmem:[%s476 + $0x18] sm:$0xff] %vm3601, %v3625
        %3654 = vst.msk [vmem:[%s476 + $0x20] sm:$0xff] %vm3601, %v3627
        %3655 = vst.msk [vmem:[%s476 + $0x28] sm:$0xff] %vm3601, %v3629
        %3656 = vst.msk [vmem:[%s476 + $0x30] sm:$0xff] %vm3601, %v3631
        %3657 = vst.msk [vmem:[%s476 + $0x38] sm:$0xff] %vm3601, %v3633
        %3658 = vst.msk [vmem:[%s476 + $0x40] sm:$0xff] %vm3601, %v3635
        %3659 = vst.msk [vmem:[%s476 + $0x48] sm:$0xff] %vm3601, %v3637
        %3660 = vst.msk [vmem:[%s476 + $0x50] sm:$0xff] %vm3601, %v3639
        %3661 = vst.msk [vmem:[%s476 + $0x58] sm:$0xff] %vm3601, %v3641
        %3662 = vst.msk [vmem:[%s476 + $0x60] sm:$0xff] %vm3601, %v3643
        %3663 = vst.msk [vmem:[%s476 + $0x68] sm:$0xff] %vm3601, %v3645
        %3664 = vst.msk [vmem:[%s476 + $0x70] sm:$0xff] %vm3601, %v3647
        %3665 = vst.msk [vmem:[%s476 + $0x78] sm:$0xff] %vm3601, %v3649
        %s3666 = smul.u32 16, %s32
        %p3667 = scmp.lt.s32.totalorder %s3666, 31
        %s3668 = scalar_select %p3667, %s3666, 31
        %s3669 = smul.addr %s3668, 8
        %s3670 = scalar_lea.vmem %s10, %s3669
        %s3671 = smul.u32 16, %s32
        %p3672 = scmp.lt.s32.totalorder %s3671, 31
        %s3673 = scalar_select %p3672, %s3671, 31
        %s3674 = smul.addr %s3673, 8
        %s3675 = scalar_lea.vmem %s11, %s3674
        // Predicated region
        $region77: #{tpu_custom_call.1} parent=59 // pred_check
          %p3676 = pneg %p265
        $region78: #{tpu_custom_call.1} parent=59 // pred_check_branch
          %3678 = sbr.rel (%p3676) target = $region80
        $region79: #{tpu_custom_call.1} parent=59 // pred_region
          %s3679 = smul.u32 16, %s32
        $region80: #{tpu_custom_call.1} parent=59 // pred_fallthru
          _
        // Predicated region
        $region81: #{tpu_custom_call.1} parent=59 // pred_check
          %p3680 = pneg %p291
        $region82: #{tpu_custom_call.1} parent=59 // pred_check_branch
          %3682 = sbr.rel (%p3680) target = $region84
        $region83: #{tpu_custom_call.1} parent=59 // pred_region
          %s3683 = smul.u32 16, %s32
        $region84: #{tpu_custom_call.1} parent=59 // pred_fallthru
          _
      $region60: #{tpu_custom_call.1} parent=5 // pred_fallthru
        _
      %p3684 = scmp.le.s32.totalorder 2, %s27
      // Predicated region
      $region85: #{tpu_custom_call.1} parent=5 // pred_check
        %p3685 = pneg %p3684
      $region86: #{tpu_custom_call.1} parent=5 // pred_check_branch
        %3687 = sbr.rel (%p3685) target = $region88
      $region87: #{tpu_custom_call.1} parent=5 // pred_region
        %s3688 = ssub.s32 %s27, 2
        // Predicated region
        $region89: #{tpu_custom_call.1} parent=87 // pred_check
          %p3689 = pneg %p271
        $region90: #{tpu_custom_call.1} parent=87 // pred_check_branch
          %3691 = sbr.rel (%p3689) target = $region92
        $region91: #{tpu_custom_call.1} parent=87 // pred_region
          %s3692 = smul.u32 16, %s33
          %p3693 = scmp.lt.s32.totalorder %s3692, 31
          %s3694 = scalar_select %p3693, %s3692, 31
          %s3695 = smul.addr %s3694, 8
          %s3696 = scalar_lea.vmem %s10, %s3695
        $region92: #{tpu_custom_call.1} parent=87 // pred_fallthru
          _
        // Predicated region
        $region93: #{tpu_custom_call.1} parent=87 // pred_check
          %p3697 = pneg %p297
        $region94: #{tpu_custom_call.1} parent=87 // pred_check_branch
          %3699 = sbr.rel (%p3697) target = $region96
        $region95: #{tpu_custom_call.1} parent=87 // pred_region
          %s3700 = smul.u32 16, %s33
          %p3701 = scmp.lt.s32.totalorder %s3700, 31
          %s3702 = scalar_select %p3701, %s3700, 31
          %s3703 = smul.addr %s3702, 8
          %s3704 = scalar_lea.vmem %s11, %s3703
        $region96: #{tpu_custom_call.1} parent=87 // pred_fallthru
          _
      $region88: #{tpu_custom_call.1} parent=5 // pred_fallthru
        _
    $region6: #{tpu_custom_call.1} parent=1 // loop_footer
      %s31 = sadd.s32 1, %s27
    $region7: #{tpu_custom_call.1} parent=1 // loop_footer_branch
      %26 = sbr.rel target = $region3
    $region8: #{tpu_custom_call.1} parent=1 // loop_exit
      _
    %3705 = vsyncpa [#allocation5], 1
    %s3706 = scalar_lea.sflag [#allocation5], 1
    %3707 = vsyncpa %s3706, 1
    %3708 = vsyncpa [#allocation7], 1
    %3709 = vsyncpa [#allocation10], 1

</llo_original>
